<compile_context>
chip_gen: v6e
topology: v6e:2x2x1
jax: 0.10.0
libtpu: 0.0.40
codegen_flags: <defaults>
</compile_context>

<pallas_src>
import functools

import jax
import jax.numpy as jnp
from jax import lax
from jax.experimental import pallas as pl
from jax.experimental.pallas import tpu as pltpu


def autopad(k, p=None, d=1):
    """Pad to 'same' shape outputs (mirrors the PyTorch helper)."""
    if d > 1:
        k = d * (k - 1) + 1 if isinstance(k, int) else [d * (x - 1) + 1 for x in k]
    if p is None:
        p = k // 2 if isinstance(k, int) else [x // 2 for x in k]
    return p


def _round_up(x, m):
    return ((x + m - 1) // m) * m


def _tpu_defaults():
    """Best-effort hardware probe: (physical VMEM bytes, has 256-wide MXU)."""
    vmem_cap = 64 * 1024 * 1024      # conservative default: v7x per-TC VMEM
    wide_mxu = True                  # 256-wide MXU (v6e / v7x)
    try:
        info = pltpu.get_tpu_info()
        cap = getattr(info, "vmem_capacity_bytes", None)
        if cap:
            vmem_cap = int(cap)
        ver = str(getattr(info, "chip_version", "")).lower()
        if "5" in ver:               # v5e / v5p: 128-wide MXU lanes per pass
            wide_mxu = False
    except Exception:
        pass
    return vmem_cap, wide_mxu


# ---------------------------------------------------------------------------
# Pallas kernel: shifted-slice matmuls into a VMEM f32 accumulator + BN shift + SiLU.
# ---------------------------------------------------------------------------
def _conv_bn_silu_kernel(x_ref, w_ref, shift_ref, o_ref, acc_ref, *, k, s, d, TMH, OW):
    """One (image*row-tile, C2-tile) grid step.

    x_ref:     (1, RH, Wp, C1)   bf16  padded input rows for this row tile (+halo)
    w_ref:     (k*k, C1, TC2)    bf16  conv weights with BN scale folded in
    shift_ref: (1, TC2)          f32   beta - mean * gamma / sqrt(var + eps)
    o_ref:     (1, TMH*OW, TC2)        output tile (lane-dense last dim)
    acc_ref:   (TMH*OW, TC2)     f32   VMEM accumulator scratch
    """
    C1 = x_ref.shape[-1]
    M = TMH * OW

    # im2col stays in VMEM as k*k shifted slices; no patch matrix is materialized
    # in HBM. Each tap accumulates into the same f32 scratch.
    for kh in range(k):
        for kw in range(k):
            if s == 1:
                xs = x_ref[0, pl.ds(kh * d, TMH), pl.ds(kw * d, OW), :]
            else:
                # TODO(synk): stride>1 / dilation>1 use doubly-strided loads; this
                # path is not exercised by the test below — verify before relying on it.
                xs = x_ref[0, pl.ds(kh * d, TMH, stride=s),
                           pl.ds(kw * d, OW, stride=s), :]
            part = jnp.dot(xs.reshape(M, C1), w_ref[kh * k + kw],
                           preferred_element_type=jnp.float32)
            if kh == 0 and kw == 0:
                acc_ref[...] = part
            else:
                acc_ref[...] += part

    # BN (scale already folded into weights) + SiLU, in f32.
    y = acc_ref[...] + shift_ref[...]
    y = y * jax.nn.sigmoid(y)
    o_ref[0] = y.astype(o_ref.dtype)


# ---------------------------------------------------------------------------
# Module wrapper: layout/dtype plumbing + BN folding + tiling + pallas_call.
# ---------------------------------------------------------------------------
def conv_forward(x_nchw, weight, bn_gamma, bn_beta, bn_mean, bn_var,
                 *, k, s, p=None, d=1, eps=1e-5, out_dtype=None):
    """Ultralytics Conv.forward: SiLU(BN(Conv2d(x))), groups=1, square kernel."""
    assert isinstance(k, int), "only square int kernels supported"
    p = autopad(k, p, d)
    N, C1, H, W = x_nchw.shape
    C2 = weight.shape[0]
    assert weight.shape == (C2, C1, k, k), "groups != 1 is not supported"
    out_dtype = out_dtype or x_nchw.dtype
    out_itemsize = jnp.dtype(out_dtype).itemsize

    OH = (H + 2 * p - d * (k - 1) - 1) // s + 1
    OW = (W + 2 * p - d * (k - 1) - 1) // s + 1
    Wp = W + 2 * p

    vmem_cap, wide_mxu = _tpu_defaults()
    vmem_budget = vmem_cap * 3 // 4          # ~48 MiB on v7x, ~96 MiB on v5e/v6e

    # Lane-dense output-channel tile: 256 only where the MXU is 256-wide (v6e/v7x).
    C2p = _round_up(C2, 128)
    TC2 = 256 if (wide_mxu and C2p % 256 == 0) else 128
    nj = C2p // TC2

    def rh_of(tmh):                          # input rows needed for tmh output rows
        return (tmh - 1) * s + d * (k - 1) + 1

    def vmem_bytes(tmh):
        """Lane/sublane-padded VMEM footprint for one grid step (double-buffered blocks)."""
        m = tmh * OW
        rh = rh_of(tmh)
        xb = rh * _round_up(Wp, 16) * _round_up(C1, 128) * 2      # bf16 band block
        wb = k * k * _round_up(C1, 16) * TC2 * 2                  # bf16 weight slab
        ob = _round_up(m, 16) * TC2 * out_itemsize                # output block
        accb = _round_up(m, 8) * TC2 * 4                          # f32 accumulator
        tapb = _round_up(m, 16) * _round_up(C1, 128) * 2          # shifted-slice temp
        sb = 8 * TC2 * 4                                          # shift vector
        return 2 * (xb + wb + ob) + accb + 2 * tapb + 2 * sb

    # Spatial tile: TMH output rows (multiple of 8), aiming at ~1-2K output positions,
    # shrunk until the per-step footprint fits the VMEM budget.
    TMH_cap = _round_up(OH, 8)
    TMH = min(TMH_cap, max(8, _round_up(-(-1024 // max(OW, 1)), 8)))
    while TMH > 8 and vmem_bytes(TMH) > vmem_budget:
        TMH -= 8
    nm = -(-OH // TMH)
    RH = rh_of(TMH)
    M = TMH * OW
    NB = N * nm

    # --- input plumbing: NCHW -> NHWC, zero pad, bf16, overlapping row bands -------
    Hp_needed = (nm * TMH - 1) * s + d * (k - 1) + 1
    pad_bottom = p + max(0, Hp_needed - (H + 2 * p))
    x = jnp.transpose(x_nchw, (0, 2, 3, 1))
    x = jnp.pad(x, ((0, 0), (p, pad_bottom), (p, p), (0, 0))).astype(jnp.bfloat16)
    # Overlapping row bands with a (k-1)*d halo; XLA fuses this gather with the
    # transpose/pad/cast above so the activation makes ~one prep pass in HBM.
    x_bands = jnp.stack(
        [lax.dynamic_slice_in_dim(x, mi * TMH * s, RH, axis=1) for mi in range(nm)],
        axis=1).reshape(NB, RH, Wp, C1)

    # --- weights: (C2,C1,k,k) -> (k*k, C1, C2p), BN scale folded in, bf16 ----------
    scale = (bn_gamma / jnp.sqrt(bn_var + eps)).astype(jnp.float32)
    shift = (bn_beta - bn_mean * scale).astype(jnp.float32)
    w = jnp.transpose(weight, (2, 3, 1, 0)).reshape(k * k, C1, C2).astype(jnp.float32)
    w = w * scale[None, None, :]
    if C2p != C2:
        w = jnp.pad(w, ((0, 0), (0, 0), (0, C2p - C2)))
        shift = jnp.pad(shift, (0, C2p - C2))
    w = w.astype(jnp.bfloat16)
    shift = shift.reshape(1, C2p)

    # --- grid ordering by operand size: keep the bigger operand VMEM-resident ------
    bytes_x = x_bands.size * 2
    bytes_w = w.size * 2
    image_resident = bytes_x + NB * bytes_w <= nj * bytes_x + bytes_w
    if image_resident:                       # early layers: band resident, weights restream
        grid = (NB, nj)
        x_map = lambda b, j: (b, 0, 0, 0)
        w_map = lambda b, j: (0, 0, j)
        s_map = lambda b, j: (0, j)
        o_map = lambda b, j: (b, 0, j)
    else:                                    # late layers: weight slab resident
        grid = (nj, NB)
        x_map = lambda j, b: (b, 0, 0, 0)
        w_map = lambda j, b: (0, 0, j)
        s_map = lambda j, b: (0, j)
        o_map = lambda j, b: (b, 0, j)

    vmem_limit = int(min(vmem_budget,
                         max(vmem_bytes(TMH) * 5 // 4 + (4 << 20), 16 << 20)))

    kern = functools.partial(_conv_bn_silu_kernel, k=k, s=s, d=d, TMH=TMH, OW=OW)
    out = pl.pallas_call(
        kern,
        out_shape=jax.ShapeDtypeStruct((NB, M, C2p), out_dtype),
        grid_spec=pltpu.PrefetchScalarGridSpec(
            num_scalar_prefetch=0,
            grid=grid,
            in_specs=[
                pl.BlockSpec((1, RH, Wp, C1), x_map),
                pl.BlockSpec((k * k, C1, TC2), w_map),
                pl.BlockSpec((1, TC2), s_map),
            ],
            out_specs=pl.BlockSpec((1, M, TC2), o_map),
            scratch_shapes=[pltpu.VMEM((M, TC2), jnp.float32)],
        ),
        compiler_params=pltpu.CompilerParams(
            dimension_semantics=("parallel", "parallel"),
            vmem_limit_bytes=vmem_limit,
        ),
    )(x_bands, w, shift)

    # (NB, TMH*OW, C2p) -> (N, nm*TMH, OW, C2p) -> drop row/channel padding -> NCHW.
    out = out.reshape(N, nm * TMH, OW, C2p)[:, :OH, :, :C2]
    return jnp.transpose(out, (0, 3, 1, 2))


# ---------------------------------------------------------------------------
# Reference (pure JAX, f32) for sanity checking.
# ---------------------------------------------------------------------------
def conv_forward_ref(x, weight, g, b, m, v, *, k, s, p=None, d=1, eps=1e-5):
    p = autopad(k, p, d)
    y = lax.conv_general_dilated(
        x, weight, window_strides=(s, s), padding=[(p, p), (p, p)],
        rhs_dilation=(d, d), dimension_numbers=("NCHW", "OIHW", "NCHW"))
    scale = (g / jnp.sqrt(v + eps))[None, :, None, None]
    shift = (b - m * g / jnp.sqrt(v + eps))[None, :, None, None]
    y = y * scale + shift
    return y * jax.nn.sigmoid(y)


if __name__ == "__main__":
    key = jax.random.PRNGKey(0)
    k_x, k_w, k_g, k_b, k_m, k_v = jax.random.split(key, 6)

    # Small shapes: Conv(c1=4, c2=8, k=3, s=1) on x of shape (2, 4, 16, 16).
    N, C1, H, W = 2, 4, 16, 16
    C2, ksize, stride, dil = 8, 3, 1, 1

    x = jax.random.normal(k_x, (N, C1, H, W), jnp.float32)
    weight = jax.random.normal(k_w, (C2, C1, ksize, ksize), jnp.float32) * 0.1
    bn_gamma = 1.0 + 0.1 * jax.random.normal(k_g, (C2,), jnp.float32)
    bn_beta = 0.1 * jax.random.normal(k_b, (C2,), jnp.float32)
    bn_mean = 0.1 * jax.random.normal(k_m, (C2,), jnp.float32)
    bn_var = jax.random.uniform(k_v, (C2,), jnp.float32, minval=0.5, maxval=1.5)

    out = conv_forward(x, weight, bn_gamma, bn_beta, bn_mean, bn_var,
                       k=ksize, s=stride, d=dil)
    out = jax.block_until_ready(out)

    ref = conv_forward_ref(x, weight, bn_gamma, bn_beta, bn_mean, bn_var,
                           k=ksize, s=stride, d=dil)

    assert out.shape == (N, C2, H, W)
    # bf16 MXU operands (f32 accumulation) -> ~1e-2-level tolerance vs. f32 reference.
    assert jnp.allclose(out, ref, atol=5e-2, rtol=5e-2), (
        "mismatch vs reference, max abs err = "
        f"{float(jnp.max(jnp.abs(out - ref)))}")

    print("KERNEL_OK")
</pallas_src>

<mosaic_0001>
module attributes {stable_mosaic.version = 11 : i64} {
  func.func @_conv_bn_silu_kernel(%arg0: i32, %arg1: i32, %arg2: memref<1x18x18x4xbf16, #tpu.memory_space<vmem>>, %arg3: memref<9x4x128xbf16, #tpu.memory_space<vmem>>, %arg4: memref<1x128xf32, #tpu.memory_space<vmem>>, %arg5: memref<1x256x128xf32, #tpu.memory_space<vmem>>, %arg6: memref<256x128xf32, #tpu.memory_space<vmem>>) attributes {dimension_semantics = [#tpu.dimension_semantics<parallel>, #tpu.dimension_semantics<parallel>], iteration_bounds = array<i64: 1, 2>, scalar_prefetch = 0 : i64, scratch_operands = 1 : i64, tpu.core_type = #tpu.core_type<tc>, window_params = [{transform_indices = @transform_0, window_bounds = array<i64: 1, 18, 18, 4>}, {transform_indices = @transform_1, window_bounds = array<i64: 9, 4, 128>}, {transform_indices = @transform_2, window_bounds = array<i64: 1, 128>}, {transform_indices = @transform_3, window_bounds = array<i64: 1, 256, 128>}]} {
    %c0 = arith.constant 0 : index
    %c0_0 = arith.constant 0 : index
    %c0_1 = arith.constant 0 : index
    %c0_2 = arith.constant 0 : index
    %0 = vector.load %arg2[%c0, %c0_0, %c0_1, %c0_2] : memref<1x18x18x4xbf16, #tpu.memory_space<vmem>>, vector<1x16x16x4xbf16>
    %1 = vector.shape_cast %0 : vector<1x16x16x4xbf16> to vector<16x16x4xbf16>
    %2 = vector.shape_cast %1 : vector<16x16x4xbf16> to vector<256x4xbf16>
    %c0_3 = arith.constant 0 : index
    %c0_4 = arith.constant 0 : index
    %c0_5 = arith.constant 0 : index
    %3 = vector.load %arg3[%c0_3, %c0_4, %c0_5] : memref<9x4x128xbf16, #tpu.memory_space<vmem>>, vector<1x4x128xbf16>
    %4 = vector.shape_cast %3 : vector<1x4x128xbf16> to vector<4x128xbf16>
    %cst = arith.constant dense<0.000000e+00> : vector<256x128xf32>
    %5 = tpu.matmul %2, %4, %cst {dimension_numbers = #tpu.dot_dimension_numbers<[1], [0], [0], [1], [0, 0, 1, 1], [], []>} : vector<256x4xbf16>, vector<4x128xbf16>, vector<256x128xf32> -> vector<256x128xf32>
    %c0_6 = arith.constant 0 : index
    %c0_7 = arith.constant 0 : index
    %6 = vector.load %arg6[%c0_6, %c0_7] : memref<256x128xf32, #tpu.memory_space<vmem>>, vector<256x128xf32>
    tpu.vector_store %arg6[%c0_6, %c0_7], %5 {strides = array<i32>} : memref<256x128xf32, #tpu.memory_space<vmem>>, vector<256x128xf32>,
    %c0_8 = arith.constant 0 : index
    %c0_9 = arith.constant 0 : index
    %c1 = arith.constant 1 : index
    %c0_10 = arith.constant 0 : index
    %7 = vector.load %arg2[%c0_8, %c0_9, %c1, %c0_10] : memref<1x18x18x4xbf16, #tpu.memory_space<vmem>>, vector<1x16x16x4xbf16>
    %8 = vector.shape_cast %7 : vector<1x16x16x4xbf16> to vector<16x16x4xbf16>
    %9 = vector.shape_cast %8 : vector<16x16x4xbf16> to vector<256x4xbf16>
    %c1_11 = arith.constant 1 : index
    %c0_12 = arith.constant 0 : index
    %c0_13 = arith.constant 0 : index
    %10 = vector.load %arg3[%c1_11, %c0_12, %c0_13] : memref<9x4x128xbf16, #tpu.memory_space<vmem>>, vector<1x4x128xbf16>
    %11 = vector.shape_cast %10 : vector<1x4x128xbf16> to vector<4x128xbf16>
    %cst_14 = arith.constant dense<0.000000e+00> : vector<256x128xf32>
    %12 = tpu.matmul %9, %11, %cst_14 {dimension_numbers = #tpu.dot_dimension_numbers<[1], [0], [0], [1], [0, 0, 1, 1], [], []>} : vector<256x4xbf16>, vector<4x128xbf16>, vector<256x128xf32> -> vector<256x128xf32>
    %c0_15 = arith.constant 0 : index
    %c0_16 = arith.constant 0 : index
    %13 = vector.load %arg6[%c0_15, %c0_16] : memref<256x128xf32, #tpu.memory_space<vmem>>, vector<256x128xf32>
    %14 = arith.addf %13, %12 : vector<256x128xf32>
    %c0_17 = arith.constant 0 : index
    %c0_18 = arith.constant 0 : index
    %15 = vector.load %arg6[%c0_17, %c0_18] : memref<256x128xf32, #tpu.memory_space<vmem>>, vector<256x128xf32>
    tpu.vector_store %arg6[%c0_17, %c0_18], %14 {strides = array<i32>} : memref<256x128xf32, #tpu.memory_space<vmem>>, vector<256x128xf32>,
    %c0_19 = arith.constant 0 : index
    %c0_20 = arith.constant 0 : index
    %c2 = arith.constant 2 : index
    %c0_21 = arith.constant 0 : index
    %16 = vector.load %arg2[%c0_19, %c0_20, %c2, %c0_21] : memref<1x18x18x4xbf16, #tpu.memory_space<vmem>>, vector<1x16x16x4xbf16>
    %17 = vector.shape_cast %16 : vector<1x16x16x4xbf16> to vector<16x16x4xbf16>
    %18 = vector.shape_cast %17 : vector<16x16x4xbf16> to vector<256x4xbf16>
    %c2_22 = arith.constant 2 : index
    %c0_23 = arith.constant 0 : index
    %c0_24 = arith.constant 0 : index
    %19 = vector.load %arg3[%c2_22, %c0_23, %c0_24] : memref<9x4x128xbf16, #tpu.memory_space<vmem>>, vector<1x4x128xbf16>
    %20 = vector.shape_cast %19 : vector<1x4x128xbf16> to vector<4x128xbf16>
    %cst_25 = arith.constant dense<0.000000e+00> : vector<256x128xf32>
    %21 = tpu.matmul %18, %20, %cst_25 {dimension_numbers = #tpu.dot_dimension_numbers<[1], [0], [0], [1], [0, 0, 1, 1], [], []>} : vector<256x4xbf16>, vector<4x128xbf16>, vector<256x128xf32> -> vector<256x128xf32>
    %c0_26 = arith.constant 0 : index
    %c0_27 = arith.constant 0 : index
    %22 = vector.load %arg6[%c0_26, %c0_27] : memref<256x128xf32, #tpu.memory_space<vmem>>, vector<256x128xf32>
    %23 = arith.addf %22, %21 : vector<256x128xf32>
    %c0_28 = arith.constant 0 : index
    %c0_29 = arith.constant 0 : index
    %24 = vector.load %arg6[%c0_28, %c0_29] : memref<256x128xf32, #tpu.memory_space<vmem>>, vector<256x128xf32>
    tpu.vector_store %arg6[%c0_28, %c0_29], %23 {strides = array<i32>} : memref<256x128xf32, #tpu.memory_space<vmem>>, vector<256x128xf32>,
    %c0_30 = arith.constant 0 : index
    %c1_31 = arith.constant 1 : index
    %c0_32 = arith.constant 0 : index
    %c0_33 = arith.constant 0 : index
    %25 = vector.load %arg2[%c0_30, %c1_31, %c0_32, %c0_33] : memref<1x18x18x4xbf16, #tpu.memory_space<vmem>>, vector<1x16x16x4xbf16>
    %26 = vector.shape_cast %25 : vector<1x16x16x4xbf16> to vector<16x16x4xbf16>
    %27 = vector.shape_cast %26 : vector<16x16x4xbf16> to vector<256x4xbf16>
    %c3 = arith.constant 3 : index
    %c0_34 = arith.constant 0 : index
    %c0_35 = arith.constant 0 : index
    %28 = vector.load %arg3[%c3, %c0_34, %c0_35] : memref<9x4x128xbf16, #tpu.memory_space<vmem>>, vector<1x4x128xbf16>
    %29 = vector.shape_cast %28 : vector<1x4x128xbf16> to vector<4x128xbf16>
    %cst_36 = arith.constant dense<0.000000e+00> : vector<256x128xf32>
    %30 = tpu.matmul %27, %29, %cst_36 {dimension_numbers = #tpu.dot_dimension_numbers<[1], [0], [0], [1], [0, 0, 1, 1], [], []>} : vector<256x4xbf16>, vector<4x128xbf16>, vector<256x128xf32> -> vector<256x128xf32>
    %c0_37 = arith.constant 0 : index
    %c0_38 = arith.constant 0 : index
    %31 = vector.load %arg6[%c0_37, %c0_38] : memref<256x128xf32, #tpu.memory_space<vmem>>, vector<256x128xf32>
    %32 = arith.addf %31, %30 : vector<256x128xf32>
    %c0_39 = arith.constant 0 : index
    %c0_40 = arith.constant 0 : index
    %33 = vector.load %arg6[%c0_39, %c0_40] : memref<256x128xf32, #tpu.memory_space<vmem>>, vector<256x128xf32>
    tpu.vector_store %arg6[%c0_39, %c0_40], %32 {strides = array<i32>} : memref<256x128xf32, #tpu.memory_space<vmem>>, vector<256x128xf32>,
    %c0_41 = arith.constant 0 : index
    %c1_42 = arith.constant 1 : index
    %c1_43 = arith.constant 1 : index
    %c0_44 = arith.constant 0 : index
    %34 = vector.load %arg2[%c0_41, %c1_42, %c1_43, %c0_44] : memref<1x18x18x4xbf16, #tpu.memory_space<vmem>>, vector<1x16x16x4xbf16>
    %35 = vector.shape_cast %34 : vector<1x16x16x4xbf16> to vector<16x16x4xbf16>
    %36 = vector.shape_cast %35 : vector<16x16x4xbf16> to vector<256x4xbf16>
    %c4 = arith.constant 4 : index
    %c0_45 = arith.constant 0 : index
    %c0_46 = arith.constant 0 : index
    %37 = vector.load %arg3[%c4, %c0_45, %c0_46] : memref<9x4x128xbf16, #tpu.memory_space<vmem>>, vector<1x4x128xbf16>
    %38 = vector.shape_cast %37 : vector<1x4x128xbf16> to vector<4x128xbf16>
    %cst_47 = arith.constant dense<0.000000e+00> : vector<256x128xf32>
    %39 = tpu.matmul %36, %38, %cst_47 {dimension_numbers = #tpu.dot_dimension_numbers<[1], [0], [0], [1], [0, 0, 1, 1], [], []>} : vector<256x4xbf16>, vector<4x128xbf16>, vector<256x128xf32> -> vector<256x128xf32>
    %c0_48 = arith.constant 0 : index
    %c0_49 = arith.constant 0 : index
    %40 = vector.load %arg6[%c0_48, %c0_49] : memref<256x128xf32, #tpu.memory_space<vmem>>, vector<256x128xf32>
    %41 = arith.addf %40, %39 : vector<256x128xf32>
    %c0_50 = arith.constant 0 : index
    %c0_51 = arith.constant 0 : index
    %42 = vector.load %arg6[%c0_50, %c0_51] : memref<256x128xf32, #tpu.memory_space<vmem>>, vector<256x128xf32>
    tpu.vector_store %arg6[%c0_50, %c0_51], %41 {strides = array<i32>} : memref<256x128xf32, #tpu.memory_space<vmem>>, vector<256x128xf32>,
    %c0_52 = arith.constant 0 : index
    %c1_53 = arith.constant 1 : index
    %c2_54 = arith.constant 2 : index
    %c0_55 = arith.constant 0 : index
    %43 = vector.load %arg2[%c0_52, %c1_53, %c2_54, %c0_55] : memref<1x18x18x4xbf16, #tpu.memory_space<vmem>>, vector<1x16x16x4xbf16>
    %44 = vector.shape_cast %43 : vector<1x16x16x4xbf16> to vector<16x16x4xbf16>
    %45 = vector.shape_cast %44 : vector<16x16x4xbf16> to vector<256x4xbf16>
    %c5 = arith.constant 5 : index
    %c0_56 = arith.constant 0 : index
    %c0_57 = arith.constant 0 : index
    %46 = vector.load %arg3[%c5, %c0_56, %c0_57] : memref<9x4x128xbf16, #tpu.memory_space<vmem>>, vector<1x4x128xbf16>
    %47 = vector.shape_cast %46 : vector<1x4x128xbf16> to vector<4x128xbf16>
    %cst_58 = arith.constant dense<0.000000e+00> : vector<256x128xf32>
    %48 = tpu.matmul %45, %47, %cst_58 {dimension_numbers = #tpu.dot_dimension_numbers<[1], [0], [0], [1], [0, 0, 1, 1], [], []>} : vector<256x4xbf16>, vector<4x128xbf16>, vector<256x128xf32> -> vector<256x128xf32>
    %c0_59 = arith.constant 0 : index
    %c0_60 = arith.constant 0 : index
    %49 = vector.load %arg6[%c0_59, %c0_60] : memref<256x128xf32, #tpu.memory_space<vmem>>, vector<256x128xf32>
    %50 = arith.addf %49, %48 : vector<256x128xf32>
    %c0_61 = arith.constant 0 : index
    %c0_62 = arith.constant 0 : index
    %51 = vector.load %arg6[%c0_61, %c0_62] : memref<256x128xf32, #tpu.memory_space<vmem>>, vector<256x128xf32>
    tpu.vector_store %arg6[%c0_61, %c0_62], %50 {strides = array<i32>} : memref<256x128xf32, #tpu.memory_space<vmem>>, vector<256x128xf32>,
    %c0_63 = arith.constant 0 : index
    %c2_64 = arith.constant 2 : index
    %c0_65 = arith.constant 0 : index
    %c0_66 = arith.constant 0 : index
    %52 = vector.load %arg2[%c0_63, %c2_64, %c0_65, %c0_66] : memref<1x18x18x4xbf16, #tpu.memory_space<vmem>>, vector<1x16x16x4xbf16>
    %53 = vector.shape_cast %52 : vector<1x16x16x4xbf16> to vector<16x16x4xbf16>
    %54 = vector.shape_cast %53 : vector<16x16x4xbf16> to vector<256x4xbf16>
    %c6 = arith.constant 6 : index
    %c0_67 = arith.constant 0 : index
    %c0_68 = arith.constant 0 : index
    %55 = vector.load %arg3[%c6, %c0_67, %c0_68] : memref<9x4x128xbf16, #tpu.memory_space<vmem>>, vector<1x4x128xbf16>
    %56 = vector.shape_cast %55 : vector<1x4x128xbf16> to vector<4x128xbf16>
    %cst_69 = arith.constant dense<0.000000e+00> : vector<256x128xf32>
    %57 = tpu.matmul %54, %56, %cst_69 {dimension_numbers = #tpu.dot_dimension_numbers<[1], [0], [0], [1], [0, 0, 1, 1], [], []>} : vector<256x4xbf16>, vector<4x128xbf16>, vector<256x128xf32> -> vector<256x128xf32>
    %c0_70 = arith.constant 0 : index
    %c0_71 = arith.constant 0 : index
    %58 = vector.load %arg6[%c0_70, %c0_71] : memref<256x128xf32, #tpu.memory_space<vmem>>, vector<256x128xf32>
    %59 = arith.addf %58, %57 : vector<256x128xf32>
    %c0_72 = arith.constant 0 : index
    %c0_73 = arith.constant 0 : index
    %60 = vector.load %arg6[%c0_72, %c0_73] : memref<256x128xf32, #tpu.memory_space<vmem>>, vector<256x128xf32>
    tpu.vector_store %arg6[%c0_72, %c0_73], %59 {strides = array<i32>} : memref<256x128xf32, #tpu.memory_space<vmem>>, vector<256x128xf32>,
    %c0_74 = arith.constant 0 : index
    %c2_75 = arith.constant 2 : index
    %c1_76 = arith.constant 1 : index
    %c0_77 = arith.constant 0 : index
    %61 = vector.load %arg2[%c0_74, %c2_75, %c1_76, %c0_77] : memref<1x18x18x4xbf16, #tpu.memory_space<vmem>>, vector<1x16x16x4xbf16>
    %62 = vector.shape_cast %61 : vector<1x16x16x4xbf16> to vector<16x16x4xbf16>
    %63 = vector.shape_cast %62 : vector<16x16x4xbf16> to vector<256x4xbf16>
    %c7 = arith.constant 7 : index
    %c0_78 = arith.constant 0 : index
    %c0_79 = arith.constant 0 : index
    %64 = vector.load %arg3[%c7, %c0_78, %c0_79] : memref<9x4x128xbf16, #tpu.memory_space<vmem>>, vector<1x4x128xbf16>
    %65 = vector.shape_cast %64 : vector<1x4x128xbf16> to vector<4x128xbf16>
    %cst_80 = arith.constant dense<0.000000e+00> : vector<256x128xf32>
    %66 = tpu.matmul %63, %65, %cst_80 {dimension_numbers = #tpu.dot_dimension_numbers<[1], [0], [0], [1], [0, 0, 1, 1], [], []>} : vector<256x4xbf16>, vector<4x128xbf16>, vector<256x128xf32> -> vector<256x128xf32>
    %c0_81 = arith.constant 0 : index
    %c0_82 = arith.constant 0 : index
    %67 = vector.load %arg6[%c0_81, %c0_82] : memref<256x128xf32, #tpu.memory_space<vmem>>, vector<256x128xf32>
    %68 = arith.addf %67, %66 : vector<256x128xf32>
    %c0_83 = arith.constant 0 : index
    %c0_84 = arith.constant 0 : index
    %69 = vector.load %arg6[%c0_83, %c0_84] : memref<256x128xf32, #tpu.memory_space<vmem>>, vector<256x128xf32>
    tpu.vector_store %arg6[%c0_83, %c0_84], %68 {strides = array<i32>} : memref<256x128xf32, #tpu.memory_space<vmem>>, vector<256x128xf32>,
    %c0_85 = arith.constant 0 : index
    %c2_86 = arith.constant 2 : index
    %c2_87 = arith.constant 2 : index
    %c0_88 = arith.constant 0 : index
    %70 = vector.load %arg2[%c0_85, %c2_86, %c2_87, %c0_88] : memref<1x18x18x4xbf16, #tpu.memory_space<vmem>>, vector<1x16x16x4xbf16>
    %71 = vector.shape_cast %70 : vector<1x16x16x4xbf16> to vector<16x16x4xbf16>
    %72 = vector.shape_cast %71 : vector<16x16x4xbf16> to vector<256x4xbf16>
    %c8 = arith.constant 8 : index
    %c0_89 = arith.constant 0 : index
    %c0_90 = arith.constant 0 : index
    %73 = vector.load %arg3[%c8, %c0_89, %c0_90] : memref<9x4x128xbf16, #tpu.memory_space<vmem>>, vector<1x4x128xbf16>
    %74 = vector.shape_cast %73 : vector<1x4x128xbf16> to vector<4x128xbf16>
    %cst_91 = arith.constant dense<0.000000e+00> : vector<256x128xf32>
    %75 = tpu.matmul %72, %74, %cst_91 {dimension_numbers = #tpu.dot_dimension_numbers<[1], [0], [0], [1], [0, 0, 1, 1], [], []>} : vector<256x4xbf16>, vector<4x128xbf16>, vector<256x128xf32> -> vector<256x128xf32>
    %c0_92 = arith.constant 0 : index
    %c0_93 = arith.constant 0 : index
    %76 = vector.load %arg6[%c0_92, %c0_93] : memref<256x128xf32, #tpu.memory_space<vmem>>, vector<256x128xf32>
    %77 = arith.addf %76, %75 : vector<256x128xf32>
    %c0_94 = arith.constant 0 : index
    %c0_95 = arith.constant 0 : index
    %78 = vector.load %arg6[%c0_94, %c0_95] : memref<256x128xf32, #tpu.memory_space<vmem>>, vector<256x128xf32>
    tpu.vector_store %arg6[%c0_94, %c0_95], %77 {strides = array<i32>} : memref<256x128xf32, #tpu.memory_space<vmem>>, vector<256x128xf32>,
    %c0_96 = arith.constant 0 : index
    %c0_97 = arith.constant 0 : index
    %79 = vector.load %arg6[%c0_96, %c0_97] : memref<256x128xf32, #tpu.memory_space<vmem>>, vector<256x128xf32>
    %c0_98 = arith.constant 0 : index
    %c0_99 = arith.constant 0 : index
    %80 = vector.load %arg4[%c0_98, %c0_99] : memref<1x128xf32, #tpu.memory_space<vmem>>, vector<1x128xf32>
    %81 = vector.broadcast %80 : vector<1x128xf32> to vector<256x128xf32>
    %82 = arith.addf %79, %81 : vector<256x128xf32>
    %83 = arith.negf %82 : vector<256x128xf32>
    %84 = math.exp %83 : vector<256x128xf32>
    %cst_100 = arith.constant 1.000000e+00 : f32
    %85 = vector.broadcast %cst_100 : f32 to vector<256x128xf32>
    %86 = arith.addf %85, %84 : vector<256x128xf32>
    %87 = arith.divf %85, %86 : vector<256x128xf32>
    %88 = arith.mulf %82, %87 : vector<256x128xf32>
    %c0_101 = arith.constant 0 : index
    %c0_102 = arith.constant 0 : index
    %c0_103 = arith.constant 0 : index
    %89 = vector.load %arg5[%c0_101, %c0_102, %c0_103] : memref<1x256x128xf32, #tpu.memory_space<vmem>>, vector<1x256x128xf32>
    %90 = vector.shape_cast %89 : vector<1x256x128xf32> to vector<256x128xf32>
    %91 = vector.shape_cast %88 : vector<256x128xf32> to vector<1x256x128xf32>
    tpu.vector_store %arg5[%c0_101, %c0_102, %c0_103], %91 {strides = array<i32>} : memref<1x256x128xf32, #tpu.memory_space<vmem>>, vector<1x256x128xf32>,
    return
  }
  func.func @transform_0(%arg0: i32, %arg1: i32) -> (i32, i32, i32, i32) {
    %c0_i32 = arith.constant 0 : i32
    %c0_i32_0 = arith.constant 0 : i32
    %c0_i32_1 = arith.constant 0 : i32
    %c0_i32_2 = arith.constant 0 : i32
    return %arg1, %c0_i32, %c0_i32_0, %c0_i32_1 : i32, i32, i32, i32
  }
  func.func @transform_1(%arg0: i32, %arg1: i32) -> (i32, i32, i32) {
    %c0_i32 = arith.constant 0 : i32
    %c0_i32_0 = arith.constant 0 : i32
    %c0_i32_1 = arith.constant 0 : i32
    return %c0_i32, %c0_i32_0, %arg0 : i32, i32, i32
  }
  func.func @transform_2(%arg0: i32, %arg1: i32) -> (i32, i32) {
    %c0_i32 = arith.constant 0 : i32
    %c0_i32_0 = arith.constant 0 : i32
    return %c0_i32, %arg0 : i32, i32
  }
  func.func @transform_3(%arg0: i32, %arg1: i32) -> (i32, i32, i32) {
    %c0_i32 = arith.constant 0 : i32
    %c0_i32_0 = arith.constant 0 : i32
    return %arg1, %c0_i32, %arg0 : i32, i32, i32
  }
}

</mosaic_0001>

<llo_original>
// kernel: tpu_custom_call.1
$region0: #{tpu_custom_call.1}
  #allocation0 [shape = 'u32[]', space=smem, size = 0x4, offset = 0x4, fixed_abs, tag = 'smem constant byte address 0x4 - core index']
  #allocation1 [shape = 'u32[144,128]{1,0:T(1,128)}', space=vmem, size = 0x12000, scoped, tag = 'internal scratch']
  #allocation2 [shape = 'f32[256,128]{1,0:T(8,128)}', space=vmem, size = 0x20000, scoped, tag = 'scratch operand']
  %s0 = inlined_call_operand.vmem [shape: bf16[2,18,18,4], index: 0, kind: input, shape index: {}]
  %s1 = inlined_call_operand.vmem [shape: bf16[9,4,128], index: 1, kind: input, shape index: {}]
  %s2 = inlined_call_operand.vmem [shape: f32[1,128], index: 2, kind: input, shape index: {}]
  %s3 = inlined_call_operand.hbm [shape: f32[2,256,128], index: 3, kind: output, shape index: {}]
  %s4 = sld [smem:[#allocation0]]
  $region45: #{tpu_custom_call.1} parent=0
    _
  %s6 = ssub.s32 1, %s4
  %s7 = scalar_select 0, %s6, %s4
  $region1: #{tpu_custom_call.1} parent=0
    #allocation3 [shape = 'u8[262144]{0}', space=vmem, size = 0x40000, scoped, tag = 'output window, operand 0']
    #allocation4 [shape = 's32[2]{0}', space=sflag, size = 0x8, scoped, tag = 'scoped memory for tpu_custom_call.1']
    %8 = vsyncpa [#allocation4], 0
    %s9 = scalar_lea.sflag [#allocation4], 1
    %10 = vsyncpa %s9, 0
    loop: start=0, step=1, limit=4
    $region2: #{tpu_custom_call.1} parent=1 // loop_pre_header
      _
    $region3: #{tpu_custom_call.1} parent=1 // loop_header
      %s12 = sphi 0, %s16
      %p13 = scmp.ge.s32.totalorder %s12, 4
      %s19 = sphi 0, %s31
      %s20 = sphi 0, %s27
      %s21 = sphi 0, %s19
      %s22 = sphi 0, %s20
      %s23 = sphi 0, %s21
      %s24 = sphi 0, %s22
      %s34 = sphi 0, %s36
      %s37 = sphi 0, %s34
      %s38 = sphi 0, %s37
      %s54 = sphi 0, %s38
      %s60 = sphi 0, %s62
      %s63 = sphi 0, %s60
      %s64 = sphi 0, %s63
      %s80 = sphi 0, %s64
      %s86 = sphi 0, %s88
      %s89 = sphi 0, %s86
      %s90 = sphi 0, %s89
      %s106 = sphi 0, %s90
      %s114 = sphi 0, %s116
      %s117 = sphi 0, %s114
      %s118 = sphi 0, %s117
      %s134 = sphi 0, %s118
    $region4: #{tpu_custom_call.1} parent=1 // loop_header_branch
      %15 = sbr.rel (%p13) target = $region8
    $region5: #{tpu_custom_call.1} parent=1 // loop_body
      %s17 = ssub.s32 %s12, 1
      %s18 = ssub.s32 %s12, 2
      %s25 = sadd.s32 1, %s20
      %p26 = scmp.ge.s32.totalorder %s25, 2
      %s27 = scalar_select %p26, 0, %s25
      %s28 = sadd.s32 1, %s19
      %s29 = scalar_select %p26, %s28, %s19
      %p30 = scmp.ge.s32.totalorder %s29, 1
      %s31 = scalar_select %p30, 0, %s29
      %s32 = ssub.s32 %s20, %s27
      %p33 = scmp.eq.s32.totalorder %s32, 0
      %s35 = sadd.s32 %s34, 1
      %s36 = scalar_select %p33, %s34, %s35
      %p39 = pneg %p33
      %p40 = scmp.eq.s32.totalorder %s12, 1
      %p41 = por %p39, %p40
      %p42 = scmp.ne.s32.totalorder %s34, %s37
      %p43 = scmp.eq.s32.totalorder %s12, 0
      %p44 = por %p42, %p43
      %p45 = scmp.ne.s32.totalorder %s34, %s37
      %p46 = scmp.eq.s32.totalorder %s17, 1
      %p47 = por %p45, %p46
      %p48 = scmp.ne.s32.totalorder %s37, %s38
      %p49 = scmp.eq.s32.totalorder %s17, 0
      %p50 = por %p48, %p49
      %p51 = scmp.ne.s32.totalorder %s37, %s38
      %p52 = scmp.eq.s32.totalorder %s18, 1
      %p53 = por %p51, %p52
      %p55 = scmp.ne.s32.totalorder %s38, %s54
      %p56 = scmp.eq.s32.totalorder %s18, 0
      %p57 = por %p55, %p56
      %s58 = ssub.s32 %s19, %s31
      %p59 = scmp.eq.s32.totalorder %s58, 0
      %s61 = sadd.s32 %s60, 1
      %s62 = scalar_select %p59, %s60, %s61
      %p65 = pneg %p59
      %p66 = scmp.eq.s32.totalorder %s12, 1
      %p67 = por %p65, %p66
      %p68 = scmp.ne.s32.totalorder %s60, %s63
      %p69 = scmp.eq.s32.totalorder %s12, 0
      %p70 = por %p68, %p69
      %p71 = scmp.ne.s32.totalorder %s60, %s63
      %p72 = scmp.eq.s32.totalorder %s17, 1
      %p73 = por %p71, %p72
      %p74 = scmp.ne.s32.totalorder %s63, %s64
      %p75 = scmp.eq.s32.totalorder %s17, 0
      %p76 = por %p74, %p75
      %p77 = scmp.ne.s32.totalorder %s63, %s64
      %p78 = scmp.eq.s32.totalorder %s18, 1
      %p79 = por %p77, %p78
      %p81 = scmp.ne.s32.totalorder %s64, %s80
      %p82 = scmp.eq.s32.totalorder %s18, 0
      %p83 = por %p81, %p82
      %s84 = ssub.s32 %s19, %s31
      %p85 = scmp.eq.s32.totalorder %s84, 0
      %s87 = sadd.s32 %s86, 1
      %s88 = scalar_select %p85, %s86, %s87
      %p91 = pneg %p85
      %p92 = scmp.eq.s32.totalorder %s12, 1
      %p93 = por %p91, %p92
      %p94 = scmp.ne.s32.totalorder %s86, %s89
      %p95 = scmp.eq.s32.totalorder %s12, 0
      %p96 = por %p94, %p95
      %p97 = scmp.ne.s32.totalorder %s86, %s89
      %p98 = scmp.eq.s32.totalorder %s17, 1
      %p99 = por %p97, %p98
      %p100 = scmp.ne.s32.totalorder %s89, %s90
      %p101 = scmp.eq.s32.totalorder %s17, 0
      %p102 = por %p100, %p101
      %p103 = scmp.ne.s32.totalorder %s89, %s90
      %p104 = scmp.eq.s32.totalorder %s18, 1
      %p105 = por %p103, %p104
      %p107 = scmp.ne.s32.totalorder %s90, %s106
      %p108 = scmp.eq.s32.totalorder %s18, 0
      %p109 = por %p107, %p108
      %s110 = ssub.s32 %s20, %s27
      %s111 = ssub.s32 %s19, %s31
      %s112 = sor.u32 %s110, %s111
      %p113 = scmp.eq.s32.totalorder %s112, 0
      %s115 = sadd.s32 %s114, 1
      %s116 = scalar_select %p113, %s114, %s115
      %p119 = pneg %p113
      %p120 = scmp.eq.s32.totalorder %s12, 1
      %p121 = por %p119, %p120
      %p122 = scmp.ne.s32.totalorder %s114, %s117
      %p123 = scmp.eq.s32.totalorder %s12, 0
      %p124 = por %p122, %p123
      %p125 = scmp.ne.s32.totalorder %s114, %s117
      %p126 = scmp.eq.s32.totalorder %s17, 1
      %p127 = por %p125, %p126
      %p128 = scmp.ne.s32.totalorder %s117, %s118
      %p129 = scmp.eq.s32.totalorder %s17, 0
      %p130 = por %p128, %p129
      %p131 = scmp.ne.s32.totalorder %s117, %s118
      %p132 = scmp.eq.s32.totalorder %s18, 1
      %p133 = por %p131, %p132
      %p135 = scmp.ne.s32.totalorder %s118, %s134
      %p136 = scmp.eq.s32.totalorder %s18, 0
      %p137 = por %p135, %p136
      %p138 = scmp.le.s32.totalorder 1, %s12
      %p139 = scmp.lt.s32.totalorder %s12, 3
      %p140 = pnand %p138, %p139
      %p141 = pneg %p140
      // Predicated region
      $region9: #{tpu_custom_call.1} parent=5 // pred_check
        _
      $region10: #{tpu_custom_call.1} parent=5 // pred_check_branch
        %143 = sbr.rel (%p140) target = $region12
      $region11: #{tpu_custom_call.1} parent=5 // pred_region
        %s144 = ssub.s32 %s12, 1
        // Predicated region
        $region13: #{tpu_custom_call.1} parent=11 // pred_check
          %p145 = pneg %p76
        $region14: #{tpu_custom_call.1} parent=11 // pred_check_branch
          %147 = sbr.rel (%p145) target = $region16
        $region15: #{tpu_custom_call.1} parent=11 // pred_region
          %p148 = scmp.lt.s32.totalorder %s21, 0
          %s149 = scalar_select %p148, %s21, 0
          %s150 = smul.addr %s149, 2
          %s151 = scalar_lea.vmem %s1, %s150
        $region16: #{tpu_custom_call.1} parent=11 // pred_fallthru
          _
        // Predicated region
        $region17: #{tpu_custom_call.1} parent=11 // pred_check
          %p152 = pneg %p102
        $region18: #{tpu_custom_call.1} parent=11 // pred_check_branch
          %154 = sbr.rel (%p152) target = $region20
        $region19: #{tpu_custom_call.1} parent=11 // pred_region
          %p155 = scmp.lt.s32.totalorder %s21, 0
          %s156 = scalar_select %p155, %s21, 0
          %s157 = scalar_lea.vmem %s2, %s156
        $region20: #{tpu_custom_call.1} parent=11 // pred_fallthru
          _
      $region12: #{tpu_custom_call.1} parent=5 // pred_fallthru
        _
      %p158 = scmp.lt.s32.totalorder %s12, 2
      // Predicated region
      $region21: #{tpu_custom_call.1} parent=5 // pred_check
        %p159 = pneg %p158
      $region22: #{tpu_custom_call.1} parent=5 // pred_check_branch
        %161 = sbr.rel (%p159) target = $region24
      $region23: #{tpu_custom_call.1} parent=5 // pred_region
        // Predicated region
        $region25: #{tpu_custom_call.1} parent=23 // pred_check
          %p162 = pneg %p44
        $region26: #{tpu_custom_call.1} parent=23 // pred_check_branch
          %164 = sbr.rel (%p162) target = $region28
        $region27: #{tpu_custom_call.1} parent=23 // pred_region
          %p165 = scmp.lt.s32.totalorder %s20, 1
          %s166 = scalar_select %p165, %s20, 1
          %s167 = smul.addr %s166, 54
          %s168 = smul.addr %s167, 4
          %s169 = scalar_lea.vmem %s0, %s168
        $region28: #{tpu_custom_call.1} parent=23 // pred_fallthru
          _
      $region24: #{tpu_custom_call.1} parent=5 // pred_fallthru
        _
      %p170 = scmp.le.s32.totalorder 1, %s12
      %p171 = scmp.lt.s32.totalorder %s12, 3
      %p172 = pnand %p170, %p171
      %p173 = pneg %p172
      // Predicated region
      $region29: #{tpu_custom_call.1} parent=5 // pred_check
        _
      $region30: #{tpu_custom_call.1} parent=5 // pred_check_branch
        %175 = sbr.rel (%p172) target = $region32
      $region31: #{tpu_custom_call.1} parent=5 // pred_region
        %s176 = ssub.s32 %s12, 1
        %p177 = scmp.lt.s32.totalorder %s22, 1
        %s178 = scalar_select %p177, %s22, 1
        %s179 = smul.addr %s178, 54
        %s180 = smul.addr %s179, 4
        %s181 = scalar_lea.vmem %s0, %s180
        %p182 = pneg %p50
        %p183 = pneg %p47
        %p184 = scmp.lt.s32.totalorder %s21, 0
        %s185 = scalar_select %p184, %s21, 0
        %s186 = smul.addr %s185, 2
        %s187 = scalar_lea.vmem %s1, %s186
        %p188 = pneg %p76
        %p189 = pneg %p73
        %p190 = scmp.lt.s32.totalorder %s21, 0
        %s191 = scalar_select %p190, %s21, 0
        %s192 = scalar_lea.vmem %s2, %s191
        %p193 = pneg %p102
        %p194 = pneg %p99
        %p195 = pneg %p130
        %p196 = pneg %p127
        %s197 = sand.u32 %s117, 1
        %s198 = scalar_lea.sflag [#allocation4], %s197
        %s199 = sand.u32 %s117, 1
        %s200 = smul.addr %s199, 256
        %s201 = scalar_lea.vmem [#allocation3], %s200
        %p202 = scmp.lt.s32.totalorder %s22, 1
        %s203 = scalar_select %p202, %s22, 1
        %s204 = smul.addr %s203, 54
        %s205 = smul.addr %s204, 4
        %s206 = scalar_lea.vmem %s0, %s205
        %p207 = scmp.lt.s32.totalorder %s21, 0
        %s208 = scalar_select %p207, %s21, 0
        %s209 = smul.addr %s208, 2
        %s210 = scalar_lea.vmem %s1, %s209
        %p211 = scmp.lt.s32.totalorder %s21, 0
        %s212 = scalar_select %p211, %s21, 0
        %s213 = scalar_lea.vmem %s2, %s212
        %v215 = vld [vmem:[%s206] sm:$0xf]
        %v216 = vld [vmem:[%s206 + $0x4] sm:$0xf]
        %v217 = vld [vmem:[%s206 + $0xc] sm:$0xf]
        %v218 = vld [vmem:[%s206 + $0x10] sm:$0xf]
        %v219 = vld [vmem:[%s206 + $0x18] sm:$0xf]
        %v220 = vld [vmem:[%s206 + $0x1c] sm:$0xf]
        %v221 = vld [vmem:[%s206 + $0x24] sm:$0xf]
        %v222 = vld [vmem:[%s206 + $0x28] sm:$0xf]
        %v223 = vld [vmem:[%s206 + $0x30] sm:$0xf]
        %v224 = vld [vmem:[%s206 + $0x34] sm:$0xf]
        %v225 = vld [vmem:[%s206 + $0x3c] sm:$0xf]
        %v226 = vld [vmem:[%s206 + $0x40] sm:$0xf]
        %v227 = vld [vmem:[%s206 + $0x48] sm:$0xf]
        %v228 = vld [vmem:[%s206 + $0x4c] sm:$0xf]
        %v229 = vld [vmem:[%s206 + $0x54] sm:$0xf]
        %v230 = vld [vmem:[%s206 + $0x58] sm:$0xf]
        %v231 = vld [vmem:[%s206 + $0x60] sm:$0xf]
        %v232 = vld [vmem:[%s206 + $0x64] sm:$0xf]
        %v233 = vld [vmem:[%s206 + $0x6c] sm:$0xf]
        %v234 = vld [vmem:[%s206 + $0x70] sm:$0xf]
        %v235 = vld [vmem:[%s206 + $0x78] sm:$0xf]
        %v236 = vld [vmem:[%s206 + $0x7c] sm:$0xf]
        %v237 = vld [vmem:[%s206 + $0x84] sm:$0xf]
        %v238 = vld [vmem:[%s206 + $0x88] sm:$0xf]
        %v239 = vld [vmem:[%s206 + $0x90] sm:$0xf]
        %v240 = vld [vmem:[%s206 + $0x94] sm:$0xf]
        %v241 = vld [vmem:[%s206 + $0x9c] sm:$0xf]
        %v242 = vld [vmem:[%s206 + $0xa0] sm:$0xf]
        %v243 = vld [vmem:[%s206 + $0xa8] sm:$0xf]
        %v244 = vld [vmem:[%s206 + $0xac] sm:$0xf]
        %v245 = vld [vmem:[%s206 + $0xb4] sm:$0xf]
        %v246 = vld [vmem:[%s206 + $0xb8] sm:$0xf]
        %v247 = vld [vmem:[%s210] sm:$0x3]
        %v280 = vunpack.c.l.b16 %v215
        %v281 = vunpack.c.l.b16 %v216
        %v282 = vunpack.c.l.b16 %v217
        %v283 = vunpack.c.l.b16 %v218
        %v284 = vunpack.c.l.b16 %v219
        %v285 = vunpack.c.l.b16 %v220
        %v286 = vunpack.c.l.b16 %v221
        %v287 = vunpack.c.l.b16 %v222
        %v288 = vunpack.c.l.b16 %v223
        %v289 = vunpack.c.l.b16 %v224
        %v290 = vunpack.c.l.b16 %v225
        %v291 = vunpack.c.l.b16 %v226
        %v292 = vunpack.c.l.b16 %v227
        %v293 = vunpack.c.l.b16 %v228
        %v294 = vunpack.c.l.b16 %v229
        %v295 = vunpack.c.l.b16 %v230
        %v296 = vunpack.c.l.b16 %v231
        %v297 = vunpack.c.l.b16 %v232
        %v298 = vunpack.c.l.b16 %v233
        %v299 = vunpack.c.l.b16 %v234
        %v300 = vunpack.c.l.b16 %v235
        %v301 = vunpack.c.l.b16 %v236
        %v302 = vunpack.c.l.b16 %v237
        %v303 = vunpack.c.l.b16 %v238
        %v304 = vunpack.c.l.b16 %v239
        %v305 = vunpack.c.l.b16 %v240
        %v306 = vunpack.c.l.b16 %v241
        %v307 = vunpack.c.l.b16 %v242
        %v308 = vunpack.c.l.b16 %v243
        %v309 = vunpack.c.l.b16 %v244
        %v310 = vunpack.c.l.b16 %v245
        %v311 = vunpack.c.l.b16 %v246
        %v312 = vpack.c.b16 %v281, %v280
        %v313 = vpack.c.b16 %v283, %v282
        %v314 = vpack.c.b16 %v285, %v284
        %v315 = vpack.c.b16 %v287, %v286
        %v316 = vpack.c.b16 %v289, %v288
        %v317 = vpack.c.b16 %v291, %v290
        %v318 = vpack.c.b16 %v293, %v292
        %v319 = vpack.c.b16 %v295, %v294
        %v320 = vpack.c.b16 %v297, %v296
        %v321 = vpack.c.b16 %v299, %v298
        %v322 = vpack.c.b16 %v301, %v300
        %v323 = vpack.c.b16 %v303, %v302
        %v324 = vpack.c.b16 %v305, %v304
        %v325 = vpack.c.b16 %v307, %v306
        %v326 = vpack.c.b16 %v309, %v308
        %v327 = vpack.c.b16 %v311, %v310
        %vm328 = vcmask 31744
        %v330 = vsel %vm328, %v312, 0
        %v333 = vsel %vm328, %v313, 0
        %v336 = vsel %vm328, %v314, 0
        %v339 = vsel %vm328, %v315, 0
        %v342 = vsel %vm328, %v316, 0
        %v345 = vsel %vm328, %v317, 0
        %v348 = vsel %vm328, %v318, 0
        %v351 = vsel %vm328, %v319, 0
        %v354 = vsel %vm328, %v320, 0
        %v357 = vsel %vm328, %v321, 0
        %v360 = vsel %vm328, %v322, 0
        %v363 = vsel %vm328, %v323, 0
        %v366 = vsel %vm328, %v324, 0
        %v369 = vsel %vm328, %v325, 0
        %v372 = vsel %vm328, %v326, 0
        %v375 = vsel %vm328, %v327, 0
        %vm377 = vcmask 1041408
        %v379 = vsel %vm377, %v247, 0
        %381 = vmatprep.subr.bf16.mxu0 0
        %382 = vmatpush1.bf16.msra.mxu0 0
        %383 = vmatprep.subr.bf16.mxu0 0
        %384 = vmatpush1.bf16.msra.mxu0 0
        %385 = vmatprep.subr.bf16.mxu0 0
        %386 = vmatpush1.bf16.msra.mxu0 0
        %387 = vmatprep.subr.bf16.mxu0 0
        %388 = vmatpush1.bf16.msra.mxu0 0
        %389 = vmatprep.subr.bf16.mxu0 0
        %390 = vmatpush1.bf16.msra.mxu0 0
        %391 = vmatprep.subr.bf16.mxu0 0
        %392 = vmatpush1.bf16.msra.mxu0 0
        %393 = vmatprep.subr.bf16.mxu0 0
        %394 = vmatpush1.bf16.msra.mxu0 0
        %395 = vmatprep.subr.bf16.mxu0 0
        %396 = vmatpush1.bf16.msra.mxu0 %v379
        %397 = vmatprep.subr.bf16.mxu0 0
        %398 = vmatpush2.bf16.msra.mxu0 0
        %399 = vmatprep.subr.bf16.mxu0 0
        %400 = vmatpush2.bf16.msra.mxu0 0
        %401 = vmatprep.subr.bf16.mxu0 0
        %402 = vmatpush2.bf16.msra.mxu0 0
        %403 = vmatprep.subr.bf16.mxu0 0
        %404 = vmatpush2.bf16.msra.mxu0 0
        %405 = vmatprep.subr.bf16.mxu0 0
        %406 = vmatpush2.bf16.msra.mxu0 0
        %407 = vmatprep.subr.bf16.mxu0 0
        %408 = vmatpush2.bf16.msra.mxu0 0
        %409 = vmatprep.subr.bf16.mxu0 0
        %410 = vmatpush2.bf16.msra.mxu0 0
        %411 = vmatprep.subr.bf16.mxu0 0
        %412 = vmatpush2.bf16.msra.mxu0 0
        %413 = vmatprep.mubr.bf16.mxu0 0
        %414 = vmatmul.mubr.bf16.gmra.mxu0 %v330
        %v415 = vpop.f32.mrf.mxu0
        %v416 = vadd.f32 0.0, %v415
        %v417 = vpop.f32.mrf.mxu0
        %v418 = vpop.f32.mrf.mxu0
        %v419 = vadd.f32 0.0, %v418
        %v420 = vpop.f32.mrf.mxu0
        %421 = vmatprep.mubr.bf16.mxu0 0
        %422 = vmatmul.mubr.bf16.gmra.mxu0 %v333
        %v423 = vpop.f32.mrf.mxu0
        %v424 = vadd.f32 0.0, %v423
        %v425 = vpop.f32.mrf.mxu0
        %v426 = vpop.f32.mrf.mxu0
        %v427 = vadd.f32 0.0, %v426
        %v428 = vpop.f32.mrf.mxu0
        %429 = vmatprep.mubr.bf16.mxu0 0
        %430 = vmatmul.mubr.bf16.gmra.mxu0 %v336
        %v431 = vpop.f32.mrf.mxu0
        %v432 = vadd.f32 0.0, %v431
        %v433 = vpop.f32.mrf.mxu0
        %v434 = vpop.f32.mrf.mxu0
        %v435 = vadd.f32 0.0, %v434
        %v436 = vpop.f32.mrf.mxu0
        %437 = vmatprep.mubr.bf16.mxu0 0
        %438 = vmatmul.mubr.bf16.gmra.mxu0 %v339
        %v439 = vpop.f32.mrf.mxu0
        %v440 = vadd.f32 0.0, %v439
        %v441 = vpop.f32.mrf.mxu0
        %v442 = vpop.f32.mrf.mxu0
        %v443 = vadd.f32 0.0, %v442
        %v444 = vpop.f32.mrf.mxu0
        %445 = vmatprep.mubr.bf16.mxu0 0
        %446 = vmatmul.mubr.bf16.gmra.mxu0 %v342
        %v447 = vpop.f32.mrf.mxu0
        %v448 = vadd.f32 0.0, %v447
        %v449 = vpop.f32.mrf.mxu0
        %v450 = vpop.f32.mrf.mxu0
        %v451 = vadd.f32 0.0, %v450
        %v452 = vpop.f32.mrf.mxu0
        %453 = vmatprep.mubr.bf16.mxu0 0
        %454 = vmatmul.mubr.bf16.gmra.mxu0 %v345
        %v455 = vpop.f32.mrf.mxu0
        %v456 = vadd.f32 0.0, %v455
        %v457 = vpop.f32.mrf.mxu0
        %v458 = vpop.f32.mrf.mxu0
        %v459 = vadd.f32 0.0, %v458
        %v460 = vpop.f32.mrf.mxu0
        %461 = vmatprep.mubr.bf16.mxu0 0
        %462 = vmatmul.mubr.bf16.gmra.mxu0 %v348
        %v463 = vpop.f32.mrf.mxu0
        %v464 = vadd.f32 0.0, %v463
        %v465 = vpop.f32.mrf.mxu0
        %v466 = vpop.f32.mrf.mxu0
        %v467 = vadd.f32 0.0, %v466
        %v468 = vpop.f32.mrf.mxu0
        %469 = vmatprep.mubr.bf16.mxu0 0
        %470 = vmatmul.mubr.bf16.gmra.mxu0 %v351
        %v471 = vpop.f32.mrf.mxu0
        %v472 = vadd.f32 0.0, %v471
        %v473 = vpop.f32.mrf.mxu0
        %v474 = vpop.f32.mrf.mxu0
        %v475 = vadd.f32 0.0, %v474
        %v476 = vpop.f32.mrf.mxu0
        %477 = vmatprep.mubr.bf16.mxu0 0
        %478 = vmatmul.mubr.bf16.gmra.mxu0 %v354
        %v479 = vpop.f32.mrf.mxu0
        %v480 = vadd.f32 0.0, %v479
        %v481 = vpop.f32.mrf.mxu0
        %v482 = vpop.f32.mrf.mxu0
        %v483 = vadd.f32 0.0, %v482
        %v484 = vpop.f32.mrf.mxu0
        %485 = vmatprep.mubr.bf16.mxu0 0
        %486 = vmatmul.mubr.bf16.gmra.mxu0 %v357
        %v487 = vpop.f32.mrf.mxu0
        %v488 = vadd.f32 0.0, %v487
        %v489 = vpop.f32.mrf.mxu0
        %v490 = vpop.f32.mrf.mxu0
        %v491 = vadd.f32 0.0, %v490
        %v492 = vpop.f32.mrf.mxu0
        %493 = vmatprep.mubr.bf16.mxu0 0
        %494 = vmatmul.mubr.bf16.gmra.mxu0 %v360
        %v495 = vpop.f32.mrf.mxu0
        %v496 = vadd.f32 0.0, %v495
        %v497 = vpop.f32.mrf.mxu0
        %v498 = vpop.f32.mrf.mxu0
        %v499 = vadd.f32 0.0, %v498
        %v500 = vpop.f32.mrf.mxu0
        %501 = vmatprep.mubr.bf16.mxu0 0
        %502 = vmatmul.mubr.bf16.gmra.mxu0 %v363
        %v503 = vpop.f32.mrf.mxu0
        %v504 = vadd.f32 0.0, %v503
        %v505 = vpop.f32.mrf.mxu0
        %v506 = vpop.f32.mrf.mxu0
        %v507 = vadd.f32 0.0, %v506
        %v508 = vpop.f32.mrf.mxu0
        %509 = vmatprep.mubr.bf16.mxu0 0
        %510 = vmatmul.mubr.bf16.gmra.mxu0 %v366
        %v511 = vpop.f32.mrf.mxu0
        %v512 = vadd.f32 0.0, %v511
        %v513 = vpop.f32.mrf.mxu0
        %v514 = vpop.f32.mrf.mxu0
        %v515 = vadd.f32 0.0, %v514
        %v516 = vpop.f32.mrf.mxu0
        %517 = vmatprep.mubr.bf16.mxu0 0
        %518 = vmatmul.mubr.bf16.gmra.mxu0 %v369
        %v519 = vpop.f32.mrf.mxu0
        %v520 = vadd.f32 0.0, %v519
        %v521 = vpop.f32.mrf.mxu0
        %v522 = vpop.f32.mrf.mxu0
        %v523 = vadd.f32 0.0, %v522
        %v524 = vpop.f32.mrf.mxu0
        %525 = vmatprep.mubr.bf16.mxu0 0
        %526 = vmatmul.mubr.bf16.gmra.mxu0 %v372
        %v527 = vpop.f32.mrf.mxu0
        %v528 = vadd.f32 0.0, %v527
        %v529 = vpop.f32.mrf.mxu0
        %v530 = vpop.f32.mrf.mxu0
        %v531 = vadd.f32 0.0, %v530
        %v532 = vpop.f32.mrf.mxu0
        %533 = vmatprep.mubr.bf16.mxu0 0
        %534 = vmatmul.mubr.bf16.gmra.mxu0 %v375
        %v535 = vpop.f32.mrf.mxu0
        %v536 = vadd.f32 0.0, %v535
        %v537 = vpop.f32.mrf.mxu0
        %v538 = vpop.f32.mrf.mxu0
        %v539 = vadd.f32 0.0, %v538
        %v540 = vpop.f32.mrf.mxu0
        %541 = vdwg.mxu0
        %542 = vst [vmem:[#allocation2] sm:$0xff] %v416
        %543 = vst [vmem:[#allocation2 + $0x8] sm:$0xff] %v419
        %544 = vst [vmem:[#allocation2 + $0x10] sm:$0xff] %v424
        %545 = vst [vmem:[#allocation2 + $0x18] sm:$0xff] %v427
        %546 = vst [vmem:[#allocation2 + $0x20] sm:$0xff] %v432
        %547 = vst [vmem:[#allocation2 + $0x28] sm:$0xff] %v435
        %548 = vst [vmem:[#allocation2 + $0x30] sm:$0xff] %v440
        %549 = vst [vmem:[#allocation2 + $0x38] sm:$0xff] %v443
        %550 = vst [vmem:[#allocation2 + $0x40] sm:$0xff] %v448
        %551 = vst [vmem:[#allocation2 + $0x48] sm:$0xff] %v451
        %552 = vst [vmem:[#allocation2 + $0x50] sm:$0xff] %v456
        %553 = vst [vmem:[#allocation2 + $0x58] sm:$0xff] %v459
        %554 = vst [vmem:[#allocation2 + $0x60] sm:$0xff] %v464
        %555 = vst [vmem:[#allocation2 + $0x68] sm:$0xff] %v467
        %556 = vst [vmem:[#allocation2 + $0x70] sm:$0xff] %v472
        %557 = vst [vmem:[#allocation2 + $0x78] sm:$0xff] %v475
        %558 = vst [vmem:[#allocation2 + $0x80] sm:$0xff] %v480
        %559 = vst [vmem:[#allocation2 + $0x88] sm:$0xff] %v483
        %560 = vst [vmem:[#allocation2 + $0x90] sm:$0xff] %v488
        %561 = vst [vmem:[#allocation2 + $0x98] sm:$0xff] %v491
        %562 = vst [vmem:[#allocation2 + $0xa0] sm:$0xff] %v496
        %563 = vst [vmem:[#allocation2 + $0xa8] sm:$0xff] %v499
        %564 = vst [vmem:[#allocation2 + $0xb0] sm:$0xff] %v504
        %565 = vst [vmem:[#allocation2 + $0xb8] sm:$0xff] %v507
        %566 = vst [vmem:[#allocation2 + $0xc0] sm:$0xff] %v512
        %567 = vst [vmem:[#allocation2 + $0xc8] sm:$0xff] %v515
        %568 = vst [vmem:[#allocation2 + $0xd0] sm:$0xff] %v520
        %569 = vst [vmem:[#allocation2 + $0xd8] sm:$0xff] %v523
        %570 = vst [vmem:[#allocation2 + $0xe0] sm:$0xff] %v528
        %571 = vst [vmem:[#allocation2 + $0xe8] sm:$0xff] %v531
        %572 = vst [vmem:[#allocation2 + $0xf0] sm:$0xff] %v536
        %573 = vst [vmem:[#allocation2 + $0xf8] sm:$0xff] %v539
        %v574 = vld [vmem:[%s206] sm:$0xf]
        %v575 = vld [vmem:[%s206 + $0x4] sm:$0xf]
        %v576 = vld [vmem:[%s206 + $0x8] sm:$0x1]
        %v577 = vld [vmem:[%s206 + $0xc] sm:$0xf]
        %v578 = vld [vmem:[%s206 + $0x10] sm:$0xf]
        %v579 = vld [vmem:[%s206 + $0x14] sm:$0x1]
        %v580 = vld [vmem:[%s206 + $0x18] sm:$0xf]
        %v581 = vld [vmem:[%s206 + $0x1c] sm:$0xf]
        %v582 = vld [vmem:[%s206 + $0x20] sm:$0x1]
        %v583 = vld [vmem:[%s206 + $0x24] sm:$0xf]
        %v584 = vld [vmem:[%s206 + $0x28] sm:$0xf]
        %v585 = vld [vmem:[%s206 + $0x2c] sm:$0x1]
        %v586 = vld [vmem:[%s206 + $0x30] sm:$0xf]
        %v587 = vld [vmem:[%s206 + $0x34] sm:$0xf]
        %v588 = vld [vmem:[%s206 + $0x38] sm:$0x1]
        %v589 = vld [vmem:[%s206 + $0x3c] sm:$0xf]
        %v590 = vld [vmem:[%s206 + $0x40] sm:$0xf]
        %v591 = vld [vmem:[%s206 + $0x44] sm:$0x1]
        %v592 = vld [vmem:[%s206 + $0x48] sm:$0xf]
        %v593 = vld [vmem:[%s206 + $0x4c] sm:$0xf]
        %v594 = vld [vmem:[%s206 + $0x50] sm:$0x1]
        %v595 = vld [vmem:[%s206 + $0x54] sm:$0xf]
        %v596 = vld [vmem:[%s206 + $0x58] sm:$0xf]
        %v597 = vld [vmem:[%s206 + $0x5c] sm:$0x1]
        %v598 = vld [vmem:[%s206 + $0x60] sm:$0xf]
        %v599 = vld [vmem:[%s206 + $0x64] sm:$0xf]
        %v600 = vld [vmem:[%s206 + $0x68] sm:$0x1]
        %v601 = vld [vmem:[%s206 + $0x6c] sm:$0xf]
        %v602 = vld [vmem:[%s206 + $0x70] sm:$0xf]
        %v603 = vld [vmem:[%s206 + $0x74] sm:$0x1]
        %v604 = vld [vmem:[%s206 + $0x78] sm:$0xf]
        %v605 = vld [vmem:[%s206 + $0x7c] sm:$0xf]
        %v606 = vld [vmem:[%s206 + $0x80] sm:$0x1]
        %v607 = vld [vmem:[%s206 + $0x84] sm:$0xf]
        %v608 = vld [vmem:[%s206 + $0x88] sm:$0xf]
        %v609 = vld [vmem:[%s206 + $0x8c] sm:$0x1]
        %v610 = vld [vmem:[%s206 + $0x90] sm:$0xf]
        %v611 = vld [vmem:[%s206 + $0x94] sm:$0xf]
        %v612 = vld [vmem:[%s206 + $0x98] sm:$0x1]
        %v613 = vld [vmem:[%s206 + $0x9c] sm:$0xf]
        %v614 = vld [vmem:[%s206 + $0xa0] sm:$0xf]
        %v615 = vld [vmem:[%s206 + $0xa4] sm:$0x1]
        %v616 = vld [vmem:[%s206 + $0xa8] sm:$0xf]
        %v617 = vld [vmem:[%s206 + $0xac] sm:$0xf]
        %v618 = vld [vmem:[%s206 + $0xb0] sm:$0x1]
        %v619 = vld [vmem:[%s206 + $0xb4] sm:$0xf]
        %v620 = vld [vmem:[%s206 + $0xb8] sm:$0xf]
        %v621 = vld [vmem:[%s206 + $0xbc] sm:$0x1]
        %vm622 = vsmask.f32 3328
        %vm623 = vsmask.f32 7440
        %vm624 = vmor %vm622, %vm623
        %v626 = vshrl.u32 %v574, 16
        %v628 = vrot.slane %v626, 4
        %v629 = vshll.u32 %v574, 16
        %v631 = vrot.slane %v629, 5
        %v632 = vor.u32 %v628, %v631
        %v633 = vrot.slane %v632, 4
        %v635 = vshll.u32 %v575, 16
        %v637 = vrot.slane %v635, 5
        %v638 = vsel %vm624, %v633, %v637
        %v639 = vshrl.u32 %v575, 16
        %v641 = vrot.slane %v639, 4
        %v642 = vor.u32 %v641, %v637
        %v643 = vrot.slane %v642, 4
        %v645 = vshll.u32 %v576, 16
        %v647 = vrot.slane %v645, 5
        %v648 = vsel %vm624, %v643, %v647
        %v650 = vshrl.u32 %v577, 16
        %v652 = vrot.slane %v650, 4
        %v653 = vshll.u32 %v577, 16
        %v655 = vrot.slane %v653, 5
        %v656 = vor.u32 %v652, %v655
        %v657 = vrot.slane %v656, 4
        %v659 = vshll.u32 %v578, 16
        %v661 = vrot.slane %v659, 5
        %v662 = vsel %vm624, %v657, %v661
        %v663 = vshrl.u32 %v578, 16
        %v665 = vrot.slane %v663, 4
        %v666 = vor.u32 %v665, %v661
        %v667 = vrot.slane %v666, 4
        %v669 = vshll.u32 %v579, 16
        %v671 = vrot.slane %v669, 5
        %v672 = vsel %vm624, %v667, %v671
        %v674 = vshrl.u32 %v580, 16
        %v676 = vrot.slane %v674, 4
        %v677 = vshll.u32 %v580, 16
        %v679 = vrot.slane %v677, 5
        %v680 = vor.u32 %v676, %v679
        %v681 = vrot.slane %v680, 4
        %v683 = vshll.u32 %v581, 16
        %v685 = vrot.slane %v683, 5
        %v686 = vsel %vm624, %v681, %v685
        %v687 = vshrl.u32 %v581, 16
        %v689 = vrot.slane %v687, 4
        %v690 = vor.u32 %v689, %v685
        %v691 = vrot.slane %v690, 4
        %v693 = vshll.u32 %v582, 16
        %v695 = vrot.slane %v693, 5
        %v696 = vsel %vm624, %v691, %v695
        %v698 = vshrl.u32 %v583, 16
        %v700 = vrot.slane %v698, 4
        %v701 = vshll.u32 %v583, 16
        %v703 = vrot.slane %v701, 5
        %v704 = vor.u32 %v700, %v703
        %v705 = vrot.slane %v704, 4
        %v707 = vshll.u32 %v584, 16
        %v709 = vrot.slane %v707, 5
        %v710 = vsel %vm624, %v705, %v709
        %v711 = vshrl.u32 %v584, 16
        %v713 = vrot.slane %v711, 4
        %v714 = vor.u32 %v713, %v709
        %v715 = vrot.slane %v714, 4
        %v717 = vshll.u32 %v585, 16
        %v719 = vrot.slane %v717, 5
        %v720 = vsel %vm624, %v715, %v719
        %v722 = vshrl.u32 %v586, 16
        %v724 = vrot.slane %v722, 4
        %v725 = vshll.u32 %v586, 16
        %v727 = vrot.slane %v725, 5
        %v728 = vor.u32 %v724, %v727
        %v729 = vrot.slane %v728, 4
        %v731 = vshll.u32 %v587, 16
        %v733 = vrot.slane %v731, 5
        %v734 = vsel %vm624, %v729, %v733
        %v735 = vshrl.u32 %v587, 16
        %v737 = vrot.slane %v735, 4
        %v738 = vor.u32 %v737, %v733
        %v739 = vrot.slane %v738, 4
        %v741 = vshll.u32 %v588, 16
        %v743 = vrot.slane %v741, 5
        %v744 = vsel %vm624, %v739, %v743
        %v746 = vshrl.u32 %v589, 16
        %v748 = vrot.slane %v746, 4
        %v749 = vshll.u32 %v589, 16
        %v751 = vrot.slane %v749, 5
        %v752 = vor.u32 %v748, %v751
        %v753 = vrot.slane %v752, 4
        %v755 = vshll.u32 %v590, 16
        %v757 = vrot.slane %v755, 5
        %v758 = vsel %vm624, %v753, %v757
        %v759 = vshrl.u32 %v590, 16
        %v761 = vrot.slane %v759, 4
        %v762 = vor.u32 %v761, %v757
        %v763 = vrot.slane %v762, 4
        %v765 = vshll.u32 %v591, 16
        %v767 = vrot.slane %v765, 5
        %v768 = vsel %vm624, %v763, %v767
        %v770 = vshrl.u32 %v592, 16
        %v772 = vrot.slane %v770, 4
        %v773 = vshll.u32 %v592, 16
        %v775 = vrot.slane %v773, 5
        %v776 = vor.u32 %v772, %v775
        %v777 = vrot.slane %v776, 4
        %v779 = vshll.u32 %v593, 16
        %v781 = vrot.slane %v779, 5
        %v782 = vsel %vm624, %v777, %v781
        %v783 = vshrl.u32 %v593, 16
        %v785 = vrot.slane %v783, 4
        %v786 = vor.u32 %v785, %v781
        %v787 = vrot.slane %v786, 4
        %v789 = vshll.u32 %v594, 16
        %v791 = vrot.slane %v789, 5
        %v792 = vsel %vm624, %v787, %v791
        %v794 = vshrl.u32 %v595, 16
        %v796 = vrot.slane %v794, 4
        %v797 = vshll.u32 %v595, 16
        %v799 = vrot.slane %v797, 5
        %v800 = vor.u32 %v796, %v799
        %v801 = vrot.slane %v800, 4
        %v803 = vshll.u32 %v596, 16
        %v805 = vrot.slane %v803, 5
        %v806 = vsel %vm624, %v801, %v805
        %v807 = vshrl.u32 %v596, 16
        %v809 = vrot.slane %v807, 4
        %v810 = vor.u32 %v809, %v805
        %v811 = vrot.slane %v810, 4
        %v813 = vshll.u32 %v597, 16
        %v815 = vrot.slane %v813, 5
        %v816 = vsel %vm624, %v811, %v815
        %v818 = vshrl.u32 %v598, 16
        %v820 = vrot.slane %v818, 4
        %v821 = vshll.u32 %v598, 16
        %v823 = vrot.slane %v821, 5
        %v824 = vor.u32 %v820, %v823
        %v825 = vrot.slane %v824, 4
        %v827 = vshll.u32 %v599, 16
        %v829 = vrot.slane %v827, 5
        %v830 = vsel %vm624, %v825, %v829
        %v831 = vshrl.u32 %v599, 16
        %v833 = vrot.slane %v831, 4
        %v834 = vor.u32 %v833, %v829
        %v835 = vrot.slane %v834, 4
        %v837 = vshll.u32 %v600, 16
        %v839 = vrot.slane %v837, 5
        %v840 = vsel %vm624, %v835, %v839
        %v842 = vshrl.u32 %v601, 16
        %v844 = vrot.slane %v842, 4
        %v845 = vshll.u32 %v601, 16
        %v847 = vrot.slane %v845, 5
        %v848 = vor.u32 %v844, %v847
        %v849 = vrot.slane %v848, 4
        %v851 = vshll.u32 %v602, 16
        %v853 = vrot.slane %v851, 5
        %v854 = vsel %vm624, %v849, %v853
        %v855 = vshrl.u32 %v602, 16
        %v857 = vrot.slane %v855, 4
        %v858 = vor.u32 %v857, %v853
        %v859 = vrot.slane %v858, 4
        %v861 = vshll.u32 %v603, 16
        %v863 = vrot.slane %v861, 5
        %v864 = vsel %vm624, %v859, %v863
        %v866 = vshrl.u32 %v604, 16
        %v868 = vrot.slane %v866, 4
        %v869 = vshll.u32 %v604, 16
        %v871 = vrot.slane %v869, 5
        %v872 = vor.u32 %v868, %v871
        %v873 = vrot.slane %v872, 4
        %v875 = vshll.u32 %v605, 16
        %v877 = vrot.slane %v875, 5
        %v878 = vsel %vm624, %v873, %v877
        %v879 = vshrl.u32 %v605, 16
        %v881 = vrot.slane %v879, 4
        %v882 = vor.u32 %v881, %v877
        %v883 = vrot.slane %v882, 4
        %v885 = vshll.u32 %v606, 16
        %v887 = vrot.slane %v885, 5
        %v888 = vsel %vm624, %v883, %v887
        %v890 = vshrl.u32 %v607, 16
        %v892 = vrot.slane %v890, 4
        %v893 = vshll.u32 %v607, 16
        %v895 = vrot.slane %v893, 5
        %v896 = vor.u32 %v892, %v895
        %v897 = vrot.slane %v896, 4
        %v899 = vshll.u32 %v608, 16
        %v901 = vrot.slane %v899, 5
        %v902 = vsel %vm624, %v897, %v901
        %v903 = vshrl.u32 %v608, 16
        %v905 = vrot.slane %v903, 4
        %v906 = vor.u32 %v905, %v901
        %v907 = vrot.slane %v906, 4
        %v909 = vshll.u32 %v609, 16
        %v911 = vrot.slane %v909, 5
        %v912 = vsel %vm624, %v907, %v911
        %v914 = vshrl.u32 %v610, 16
        %v916 = vrot.slane %v914, 4
        %v917 = vshll.u32 %v610, 16
        %v919 = vrot.slane %v917, 5
        %v920 = vor.u32 %v916, %v919
        %v921 = vrot.slane %v920, 4
        %v923 = vshll.u32 %v611, 16
        %v925 = vrot.slane %v923, 5
        %v926 = vsel %vm624, %v921, %v925
        %v927 = vshrl.u32 %v611, 16
        %v929 = vrot.slane %v927, 4
        %v930 = vor.u32 %v929, %v925
        %v931 = vrot.slane %v930, 4
        %v933 = vshll.u32 %v612, 16
        %v935 = vrot.slane %v933, 5
        %v936 = vsel %vm624, %v931, %v935
        %v938 = vshrl.u32 %v613, 16
        %v940 = vrot.slane %v938, 4
        %v941 = vshll.u32 %v613, 16
        %v943 = vrot.slane %v941, 5
        %v944 = vor.u32 %v940, %v943
        %v945 = vrot.slane %v944, 4
        %v947 = vshll.u32 %v614, 16
        %v949 = vrot.slane %v947, 5
        %v950 = vsel %vm624, %v945, %v949
        %v951 = vshrl.u32 %v614, 16
        %v953 = vrot.slane %v951, 4
        %v954 = vor.u32 %v953, %v949
        %v955 = vrot.slane %v954, 4
        %v957 = vshll.u32 %v615, 16
        %v959 = vrot.slane %v957, 5
        %v960 = vsel %vm624, %v955, %v959
        %v962 = vshrl.u32 %v616, 16
        %v964 = vrot.slane %v962, 4
        %v965 = vshll.u32 %v616, 16
        %v967 = vrot.slane %v965, 5
        %v968 = vor.u32 %v964, %v967
        %v969 = vrot.slane %v968, 4
        %v971 = vshll.u32 %v617, 16
        %v973 = vrot.slane %v971, 5
        %v974 = vsel %vm624, %v969, %v973
        %v975 = vshrl.u32 %v617, 16
        %v977 = vrot.slane %v975, 4
        %v978 = vor.u32 %v977, %v973
        %v979 = vrot.slane %v978, 4
        %v981 = vshll.u32 %v618, 16
        %v983 = vrot.slane %v981, 5
        %v984 = vsel %vm624, %v979, %v983
        %v986 = vshrl.u32 %v619, 16
        %v988 = vrot.slane %v986, 4
        %v989 = vshll.u32 %v619, 16
        %v991 = vrot.slane %v989, 5
        %v992 = vor.u32 %v988, %v991
        %v993 = vrot.slane %v992, 4
        %v995 = vshll.u32 %v620, 16
        %v997 = vrot.slane %v995, 5
        %v998 = vsel %vm624, %v993, %v997
        %v999 = vshrl.u32 %v620, 16
        %v1001 = vrot.slane %v999, 4
        %v1002 = vor.u32 %v1001, %v997
        %v1003 = vrot.slane %v1002, 4
        %v1005 = vshll.u32 %v621, 16
        %v1007 = vrot.slane %v1005, 5
        %v1008 = vsel %vm624, %v1003, %v1007
        %s1009 = scalar_lea.vmem %s210, 2
        %v1010 = vld [vmem:[%s1009] sm:$0x3]
        %v1011 = vunpack.c.l.b16 %v638
        %v1012 = vunpack.c.l.b16 %v648
        %v1013 = vunpack.c.l.b16 %v662
        %v1014 = vunpack.c.l.b16 %v672
        %v1015 = vunpack.c.l.b16 %v686
        %v1016 = vunpack.c.l.b16 %v696
        %v1017 = vunpack.c.l.b16 %v710
        %v1018 = vunpack.c.l.b16 %v720
        %v1019 = vunpack.c.l.b16 %v734
        %v1020 = vunpack.c.l.b16 %v744
        %v1021 = vunpack.c.l.b16 %v758
        %v1022 = vunpack.c.l.b16 %v768
        %v1023 = vunpack.c.l.b16 %v782
        %v1024 = vunpack.c.l.b16 %v792
        %v1025 = vunpack.c.l.b16 %v806
        %v1026 = vunpack.c.l.b16 %v816
        %v1027 = vunpack.c.l.b16 %v830
        %v1028 = vunpack.c.l.b16 %v840
        %v1029 = vunpack.c.l.b16 %v854
        %v1030 = vunpack.c.l.b16 %v864
        %v1031 = vunpack.c.l.b16 %v878
        %v1032 = vunpack.c.l.b16 %v888
        %v1033 = vunpack.c.l.b16 %v902
        %v1034 = vunpack.c.l.b16 %v912
        %v1035 = vunpack.c.l.b16 %v926
        %v1036 = vunpack.c.l.b16 %v936
        %v1037 = vunpack.c.l.b16 %v950
        %v1038 = vunpack.c.l.b16 %v960
        %v1039 = vunpack.c.l.b16 %v974
        %v1040 = vunpack.c.l.b16 %v984
        %v1041 = vunpack.c.l.b16 %v998
        %v1042 = vunpack.c.l.b16 %v1008
        %v1043 = vpack.c.b16 %v1012, %v1011
        %v1044 = vpack.c.b16 %v1014, %v1013
        %v1045 = vpack.c.b16 %v1016, %v1015
        %v1046 = vpack.c.b16 %v1018, %v1017
        %v1047 = vpack.c.b16 %v1020, %v1019
        %v1048 = vpack.c.b16 %v1022, %v1021
        %v1049 = vpack.c.b16 %v1024, %v1023
        %v1050 = vpack.c.b16 %v1026, %v1025
        %v1051 = vpack.c.b16 %v1028, %v1027
        %v1052 = vpack.c.b16 %v1030, %v1029
        %v1053 = vpack.c.b16 %v1032, %v1031
        %v1054 = vpack.c.b16 %v1034, %v1033
        %v1055 = vpack.c.b16 %v1036, %v1035
        %v1056 = vpack.c.b16 %v1038, %v1037
        %v1057 = vpack.c.b16 %v1040, %v1039
        %v1058 = vpack.c.b16 %v1042, %v1041
        %v1060 = vsel %vm328, %v1043, 0
        %v1063 = vsel %vm328, %v1044, 0
        %v1066 = vsel %vm328, %v1045, 0
        %v1069 = vsel %vm328, %v1046, 0
        %v1072 = vsel %vm328, %v1047, 0
        %v1075 = vsel %vm328, %v1048, 0
        %v1078 = vsel %vm328, %v1049, 0
        %v1081 = vsel %vm328, %v1050, 0
        %v1084 = vsel %vm328, %v1051, 0
        %v1087 = vsel %vm328, %v1052, 0
        %v1090 = vsel %vm328, %v1053, 0
        %v1093 = vsel %vm328, %v1054, 0
        %v1096 = vsel %vm328, %v1055, 0
        %v1099 = vsel %vm328, %v1056, 0
        %v1102 = vsel %vm328, %v1057, 0
        %v1105 = vsel %vm328, %v1058, 0
        %v1108 = vsel %vm377, %v1010, 0
        %1110 = vmatprep.subr.bf16.mxu0 0
        %1111 = vmatpush1.bf16.msra.mxu0 0
        %1112 = vmatprep.subr.bf16.mxu0 0
        %1113 = vmatpush1.bf16.msra.mxu0 0
        %1114 = vmatprep.subr.bf16.mxu0 0
        %1115 = vmatpush1.bf16.msra.mxu0 0
        %1116 = vmatprep.subr.bf16.mxu0 0
        %1117 = vmatpush1.bf16.msra.mxu0 0
        %1118 = vmatprep.subr.bf16.mxu0 0
        %1119 = vmatpush1.bf16.msra.mxu0 0
        %1120 = vmatprep.subr.bf16.mxu0 0
        %1121 = vmatpush1.bf16.msra.mxu0 0
        %1122 = vmatprep.subr.bf16.mxu0 0
        %1123 = vmatpush1.bf16.msra.mxu0 0
        %1124 = vmatprep.subr.bf16.mxu0 0
        %1125 = vmatpush1.bf16.msra.mxu0 %v1108
        %1126 = vmatprep.subr.bf16.mxu0 0
        %1127 = vmatpush2.bf16.msra.mxu0 0
        %1128 = vmatprep.subr.bf16.mxu0 0
        %1129 = vmatpush2.bf16.msra.mxu0 0
        %1130 = vmatprep.subr.bf16.mxu0 0
        %1131 = vmatpush2.bf16.msra.mxu0 0
        %1132 = vmatprep.subr.bf16.mxu0 0
        %1133 = vmatpush2.bf16.msra.mxu0 0
        %1134 = vmatprep.subr.bf16.mxu0 0
        %1135 = vmatpush2.bf16.msra.mxu0 0
        %1136 = vmatprep.subr.bf16.mxu0 0
        %1137 = vmatpush2.bf16.msra.mxu0 0
        %1138 = vmatprep.subr.bf16.mxu0 0
        %1139 = vmatpush2.bf16.msra.mxu0 0
        %1140 = vmatprep.subr.bf16.mxu0 0
        %1141 = vmatpush2.bf16.msra.mxu0 0
        %1142 = vmatprep.mubr.bf16.mxu0 0
        %1143 = vmatmul.mubr.bf16.gmra.mxu0 %v1060
        %v1144 = vpop.f32.mrf.mxu0
        %v1145 = vadd.f32 0.0, %v1144
        %v1146 = vpop.f32.mrf.mxu0
        %v1147 = vpop.f32.mrf.mxu0
        %v1148 = vadd.f32 0.0, %v1147
        %v1149 = vpop.f32.mrf.mxu0
        %1150 = vmatprep.mubr.bf16.mxu0 0
        %1151 = vmatmul.mubr.bf16.gmra.mxu0 %v1063
        %v1152 = vpop.f32.mrf.mxu0
        %v1153 = vadd.f32 0.0, %v1152
        %v1154 = vpop.f32.mrf.mxu0
        %v1155 = vpop.f32.mrf.mxu0
        %v1156 = vadd.f32 0.0, %v1155
        %v1157 = vpop.f32.mrf.mxu0
        %1158 = vmatprep.mubr.bf16.mxu0 0
        %1159 = vmatmul.mubr.bf16.gmra.mxu0 %v1066
        %v1160 = vpop.f32.mrf.mxu0
        %v1161 = vadd.f32 0.0, %v1160
        %v1162 = vpop.f32.mrf.mxu0
        %v1163 = vpop.f32.mrf.mxu0
        %v1164 = vadd.f32 0.0, %v1163
        %v1165 = vpop.f32.mrf.mxu0
        %1166 = vmatprep.mubr.bf16.mxu0 0
        %1167 = vmatmul.mubr.bf16.gmra.mxu0 %v1069
        %v1168 = vpop.f32.mrf.mxu0
        %v1169 = vadd.f32 0.0, %v1168
        %v1170 = vpop.f32.mrf.mxu0
        %v1171 = vpop.f32.mrf.mxu0
        %v1172 = vadd.f32 0.0, %v1171
        %v1173 = vpop.f32.mrf.mxu0
        %1174 = vmatprep.mubr.bf16.mxu0 0
        %1175 = vmatmul.mubr.bf16.gmra.mxu0 %v1072
        %v1176 = vpop.f32.mrf.mxu0
        %v1177 = vadd.f32 0.0, %v1176
        %v1178 = vpop.f32.mrf.mxu0
        %v1179 = vpop.f32.mrf.mxu0
        %v1180 = vadd.f32 0.0, %v1179
        %v1181 = vpop.f32.mrf.mxu0
        %1182 = vmatprep.mubr.bf16.mxu0 0
        %1183 = vmatmul.mubr.bf16.gmra.mxu0 %v1075
        %v1184 = vpop.f32.mrf.mxu0
        %v1185 = vadd.f32 0.0, %v1184
        %v1186 = vpop.f32.mrf.mxu0
        %v1187 = vpop.f32.mrf.mxu0
        %v1188 = vadd.f32 0.0, %v1187
        %v1189 = vpop.f32.mrf.mxu0
        %1190 = vmatprep.mubr.bf16.mxu0 0
        %1191 = vmatmul.mubr.bf16.gmra.mxu0 %v1078
        %v1192 = vpop.f32.mrf.mxu0
        %v1193 = vadd.f32 0.0, %v1192
        %v1194 = vpop.f32.mrf.mxu0
        %v1195 = vpop.f32.mrf.mxu0
        %v1196 = vadd.f32 0.0, %v1195
        %v1197 = vpop.f32.mrf.mxu0
        %1198 = vmatprep.mubr.bf16.mxu0 0
        %1199 = vmatmul.mubr.bf16.gmra.mxu0 %v1081
        %v1200 = vpop.f32.mrf.mxu0
        %v1201 = vadd.f32 0.0, %v1200
        %v1202 = vpop.f32.mrf.mxu0
        %v1203 = vpop.f32.mrf.mxu0
        %v1204 = vadd.f32 0.0, %v1203
        %v1205 = vpop.f32.mrf.mxu0
        %1206 = vmatprep.mubr.bf16.mxu0 0
        %1207 = vmatmul.mubr.bf16.gmra.mxu0 %v1084
        %v1208 = vpop.f32.mrf.mxu0
        %v1209 = vadd.f32 0.0, %v1208
        %v1210 = vpop.f32.mrf.mxu0
        %v1211 = vpop.f32.mrf.mxu0
        %v1212 = vadd.f32 0.0, %v1211
        %v1213 = vpop.f32.mrf.mxu0
        %1214 = vmatprep.mubr.bf16.mxu0 0
        %1215 = vmatmul.mubr.bf16.gmra.mxu0 %v1087
        %v1216 = vpop.f32.mrf.mxu0
        %v1217 = vadd.f32 0.0, %v1216
        %v1218 = vpop.f32.mrf.mxu0
        %v1219 = vpop.f32.mrf.mxu0
        %v1220 = vadd.f32 0.0, %v1219
        %v1221 = vpop.f32.mrf.mxu0
        %1222 = vmatprep.mubr.bf16.mxu0 0
        %1223 = vmatmul.mubr.bf16.gmra.mxu0 %v1090
        %v1224 = vpop.f32.mrf.mxu0
        %v1225 = vadd.f32 0.0, %v1224
        %v1226 = vpop.f32.mrf.mxu0
        %v1227 = vpop.f32.mrf.mxu0
        %v1228 = vadd.f32 0.0, %v1227
        %v1229 = vpop.f32.mrf.mxu0
        %1230 = vmatprep.mubr.bf16.mxu0 0
        %1231 = vmatmul.mubr.bf16.gmra.mxu0 %v1093
        %v1232 = vpop.f32.mrf.mxu0
        %v1233 = vadd.f32 0.0, %v1232
        %v1234 = vpop.f32.mrf.mxu0
        %v1235 = vpop.f32.mrf.mxu0
        %v1236 = vadd.f32 0.0, %v1235
        %v1237 = vpop.f32.mrf.mxu0
        %1238 = vmatprep.mubr.bf16.mxu0 0
        %1239 = vmatmul.mubr.bf16.gmra.mxu0 %v1096
        %v1240 = vpop.f32.mrf.mxu0
        %v1241 = vadd.f32 0.0, %v1240
        %v1242 = vpop.f32.mrf.mxu0
        %v1243 = vpop.f32.mrf.mxu0
        %v1244 = vadd.f32 0.0, %v1243
        %v1245 = vpop.f32.mrf.mxu0
        %1246 = vmatprep.mubr.bf16.mxu0 0
        %1247 = vmatmul.mubr.bf16.gmra.mxu0 %v1099
        %v1248 = vpop.f32.mrf.mxu0
        %v1249 = vadd.f32 0.0, %v1248
        %v1250 = vpop.f32.mrf.mxu0
        %v1251 = vpop.f32.mrf.mxu0
        %v1252 = vadd.f32 0.0, %v1251
        %v1253 = vpop.f32.mrf.mxu0
        %1254 = vmatprep.mubr.bf16.mxu0 0
        %1255 = vmatmul.mubr.bf16.gmra.mxu0 %v1102
        %v1256 = vpop.f32.mrf.mxu0
        %v1257 = vadd.f32 0.0, %v1256
        %v1258 = vpop.f32.mrf.mxu0
        %v1259 = vpop.f32.mrf.mxu0
        %v1260 = vadd.f32 0.0, %v1259
        %v1261 = vpop.f32.mrf.mxu0
        %1262 = vmatprep.mubr.bf16.mxu0 0
        %1263 = vmatmul.mubr.bf16.gmra.mxu0 %v1105
        %v1264 = vpop.f32.mrf.mxu0
        %v1265 = vadd.f32 0.0, %v1264
        %v1266 = vpop.f32.mrf.mxu0
        %v1267 = vpop.f32.mrf.mxu0
        %v1268 = vadd.f32 0.0, %v1267
        %v1269 = vpop.f32.mrf.mxu0
        %1270 = vdwg.mxu0
        %v1271 = vld [vmem:[#allocation2] sm:$0xff]
        %v1272 = vld [vmem:[#allocation2 + $0x8] sm:$0xff]
        %v1273 = vld [vmem:[#allocation2 + $0x10] sm:$0xff]
        %v1274 = vld [vmem:[#allocation2 + $0x18] sm:$0xff]
        %v1275 = vld [vmem:[#allocation2 + $0x20] sm:$0xff]
        %v1276 = vld [vmem:[#allocation2 + $0x28] sm:$0xff]
        %v1277 = vld [vmem:[#allocation2 + $0x30] sm:$0xff]
        %v1278 = vld [vmem:[#allocation2 + $0x38] sm:$0xff]
        %v1279 = vld [vmem:[#allocation2 + $0x40] sm:$0xff]
        %v1280 = vld [vmem:[#allocation2 + $0x48] sm:$0xff]
        %v1281 = vld [vmem:[#allocation2 + $0x50] sm:$0xff]
        %v1282 = vld [vmem:[#allocation2 + $0x58] sm:$0xff]
        %v1283 = vld [vmem:[#allocation2 + $0x60] sm:$0xff]
        %v1284 = vld [vmem:[#allocation2 + $0x68] sm:$0xff]
        %v1285 = vld [vmem:[#allocation2 + $0x70] sm:$0xff]
        %v1286 = vld [vmem:[#allocation2 + $0x78] sm:$0xff]
        %v1287 = vld [vmem:[#allocation2 + $0x80] sm:$0xff]
        %v1288 = vld [vmem:[#allocation2 + $0x88] sm:$0xff]
        %v1289 = vld [vmem:[#allocation2 + $0x90] sm:$0xff]
        %v1290 = vld [vmem:[#allocation2 + $0x98] sm:$0xff]
        %v1291 = vld [vmem:[#allocation2 + $0xa0] sm:$0xff]
        %v1292 = vld [vmem:[#allocation2 + $0xa8] sm:$0xff]
        %v1293 = vld [vmem:[#allocation2 + $0xb0] sm:$0xff]
        %v1294 = vld [vmem:[#allocation2 + $0xb8] sm:$0xff]
        %v1295 = vld [vmem:[#allocation2 + $0xc0] sm:$0xff]
        %v1296 = vld [vmem:[#allocation2 + $0xc8] sm:$0xff]
        %v1297 = vld [vmem:[#allocation2 + $0xd0] sm:$0xff]
        %v1298 = vld [vmem:[#allocation2 + $0xd8] sm:$0xff]
        %v1299 = vld [vmem:[#allocation2 + $0xe0] sm:$0xff]
        %v1300 = vld [vmem:[#allocation2 + $0xe8] sm:$0xff]
        %v1301 = vld [vmem:[#allocation2 + $0xf0] sm:$0xff]
        %v1302 = vld [vmem:[#allocation2 + $0xf8] sm:$0xff]
        %v1303 = vadd.f32 %v1271, %v1145
        %v1304 = vadd.f32 %v1272, %v1148
        %v1305 = vadd.f32 %v1273, %v1153
        %v1306 = vadd.f32 %v1274, %v1156
        %v1307 = vadd.f32 %v1275, %v1161
        %v1308 = vadd.f32 %v1276, %v1164
        %v1309 = vadd.f32 %v1277, %v1169
        %v1310 = vadd.f32 %v1278, %v1172
        %v1311 = vadd.f32 %v1279, %v1177
        %v1312 = vadd.f32 %v1280, %v1180
        %v1313 = vadd.f32 %v1281, %v1185
        %v1314 = vadd.f32 %v1282, %v1188
        %v1315 = vadd.f32 %v1283, %v1193
        %v1316 = vadd.f32 %v1284, %v1196
        %v1317 = vadd.f32 %v1285, %v1201
        %v1318 = vadd.f32 %v1286, %v1204
        %v1319 = vadd.f32 %v1287, %v1209
        %v1320 = vadd.f32 %v1288, %v1212
        %v1321 = vadd.f32 %v1289, %v1217
        %v1322 = vadd.f32 %v1290, %v1220
        %v1323 = vadd.f32 %v1291, %v1225
        %v1324 = vadd.f32 %v1292, %v1228
        %v1325 = vadd.f32 %v1293, %v1233
        %v1326 = vadd.f32 %v1294, %v1236
        %v1327 = vadd.f32 %v1295, %v1241
        %v1328 = vadd.f32 %v1296, %v1244
        %v1329 = vadd.f32 %v1297, %v1249
        %v1330 = vadd.f32 %v1298, %v1252
        %v1331 = vadd.f32 %v1299, %v1257
        %v1332 = vadd.f32 %v1300, %v1260
        %v1333 = vadd.f32 %v1301, %v1265
        %v1334 = vadd.f32 %v1302, %v1268
        %1335 = vst [vmem:[#allocation2] sm:$0xff] %v1303
        %1336 = vst [vmem:[#allocation2 + $0x8] sm:$0xff] %v1304
        %1337 = vst [vmem:[#allocation2 + $0x10] sm:$0xff] %v1305
        %1338 = vst [vmem:[#allocation2 + $0x18] sm:$0xff] %v1306
        %1339 = vst [vmem:[#allocation2 + $0x20] sm:$0xff] %v1307
        %1340 = vst [vmem:[#allocation2 + $0x28] sm:$0xff] %v1308
        %1341 = vst [vmem:[#allocation2 + $0x30] sm:$0xff] %v1309
        %1342 = vst [vmem:[#allocation2 + $0x38] sm:$0xff] %v1310
        %1343 = vst [vmem:[#allocation2 + $0x40] sm:$0xff] %v1311
        %1344 = vst [vmem:[#allocation2 + $0x48] sm:$0xff] %v1312
        %1345 = vst [vmem:[#allocation2 + $0x50] sm:$0xff] %v1313
        %1346 = vst [vmem:[#allocation2 + $0x58] sm:$0xff] %v1314
        %1347 = vst [vmem:[#allocation2 + $0x60] sm:$0xff] %v1315
        %1348 = vst [vmem:[#allocation2 + $0x68] sm:$0xff] %v1316
        %1349 = vst [vmem:[#allocation2 + $0x70] sm:$0xff] %v1317
        %1350 = vst [vmem:[#allocation2 + $0x78] sm:$0xff] %v1318
        %1351 = vst [vmem:[#allocation2 + $0x80] sm:$0xff] %v1319
        %1352 = vst [vmem:[#allocation2 + $0x88] sm:$0xff] %v1320
        %1353 = vst [vmem:[#allocation2 + $0x90] sm:$0xff] %v1321
        %1354 = vst [vmem:[#allocation2 + $0x98] sm:$0xff] %v1322
        %1355 = vst [vmem:[#allocation2 + $0xa0] sm:$0xff] %v1323
        %1356 = vst [vmem:[#allocation2 + $0xa8] sm:$0xff] %v1324
        %1357 = vst [vmem:[#allocation2 + $0xb0] sm:$0xff] %v1325
        %1358 = vst [vmem:[#allocation2 + $0xb8] sm:$0xff] %v1326
        %1359 = vst [vmem:[#allocation2 + $0xc0] sm:$0xff] %v1327
        %1360 = vst [vmem:[#allocation2 + $0xc8] sm:$0xff] %v1328
        %1361 = vst [vmem:[#allocation2 + $0xd0] sm:$0xff] %v1329
        %1362 = vst [vmem:[#allocation2 + $0xd8] sm:$0xff] %v1330
        %1363 = vst [vmem:[#allocation2 + $0xe0] sm:$0xff] %v1331
        %1364 = vst [vmem:[#allocation2 + $0xe8] sm:$0xff] %v1332
        %1365 = vst [vmem:[#allocation2 + $0xf0] sm:$0xff] %v1333
        %1366 = vst [vmem:[#allocation2 + $0xf8] sm:$0xff] %v1334
        %v1367 = vld [vmem:[%s206] sm:$0xe]
        %v1368 = vld [vmem:[%s206 + $0x4] sm:$0xf]
        %v1369 = vld [vmem:[%s206 + $0x8] sm:$0x1]
        %v1370 = vld [vmem:[%s206 + $0xc] sm:$0xe]
        %v1371 = vld [vmem:[%s206 + $0x10] sm:$0xf]
        %v1372 = vld [vmem:[%s206 + $0x14] sm:$0x1]
        %v1373 = vld [vmem:[%s206 + $0x18] sm:$0xe]
        %v1374 = vld [vmem:[%s206 + $0x1c] sm:$0xf]
        %v1375 = vld [vmem:[%s206 + $0x20] sm:$0x1]
        %v1376 = vld [vmem:[%s206 + $0x24] sm:$0xe]
        %v1377 = vld [vmem:[%s206 + $0x28] sm:$0xf]
        %v1378 = vld [vmem:[%s206 + $0x2c] sm:$0x1]
        %v1379 = vld [vmem:[%s206 + $0x30] sm:$0xe]
        %v1380 = vld [vmem:[%s206 + $0x34] sm:$0xf]
        %v1381 = vld [vmem:[%s206 + $0x38] sm:$0x1]
        %v1382 = vld [vmem:[%s206 + $0x3c] sm:$0xe]
        %v1383 = vld [vmem:[%s206 + $0x40] sm:$0xf]
        %v1384 = vld [vmem:[%s206 + $0x44] sm:$0x1]
        %v1385 = vld [vmem:[%s206 + $0x48] sm:$0xe]
        %v1386 = vld [vmem:[%s206 + $0x4c] sm:$0xf]
        %v1387 = vld [vmem:[%s206 + $0x50] sm:$0x1]
        %v1388 = vld [vmem:[%s206 + $0x54] sm:$0xe]
        %v1389 = vld [vmem:[%s206 + $0x58] sm:$0xf]
        %v1390 = vld [vmem:[%s206 + $0x5c] sm:$0x1]
        %v1391 = vld [vmem:[%s206 + $0x60] sm:$0xe]
        %v1392 = vld [vmem:[%s206 + $0x64] sm:$0xf]
        %v1393 = vld [vmem:[%s206 + $0x68] sm:$0x1]
        %v1394 = vld [vmem:[%s206 + $0x6c] sm:$0xe]
        %v1395 = vld [vmem:[%s206 + $0x70] sm:$0xf]
        %v1396 = vld [vmem:[%s206 + $0x74] sm:$0x1]
        %v1397 = vld [vmem:[%s206 + $0x78] sm:$0xe]
        %v1398 = vld [vmem:[%s206 + $0x7c] sm:$0xf]
        %v1399 = vld [vmem:[%s206 + $0x80] sm:$0x1]
        %v1400 = vld [vmem:[%s206 + $0x84] sm:$0xe]
        %v1401 = vld [vmem:[%s206 + $0x88] sm:$0xf]
        %v1402 = vld [vmem:[%s206 + $0x8c] sm:$0x1]
        %v1403 = vld [vmem:[%s206 + $0x90] sm:$0xe]
        %v1404 = vld [vmem:[%s206 + $0x94] sm:$0xf]
        %v1405 = vld [vmem:[%s206 + $0x98] sm:$0x1]
        %v1406 = vld [vmem:[%s206 + $0x9c] sm:$0xe]
        %v1407 = vld [vmem:[%s206 + $0xa0] sm:$0xf]
        %v1408 = vld [vmem:[%s206 + $0xa4] sm:$0x1]
        %v1409 = vld [vmem:[%s206 + $0xa8] sm:$0xe]
        %v1410 = vld [vmem:[%s206 + $0xac] sm:$0xf]
        %v1411 = vld [vmem:[%s206 + $0xb0] sm:$0x1]
        %v1412 = vld [vmem:[%s206 + $0xb4] sm:$0xe]
        %v1413 = vld [vmem:[%s206 + $0xb8] sm:$0xf]
        %v1414 = vld [vmem:[%s206 + $0xbc] sm:$0x1]
        %vm1463 = vcmask 1042432
        %vm1464 = vcmask 1046532
        %vm1465 = vmor %vm1463, %vm1464
        %v1466 = vrot.slane %v1367, 5
        %v1467 = vrot.slane %v1466, 4
        %v1468 = vrot.slane %v1368, 5
        %v1469 = vsel %vm1465, %v1467, %v1468
        %v1470 = vrot.slane %v1468, 4
        %v1471 = vrot.slane %v1369, 5
        %v1472 = vsel %vm1465, %v1470, %v1471
        %v1473 = vrot.slane %v1370, 5
        %v1474 = vrot.slane %v1473, 4
        %v1475 = vrot.slane %v1371, 5
        %v1476 = vsel %vm1465, %v1474, %v1475
        %v1477 = vrot.slane %v1475, 4
        %v1478 = vrot.slane %v1372, 5
        %v1479 = vsel %vm1465, %v1477, %v1478
        %v1480 = vrot.slane %v1373, 5
        %v1481 = vrot.slane %v1480, 4
        %v1482 = vrot.slane %v1374, 5
        %v1483 = vsel %vm1465, %v1481, %v1482
        %v1484 = vrot.slane %v1482, 4
        %v1485 = vrot.slane %v1375, 5
        %v1486 = vsel %vm1465, %v1484, %v1485
        %v1487 = vrot.slane %v1376, 5
        %v1488 = vrot.slane %v1487, 4
        %v1489 = vrot.slane %v1377, 5
        %v1490 = vsel %vm1465, %v1488, %v1489
        %v1491 = vrot.slane %v1489, 4
        %v1492 = vrot.slane %v1378, 5
        %v1493 = vsel %vm1465, %v1491, %v1492
        %v1494 = vrot.slane %v1379, 5
        %v1495 = vrot.slane %v1494, 4
        %v1496 = vrot.slane %v1380, 5
        %v1497 = vsel %vm1465, %v1495, %v1496
        %v1498 = vrot.slane %v1496, 4
        %v1499 = vrot.slane %v1381, 5
        %v1500 = vsel %vm1465, %v1498, %v1499
        %v1501 = vrot.slane %v1382, 5
        %v1502 = vrot.slane %v1501, 4
        %v1503 = vrot.slane %v1383, 5
        %v1504 = vsel %vm1465, %v1502, %v1503
        %v1505 = vrot.slane %v1503, 4
        %v1506 = vrot.slane %v1384, 5
        %v1507 = vsel %vm1465, %v1505, %v1506
        %v1508 = vrot.slane %v1385, 5
        %v1509 = vrot.slane %v1508, 4
        %v1510 = vrot.slane %v1386, 5
        %v1511 = vsel %vm1465, %v1509, %v1510
        %v1512 = vrot.slane %v1510, 4
        %v1513 = vrot.slane %v1387, 5
        %v1514 = vsel %vm1465, %v1512, %v1513
        %v1515 = vrot.slane %v1388, 5
        %v1516 = vrot.slane %v1515, 4
        %v1517 = vrot.slane %v1389, 5
        %v1518 = vsel %vm1465, %v1516, %v1517
        %v1519 = vrot.slane %v1517, 4
        %v1520 = vrot.slane %v1390, 5
        %v1521 = vsel %vm1465, %v1519, %v1520
        %v1522 = vrot.slane %v1391, 5
        %v1523 = vrot.slane %v1522, 4
        %v1524 = vrot.slane %v1392, 5
        %v1525 = vsel %vm1465, %v1523, %v1524
        %v1526 = vrot.slane %v1524, 4
        %v1527 = vrot.slane %v1393, 5
        %v1528 = vsel %vm1465, %v1526, %v1527
        %v1529 = vrot.slane %v1394, 5
        %v1530 = vrot.slane %v1529, 4
        %v1531 = vrot.slane %v1395, 5
        %v1532 = vsel %vm1465, %v1530, %v1531
        %v1533 = vrot.slane %v1531, 4
        %v1534 = vrot.slane %v1396, 5
        %v1535 = vsel %vm1465, %v1533, %v1534
        %v1536 = vrot.slane %v1397, 5
        %v1537 = vrot.slane %v1536, 4
        %v1538 = vrot.slane %v1398, 5
        %v1539 = vsel %vm1465, %v1537, %v1538
        %v1540 = vrot.slane %v1538, 4
        %v1541 = vrot.slane %v1399, 5
        %v1542 = vsel %vm1465, %v1540, %v1541
        %v1543 = vrot.slane %v1400, 5
        %v1544 = vrot.slane %v1543, 4
        %v1545 = vrot.slane %v1401, 5
        %v1546 = vsel %vm1465, %v1544, %v1545
        %v1547 = vrot.slane %v1545, 4
        %v1548 = vrot.slane %v1402, 5
        %v1549 = vsel %vm1465, %v1547, %v1548
        %v1550 = vrot.slane %v1403, 5
        %v1551 = vrot.slane %v1550, 4
        %v1552 = vrot.slane %v1404, 5
        %v1553 = vsel %vm1465, %v1551, %v1552
        %v1554 = vrot.slane %v1552, 4
        %v1555 = vrot.slane %v1405, 5
        %v1556 = vsel %vm1465, %v1554, %v1555
        %v1557 = vrot.slane %v1406, 5
        %v1558 = vrot.slane %v1557, 4
        %v1559 = vrot.slane %v1407, 5
        %v1560 = vsel %vm1465, %v1558, %v1559
        %v1561 = vrot.slane %v1559, 4
        %v1562 = vrot.slane %v1408, 5
        %v1563 = vsel %vm1465, %v1561, %v1562
        %v1564 = vrot.slane %v1409, 5
        %v1565 = vrot.slane %v1564, 4
        %v1566 = vrot.slane %v1410, 5
        %v1567 = vsel %vm1465, %v1565, %v1566
        %v1568 = vrot.slane %v1566, 4
        %v1569 = vrot.slane %v1411, 5
        %v1570 = vsel %vm1465, %v1568, %v1569
        %v1571 = vrot.slane %v1412, 5
        %v1572 = vrot.slane %v1571, 4
        %v1573 = vrot.slane %v1413, 5
        %v1574 = vsel %vm1465, %v1572, %v1573
        %v1575 = vrot.slane %v1573, 4
        %v1576 = vrot.slane %v1414, 5
        %v1577 = vsel %vm1465, %v1575, %v1576
        %s1578 = scalar_lea.vmem %s210, 4
        %v1579 = vld [vmem:[%s1578] sm:$0x3]
        %v1580 = vunpack.c.l.b16 %v1469
        %v1581 = vunpack.c.l.b16 %v1472
        %v1582 = vunpack.c.l.b16 %v1476
        %v1583 = vunpack.c.l.b16 %v1479
        %v1584 = vunpack.c.l.b16 %v1483
        %v1585 = vunpack.c.l.b16 %v1486
        %v1586 = vunpack.c.l.b16 %v1490
        %v1587 = vunpack.c.l.b16 %v1493
        %v1588 = vunpack.c.l.b16 %v1497
        %v1589 = vunpack.c.l.b16 %v1500
        %v1590 = vunpack.c.l.b16 %v1504
        %v1591 = vunpack.c.l.b16 %v1507
        %v1592 = vunpack.c.l.b16 %v1511
        %v1593 = vunpack.c.l.b16 %v1514
        %v1594 = vunpack.c.l.b16 %v1518
        %v1595 = vunpack.c.l.b16 %v1521
        %v1596 = vunpack.c.l.b16 %v1525
        %v1597 = vunpack.c.l.b16 %v1528
        %v1598 = vunpack.c.l.b16 %v1532
        %v1599 = vunpack.c.l.b16 %v1535
        %v1600 = vunpack.c.l.b16 %v1539
        %v1601 = vunpack.c.l.b16 %v1542
        %v1602 = vunpack.c.l.b16 %v1546
        %v1603 = vunpack.c.l.b16 %v1549
        %v1604 = vunpack.c.l.b16 %v1553
        %v1605 = vunpack.c.l.b16 %v1556
        %v1606 = vunpack.c.l.b16 %v1560
        %v1607 = vunpack.c.l.b16 %v1563
        %v1608 = vunpack.c.l.b16 %v1567
        %v1609 = vunpack.c.l.b16 %v1570
        %v1610 = vunpack.c.l.b16 %v1574
        %v1611 = vunpack.c.l.b16 %v1577
        %v1612 = vpack.c.b16 %v1581, %v1580
        %v1613 = vpack.c.b16 %v1583, %v1582
        %v1614 = vpack.c.b16 %v1585, %v1584
        %v1615 = vpack.c.b16 %v1587, %v1586
        %v1616 = vpack.c.b16 %v1589, %v1588
        %v1617 = vpack.c.b16 %v1591, %v1590
        %v1618 = vpack.c.b16 %v1593, %v1592
        %v1619 = vpack.c.b16 %v1595, %v1594
        %v1620 = vpack.c.b16 %v1597, %v1596
        %v1621 = vpack.c.b16 %v1599, %v1598
        %v1622 = vpack.c.b16 %v1601, %v1600
        %v1623 = vpack.c.b16 %v1603, %v1602
        %v1624 = vpack.c.b16 %v1605, %v1604
        %v1625 = vpack.c.b16 %v1607, %v1606
        %v1626 = vpack.c.b16 %v1609, %v1608
        %v1627 = vpack.c.b16 %v1611, %v1610
        %v1629 = vsel %vm328, %v1612, 0
        %v1632 = vsel %vm328, %v1613, 0
        %v1635 = vsel %vm328, %v1614, 0
        %v1638 = vsel %vm328, %v1615, 0
        %v1641 = vsel %vm328, %v1616, 0
        %v1644 = vsel %vm328, %v1617, 0
        %v1647 = vsel %vm328, %v1618, 0
        %v1650 = vsel %vm328, %v1619, 0
        %v1653 = vsel %vm328, %v1620, 0
        %v1656 = vsel %vm328, %v1621, 0
        %v1659 = vsel %vm328, %v1622, 0
        %v1662 = vsel %vm328, %v1623, 0
        %v1665 = vsel %vm328, %v1624, 0
        %v1668 = vsel %vm328, %v1625, 0
        %v1671 = vsel %vm328, %v1626, 0
        %v1674 = vsel %vm328, %v1627, 0
        %v1677 = vsel %vm377, %v1579, 0
        %1679 = vmatprep.subr.bf16.mxu0 0
        %1680 = vmatpush1.bf16.msra.mxu0 0
        %1681 = vmatprep.subr.bf16.mxu0 0
        %1682 = vmatpush1.bf16.msra.mxu0 0
        %1683 = vmatprep.subr.bf16.mxu0 0
        %1684 = vmatpush1.bf16.msra.mxu0 0
        %1685 = vmatprep.subr.bf16.mxu0 0
        %1686 = vmatpush1.bf16.msra.mxu0 0
        %1687 = vmatprep.subr.bf16.mxu0 0
        %1688 = vmatpush1.bf16.msra.mxu0 0
        %1689 = vmatprep.subr.bf16.mxu0 0
        %1690 = vmatpush1.bf16.msra.mxu0 0
        %1691 = vmatprep.subr.bf16.mxu0 0
        %1692 = vmatpush1.bf16.msra.mxu0 0
        %1693 = vmatprep.subr.bf16.mxu0 0
        %1694 = vmatpush1.bf16.msra.mxu0 %v1677
        %1695 = vmatprep.subr.bf16.mxu0 0
        %1696 = vmatpush2.bf16.msra.mxu0 0
        %1697 = vmatprep.subr.bf16.mxu0 0
        %1698 = vmatpush2.bf16.msra.mxu0 0
        %1699 = vmatprep.subr.bf16.mxu0 0
        %1700 = vmatpush2.bf16.msra.mxu0 0
        %1701 = vmatprep.subr.bf16.mxu0 0
        %1702 = vmatpush2.bf16.msra.mxu0 0
        %1703 = vmatprep.subr.bf16.mxu0 0
        %1704 = vmatpush2.bf16.msra.mxu0 0
        %1705 = vmatprep.subr.bf16.mxu0 0
        %1706 = vmatpush2.bf16.msra.mxu0 0
        %1707 = vmatprep.subr.bf16.mxu0 0
        %1708 = vmatpush2.bf16.msra.mxu0 0
        %1709 = vmatprep.subr.bf16.mxu0 0
        %1710 = vmatpush2.bf16.msra.mxu0 0
        %1711 = vmatprep.mubr.bf16.mxu0 0
        %1712 = vmatmul.mubr.bf16.gmra.mxu0 %v1629
        %v1713 = vpop.f32.mrf.mxu0
        %v1714 = vadd.f32 0.0, %v1713
        %v1715 = vpop.f32.mrf.mxu0
        %v1716 = vpop.f32.mrf.mxu0
        %v1717 = vadd.f32 0.0, %v1716
        %v1718 = vpop.f32.mrf.mxu0
        %1719 = vmatprep.mubr.bf16.mxu0 0
        %1720 = vmatmul.mubr.bf16.gmra.mxu0 %v1632
        %v1721 = vpop.f32.mrf.mxu0
        %v1722 = vadd.f32 0.0, %v1721
        %v1723 = vpop.f32.mrf.mxu0
        %v1724 = vpop.f32.mrf.mxu0
        %v1725 = vadd.f32 0.0, %v1724
        %v1726 = vpop.f32.mrf.mxu0
        %1727 = vmatprep.mubr.bf16.mxu0 0
        %1728 = vmatmul.mubr.bf16.gmra.mxu0 %v1635
        %v1729 = vpop.f32.mrf.mxu0
        %v1730 = vadd.f32 0.0, %v1729
        %v1731 = vpop.f32.mrf.mxu0
        %v1732 = vpop.f32.mrf.mxu0
        %v1733 = vadd.f32 0.0, %v1732
        %v1734 = vpop.f32.mrf.mxu0
        %1735 = vmatprep.mubr.bf16.mxu0 0
        %1736 = vmatmul.mubr.bf16.gmra.mxu0 %v1638
        %v1737 = vpop.f32.mrf.mxu0
        %v1738 = vadd.f32 0.0, %v1737
        %v1739 = vpop.f32.mrf.mxu0
        %v1740 = vpop.f32.mrf.mxu0
        %v1741 = vadd.f32 0.0, %v1740
        %v1742 = vpop.f32.mrf.mxu0
        %1743 = vmatprep.mubr.bf16.mxu0 0
        %1744 = vmatmul.mubr.bf16.gmra.mxu0 %v1641
        %v1745 = vpop.f32.mrf.mxu0
        %v1746 = vadd.f32 0.0, %v1745
        %v1747 = vpop.f32.mrf.mxu0
        %v1748 = vpop.f32.mrf.mxu0
        %v1749 = vadd.f32 0.0, %v1748
        %v1750 = vpop.f32.mrf.mxu0
        %1751 = vmatprep.mubr.bf16.mxu0 0
        %1752 = vmatmul.mubr.bf16.gmra.mxu0 %v1644
        %v1753 = vpop.f32.mrf.mxu0
        %v1754 = vadd.f32 0.0, %v1753
        %v1755 = vpop.f32.mrf.mxu0
        %v1756 = vpop.f32.mrf.mxu0
        %v1757 = vadd.f32 0.0, %v1756
        %v1758 = vpop.f32.mrf.mxu0
        %1759 = vmatprep.mubr.bf16.mxu0 0
        %1760 = vmatmul.mubr.bf16.gmra.mxu0 %v1647
        %v1761 = vpop.f32.mrf.mxu0
        %v1762 = vadd.f32 0.0, %v1761
        %v1763 = vpop.f32.mrf.mxu0
        %v1764 = vpop.f32.mrf.mxu0
        %v1765 = vadd.f32 0.0, %v1764
        %v1766 = vpop.f32.mrf.mxu0
        %1767 = vmatprep.mubr.bf16.mxu0 0
        %1768 = vmatmul.mubr.bf16.gmra.mxu0 %v1650
        %v1769 = vpop.f32.mrf.mxu0
        %v1770 = vadd.f32 0.0, %v1769
        %v1771 = vpop.f32.mrf.mxu0
        %v1772 = vpop.f32.mrf.mxu0
        %v1773 = vadd.f32 0.0, %v1772
        %v1774 = vpop.f32.mrf.mxu0
        %1775 = vmatprep.mubr.bf16.mxu0 0
        %1776 = vmatmul.mubr.bf16.gmra.mxu0 %v1653
        %v1777 = vpop.f32.mrf.mxu0
        %v1778 = vadd.f32 0.0, %v1777
        %v1779 = vpop.f32.mrf.mxu0
        %v1780 = vpop.f32.mrf.mxu0
        %v1781 = vadd.f32 0.0, %v1780
        %v1782 = vpop.f32.mrf.mxu0
        %1783 = vmatprep.mubr.bf16.mxu0 0
        %1784 = vmatmul.mubr.bf16.gmra.mxu0 %v1656
        %v1785 = vpop.f32.mrf.mxu0
        %v1786 = vadd.f32 0.0, %v1785
        %v1787 = vpop.f32.mrf.mxu0
        %v1788 = vpop.f32.mrf.mxu0
        %v1789 = vadd.f32 0.0, %v1788
        %v1790 = vpop.f32.mrf.mxu0
        %1791 = vmatprep.mubr.bf16.mxu0 0
        %1792 = vmatmul.mubr.bf16.gmra.mxu0 %v1659
        %v1793 = vpop.f32.mrf.mxu0
        %v1794 = vadd.f32 0.0, %v1793
        %v1795 = vpop.f32.mrf.mxu0
        %v1796 = vpop.f32.mrf.mxu0
        %v1797 = vadd.f32 0.0, %v1796
        %v1798 = vpop.f32.mrf.mxu0
        %1799 = vmatprep.mubr.bf16.mxu0 0
        %1800 = vmatmul.mubr.bf16.gmra.mxu0 %v1662
        %v1801 = vpop.f32.mrf.mxu0
        %v1802 = vadd.f32 0.0, %v1801
        %v1803 = vpop.f32.mrf.mxu0
        %v1804 = vpop.f32.mrf.mxu0
        %v1805 = vadd.f32 0.0, %v1804
        %v1806 = vpop.f32.mrf.mxu0
        %1807 = vmatprep.mubr.bf16.mxu0 0
        %1808 = vmatmul.mubr.bf16.gmra.mxu0 %v1665
        %v1809 = vpop.f32.mrf.mxu0
        %v1810 = vadd.f32 0.0, %v1809
        %v1811 = vpop.f32.mrf.mxu0
        %v1812 = vpop.f32.mrf.mxu0
        %v1813 = vadd.f32 0.0, %v1812
        %v1814 = vpop.f32.mrf.mxu0
        %1815 = vmatprep.mubr.bf16.mxu0 0
        %1816 = vmatmul.mubr.bf16.gmra.mxu0 %v1668
        %v1817 = vpop.f32.mrf.mxu0
        %v1818 = vadd.f32 0.0, %v1817
        %v1819 = vpop.f32.mrf.mxu0
        %v1820 = vpop.f32.mrf.mxu0
        %v1821 = vadd.f32 0.0, %v1820
        %v1822 = vpop.f32.mrf.mxu0
        %1823 = vmatprep.mubr.bf16.mxu0 0
        %1824 = vmatmul.mubr.bf16.gmra.mxu0 %v1671
        %v1825 = vpop.f32.mrf.mxu0
        %v1826 = vadd.f32 0.0, %v1825
        %v1827 = vpop.f32.mrf.mxu0
        %v1828 = vpop.f32.mrf.mxu0
        %v1829 = vadd.f32 0.0, %v1828
        %v1830 = vpop.f32.mrf.mxu0
        %1831 = vmatprep.mubr.bf16.mxu0 0
        %1832 = vmatmul.mubr.bf16.gmra.mxu0 %v1674
        %v1833 = vpop.f32.mrf.mxu0
        %v1834 = vadd.f32 0.0, %v1833
        %v1835 = vpop.f32.mrf.mxu0
        %v1836 = vpop.f32.mrf.mxu0
        %v1837 = vadd.f32 0.0, %v1836
        %v1838 = vpop.f32.mrf.mxu0
        %1839 = vdwg.mxu0
        %v1840 = vld [vmem:[#allocation2] sm:$0xff]
        %v1841 = vld [vmem:[#allocation2 + $0x8] sm:$0xff]
        %v1842 = vld [vmem:[#allocation2 + $0x10] sm:$0xff]
        %v1843 = vld [vmem:[#allocation2 + $0x18] sm:$0xff]
        %v1844 = vld [vmem:[#allocation2 + $0x20] sm:$0xff]
        %v1845 = vld [vmem:[#allocation2 + $0x28] sm:$0xff]
        %v1846 = vld [vmem:[#allocation2 + $0x30] sm:$0xff]
        %v1847 = vld [vmem:[#allocation2 + $0x38] sm:$0xff]
        %v1848 = vld [vmem:[#allocation2 + $0x40] sm:$0xff]
        %v1849 = vld [vmem:[#allocation2 + $0x48] sm:$0xff]
        %v1850 = vld [vmem:[#allocation2 + $0x50] sm:$0xff]
        %v1851 = vld [vmem:[#allocation2 + $0x58] sm:$0xff]
        %v1852 = vld [vmem:[#allocation2 + $0x60] sm:$0xff]
        %v1853 = vld [vmem:[#allocation2 + $0x68] sm:$0xff]
        %v1854 = vld [vmem:[#allocation2 + $0x70] sm:$0xff]
        %v1855 = vld [vmem:[#allocation2 + $0x78] sm:$0xff]
        %v1856 = vld [vmem:[#allocation2 + $0x80] sm:$0xff]
        %v1857 = vld [vmem:[#allocation2 + $0x88] sm:$0xff]
        %v1858 = vld [vmem:[#allocation2 + $0x90] sm:$0xff]
        %v1859 = vld [vmem:[#allocation2 + $0x98] sm:$0xff]
        %v1860 = vld [vmem:[#allocation2 + $0xa0] sm:$0xff]
        %v1861 = vld [vmem:[#allocation2 + $0xa8] sm:$0xff]
        %v1862 = vld [vmem:[#allocation2 + $0xb0] sm:$0xff]
        %v1863 = vld [vmem:[#allocation2 + $0xb8] sm:$0xff]
        %v1864 = vld [vmem:[#allocation2 + $0xc0] sm:$0xff]
        %v1865 = vld [vmem:[#allocation2 + $0xc8] sm:$0xff]
        %v1866 = vld [vmem:[#allocation2 + $0xd0] sm:$0xff]
        %v1867 = vld [vmem:[#allocation2 + $0xd8] sm:$0xff]
        %v1868 = vld [vmem:[#allocation2 + $0xe0] sm:$0xff]
        %v1869 = vld [vmem:[#allocation2 + $0xe8] sm:$0xff]
        %v1870 = vld [vmem:[#allocation2 + $0xf0] sm:$0xff]
        %v1871 = vld [vmem:[#allocation2 + $0xf8] sm:$0xff]
        %v1872 = vadd.f32 %v1840, %v1714
        %v1873 = vadd.f32 %v1841, %v1717
        %v1874 = vadd.f32 %v1842, %v1722
        %v1875 = vadd.f32 %v1843, %v1725
        %v1876 = vadd.f32 %v1844, %v1730
        %v1877 = vadd.f32 %v1845, %v1733
        %v1878 = vadd.f32 %v1846, %v1738
        %v1879 = vadd.f32 %v1847, %v1741
        %v1880 = vadd.f32 %v1848, %v1746
        %v1881 = vadd.f32 %v1849, %v1749
        %v1882 = vadd.f32 %v1850, %v1754
        %v1883 = vadd.f32 %v1851, %v1757
        %v1884 = vadd.f32 %v1852, %v1762
        %v1885 = vadd.f32 %v1853, %v1765
        %v1886 = vadd.f32 %v1854, %v1770
        %v1887 = vadd.f32 %v1855, %v1773
        %v1888 = vadd.f32 %v1856, %v1778
        %v1889 = vadd.f32 %v1857, %v1781
        %v1890 = vadd.f32 %v1858, %v1786
        %v1891 = vadd.f32 %v1859, %v1789
        %v1892 = vadd.f32 %v1860, %v1794
        %v1893 = vadd.f32 %v1861, %v1797
        %v1894 = vadd.f32 %v1862, %v1802
        %v1895 = vadd.f32 %v1863, %v1805
        %v1896 = vadd.f32 %v1864, %v1810
        %v1897 = vadd.f32 %v1865, %v1813
        %v1898 = vadd.f32 %v1866, %v1818
        %v1899 = vadd.f32 %v1867, %v1821
        %v1900 = vadd.f32 %v1868, %v1826
        %v1901 = vadd.f32 %v1869, %v1829
        %v1902 = vadd.f32 %v1870, %v1834
        %v1903 = vadd.f32 %v1871, %v1837
        %1904 = vst [vmem:[#allocation2] sm:$0xff] %v1872
        %1905 = vst [vmem:[#allocation2 + $0x8] sm:$0xff] %v1873
        %1906 = vst [vmem:[#allocation2 + $0x10] sm:$0xff] %v1874
        %1907 = vst [vmem:[#allocation2 + $0x18] sm:$0xff] %v1875
        %1908 = vst [vmem:[#allocation2 + $0x20] sm:$0xff] %v1876
        %1909 = vst [vmem:[#allocation2 + $0x28] sm:$0xff] %v1877
        %1910 = vst [vmem:[#allocation2 + $0x30] sm:$0xff] %v1878
        %1911 = vst [vmem:[#allocation2 + $0x38] sm:$0xff] %v1879
        %1912 = vst [vmem:[#allocation2 + $0x40] sm:$0xff] %v1880
        %1913 = vst [vmem:[#allocation2 + $0x48] sm:$0xff] %v1881
        %1914 = vst [vmem:[#allocation2 + $0x50] sm:$0xff] %v1882
        %1915 = vst [vmem:[#allocation2 + $0x58] sm:$0xff] %v1883
        %1916 = vst [vmem:[#allocation2 + $0x60] sm:$0xff] %v1884
        %1917 = vst [vmem:[#allocation2 + $0x68] sm:$0xff] %v1885
        %1918 = vst [vmem:[#allocation2 + $0x70] sm:$0xff] %v1886
        %1919 = vst [vmem:[#allocation2 + $0x78] sm:$0xff] %v1887
        %1920 = vst [vmem:[#allocation2 + $0x80] sm:$0xff] %v1888
        %1921 = vst [vmem:[#allocation2 + $0x88] sm:$0xff] %v1889
        %1922 = vst [vmem:[#allocation2 + $0x90] sm:$0xff] %v1890
        %1923 = vst [vmem:[#allocation2 + $0x98] sm:$0xff] %v1891
        %1924 = vst [vmem:[#allocation2 + $0xa0] sm:$0xff] %v1892
        %1925 = vst [vmem:[#allocation2 + $0xa8] sm:$0xff] %v1893
        %1926 = vst [vmem:[#allocation2 + $0xb0] sm:$0xff] %v1894
        %1927 = vst [vmem:[#allocation2 + $0xb8] sm:$0xff] %v1895
        %1928 = vst [vmem:[#allocation2 + $0xc0] sm:$0xff] %v1896
        %1929 = vst [vmem:[#allocation2 + $0xc8] sm:$0xff] %v1897
        %1930 = vst [vmem:[#allocation2 + $0xd0] sm:$0xff] %v1898
        %1931 = vst [vmem:[#allocation2 + $0xd8] sm:$0xff] %v1899
        %1932 = vst [vmem:[#allocation2 + $0xe0] sm:$0xff] %v1900
        %1933 = vst [vmem:[#allocation2 + $0xe8] sm:$0xff] %v1901
        %1934 = vst [vmem:[#allocation2 + $0xf0] sm:$0xff] %v1902
        %1935 = vst [vmem:[#allocation2 + $0xf8] sm:$0xff] %v1903
        %s1936 = scalar_lea.vmem %s206, 12
        %v1937 = vld [vmem:[%s1936] sm:$0xf]
        %v1938 = vld [vmem:[%s1936 + $0x4] sm:$0xf]
        %v1939 = vld [vmem:[%s1936 + $0xc] sm:$0xf]
        %v1940 = vld [vmem:[%s1936 + $0x10] sm:$0xf]
        %v1941 = vld [vmem:[%s1936 + $0x18] sm:$0xf]
        %v1942 = vld [vmem:[%s1936 + $0x1c] sm:$0xf]
        %v1943 = vld [vmem:[%s1936 + $0x24] sm:$0xf]
        %v1944 = vld [vmem:[%s1936 + $0x28] sm:$0xf]
        %v1945 = vld [vmem:[%s1936 + $0x30] sm:$0xf]
        %v1946 = vld [vmem:[%s1936 + $0x34] sm:$0xf]
        %v1947 = vld [vmem:[%s1936 + $0x3c] sm:$0xf]
        %v1948 = vld [vmem:[%s1936 + $0x40] sm:$0xf]
        %v1949 = vld [vmem:[%s1936 + $0x48] sm:$0xf]
        %v1950 = vld [vmem:[%s1936 + $0x4c] sm:$0xf]
        %v1951 = vld [vmem:[%s1936 + $0x54] sm:$0xf]
        %v1952 = vld [vmem:[%s1936 + $0x58] sm:$0xf]
        %v1953 = vld [vmem:[%s1936 + $0x60] sm:$0xf]
        %v1954 = vld [vmem:[%s1936 + $0x64] sm:$0xf]
        %v1955 = vld [vmem:[%s1936 + $0x6c] sm:$0xf]
        %v1956 = vld [vmem:[%s1936 + $0x70] sm:$0xf]
        %v1957 = vld [vmem:[%s1936 + $0x78] sm:$0xf]
        %v1958 = vld [vmem:[%s1936 + $0x7c] sm:$0xf]
        %v1959 = vld [vmem:[%s1936 + $0x84] sm:$0xf]
        %v1960 = vld [vmem:[%s1936 + $0x88] sm:$0xf]
        %v1961 = vld [vmem:[%s1936 + $0x90] sm:$0xf]
        %v1962 = vld [vmem:[%s1936 + $0x94] sm:$0xf]
        %v1963 = vld [vmem:[%s1936 + $0x9c] sm:$0xf]
        %v1964 = vld [vmem:[%s1936 + $0xa0] sm:$0xf]
        %v1965 = vld [vmem:[%s1936 + $0xa8] sm:$0xf]
        %v1966 = vld [vmem:[%s1936 + $0xac] sm:$0xf]
        %v1967 = vld [vmem:[%s1936 + $0xb4] sm:$0xf]
        %v1968 = vld [vmem:[%s1936 + $0xb8] sm:$0xf]
        %s1969 = scalar_lea.vmem %s210, 6
        %v1970 = vld [vmem:[%s1969] sm:$0x3]
        %v2003 = vunpack.c.l.b16 %v1937
        %v2004 = vunpack.c.l.b16 %v1938
        %v2005 = vunpack.c.l.b16 %v1939
        %v2006 = vunpack.c.l.b16 %v1940
        %v2007 = vunpack.c.l.b16 %v1941
        %v2008 = vunpack.c.l.b16 %v1942
        %v2009 = vunpack.c.l.b16 %v1943
        %v2010 = vunpack.c.l.b16 %v1944
        %v2011 = vunpack.c.l.b16 %v1945
        %v2012 = vunpack.c.l.b16 %v1946
        %v2013 = vunpack.c.l.b16 %v1947
        %v2014 = vunpack.c.l.b16 %v1948
        %v2015 = vunpack.c.l.b16 %v1949
        %v2016 = vunpack.c.l.b16 %v1950
        %v2017 = vunpack.c.l.b16 %v1951
        %v2018 = vunpack.c.l.b16 %v1952
        %v2019 = vunpack.c.l.b16 %v1953
        %v2020 = vunpack.c.l.b16 %v1954
        %v2021 = vunpack.c.l.b16 %v1955
        %v2022 = vunpack.c.l.b16 %v1956
        %v2023 = vunpack.c.l.b16 %v1957
        %v2024 = vunpack.c.l.b16 %v1958
        %v2025 = vunpack.c.l.b16 %v1959
        %v2026 = vunpack.c.l.b16 %v1960
        %v2027 = vunpack.c.l.b16 %v1961
        %v2028 = vunpack.c.l.b16 %v1962
        %v2029 = vunpack.c.l.b16 %v1963
        %v2030 = vunpack.c.l.b16 %v1964
        %v2031 = vunpack.c.l.b16 %v1965
        %v2032 = vunpack.c.l.b16 %v1966
        %v2033 = vunpack.c.l.b16 %v1967
        %v2034 = vunpack.c.l.b16 %v1968
        %v2035 = vpack.c.b16 %v2004, %v2003
        %v2036 = vpack.c.b16 %v2006, %v2005
        %v2037 = vpack.c.b16 %v2008, %v2007
        %v2038 = vpack.c.b16 %v2010, %v2009
        %v2039 = vpack.c.b16 %v2012, %v2011
        %v2040 = vpack.c.b16 %v2014, %v2013
        %v2041 = vpack.c.b16 %v2016, %v2015
        %v2042 = vpack.c.b16 %v2018, %v2017
        %v2043 = vpack.c.b16 %v2020, %v2019
        %v2044 = vpack.c.b16 %v2022, %v2021
        %v2045 = vpack.c.b16 %v2024, %v2023
        %v2046 = vpack.c.b16 %v2026, %v2025
        %v2047 = vpack.c.b16 %v2028, %v2027
        %v2048 = vpack.c.b16 %v2030, %v2029
        %v2049 = vpack.c.b16 %v2032, %v2031
        %v2050 = vpack.c.b16 %v2034, %v2033
        %v2052 = vsel %vm328, %v2035, 0
        %v2055 = vsel %vm328, %v2036, 0
        %v2058 = vsel %vm328, %v2037, 0
        %v2061 = vsel %vm328, %v2038, 0
        %v2064 = vsel %vm328, %v2039, 0
        %v2067 = vsel %vm328, %v2040, 0
        %v2070 = vsel %vm328, %v2041, 0
        %v2073 = vsel %vm328, %v2042, 0
        %v2076 = vsel %vm328, %v2043, 0
        %v2079 = vsel %vm328, %v2044, 0
        %v2082 = vsel %vm328, %v2045, 0
        %v2085 = vsel %vm328, %v2046, 0
        %v2088 = vsel %vm328, %v2047, 0
        %v2091 = vsel %vm328, %v2048, 0
        %v2094 = vsel %vm328, %v2049, 0
        %v2097 = vsel %vm328, %v2050, 0
        %v2100 = vsel %vm377, %v1970, 0
        %2102 = vmatprep.subr.bf16.mxu0 0
        %2103 = vmatpush1.bf16.msra.mxu0 0
        %2104 = vmatprep.subr.bf16.mxu0 0
        %2105 = vmatpush1.bf16.msra.mxu0 0
        %2106 = vmatprep.subr.bf16.mxu0 0
        %2107 = vmatpush1.bf16.msra.mxu0 0
        %2108 = vmatprep.subr.bf16.mxu0 0
        %2109 = vmatpush1.bf16.msra.mxu0 0
        %2110 = vmatprep.subr.bf16.mxu0 0
        %2111 = vmatpush1.bf16.msra.mxu0 0
        %2112 = vmatprep.subr.bf16.mxu0 0
        %2113 = vmatpush1.bf16.msra.mxu0 0
        %2114 = vmatprep.subr.bf16.mxu0 0
        %2115 = vmatpush1.bf16.msra.mxu0 0
        %2116 = vmatprep.subr.bf16.mxu0 0
        %2117 = vmatpush1.bf16.msra.mxu0 %v2100
        %2118 = vmatprep.subr.bf16.mxu0 0
        %2119 = vmatpush2.bf16.msra.mxu0 0
        %2120 = vmatprep.subr.bf16.mxu0 0
        %2121 = vmatpush2.bf16.msra.mxu0 0
        %2122 = vmatprep.subr.bf16.mxu0 0
        %2123 = vmatpush2.bf16.msra.mxu0 0
        %2124 = vmatprep.subr.bf16.mxu0 0
        %2125 = vmatpush2.bf16.msra.mxu0 0
        %2126 = vmatprep.subr.bf16.mxu0 0
        %2127 = vmatpush2.bf16.msra.mxu0 0
        %2128 = vmatprep.subr.bf16.mxu0 0
        %2129 = vmatpush2.bf16.msra.mxu0 0
        %2130 = vmatprep.subr.bf16.mxu0 0
        %2131 = vmatpush2.bf16.msra.mxu0 0
        %2132 = vmatprep.subr.bf16.mxu0 0
        %2133 = vmatpush2.bf16.msra.mxu0 0
        %2134 = vmatprep.mubr.bf16.mxu0 0
        %2135 = vmatmul.mubr.bf16.gmra.mxu0 %v2052
        %v2136 = vpop.f32.mrf.mxu0
        %v2137 = vadd.f32 0.0, %v2136
        %v2138 = vpop.f32.mrf.mxu0
        %v2139 = vpop.f32.mrf.mxu0
        %v2140 = vadd.f32 0.0, %v2139
        %v2141 = vpop.f32.mrf.mxu0
        %2142 = vmatprep.mubr.bf16.mxu0 0
        %2143 = vmatmul.mubr.bf16.gmra.mxu0 %v2055
        %v2144 = vpop.f32.mrf.mxu0
        %v2145 = vadd.f32 0.0, %v2144
        %v2146 = vpop.f32.mrf.mxu0
        %v2147 = vpop.f32.mrf.mxu0
        %v2148 = vadd.f32 0.0, %v2147
        %v2149 = vpop.f32.mrf.mxu0
        %2150 = vmatprep.mubr.bf16.mxu0 0
        %2151 = vmatmul.mubr.bf16.gmra.mxu0 %v2058
        %v2152 = vpop.f32.mrf.mxu0
        %v2153 = vadd.f32 0.0, %v2152
        %v2154 = vpop.f32.mrf.mxu0
        %v2155 = vpop.f32.mrf.mxu0
        %v2156 = vadd.f32 0.0, %v2155
        %v2157 = vpop.f32.mrf.mxu0
        %2158 = vmatprep.mubr.bf16.mxu0 0
        %2159 = vmatmul.mubr.bf16.gmra.mxu0 %v2061
        %v2160 = vpop.f32.mrf.mxu0
        %v2161 = vadd.f32 0.0, %v2160
        %v2162 = vpop.f32.mrf.mxu0
        %v2163 = vpop.f32.mrf.mxu0
        %v2164 = vadd.f32 0.0, %v2163
        %v2165 = vpop.f32.mrf.mxu0
        %2166 = vmatprep.mubr.bf16.mxu0 0
        %2167 = vmatmul.mubr.bf16.gmra.mxu0 %v2064
        %v2168 = vpop.f32.mrf.mxu0
        %v2169 = vadd.f32 0.0, %v2168
        %v2170 = vpop.f32.mrf.mxu0
        %v2171 = vpop.f32.mrf.mxu0
        %v2172 = vadd.f32 0.0, %v2171
        %v2173 = vpop.f32.mrf.mxu0
        %2174 = vmatprep.mubr.bf16.mxu0 0
        %2175 = vmatmul.mubr.bf16.gmra.mxu0 %v2067
        %v2176 = vpop.f32.mrf.mxu0
        %v2177 = vadd.f32 0.0, %v2176
        %v2178 = vpop.f32.mrf.mxu0
        %v2179 = vpop.f32.mrf.mxu0
        %v2180 = vadd.f32 0.0, %v2179
        %v2181 = vpop.f32.mrf.mxu0
        %2182 = vmatprep.mubr.bf16.mxu0 0
        %2183 = vmatmul.mubr.bf16.gmra.mxu0 %v2070
        %v2184 = vpop.f32.mrf.mxu0
        %v2185 = vadd.f32 0.0, %v2184
        %v2186 = vpop.f32.mrf.mxu0
        %v2187 = vpop.f32.mrf.mxu0
        %v2188 = vadd.f32 0.0, %v2187
        %v2189 = vpop.f32.mrf.mxu0
        %2190 = vmatprep.mubr.bf16.mxu0 0
        %2191 = vmatmul.mubr.bf16.gmra.mxu0 %v2073
        %v2192 = vpop.f32.mrf.mxu0
        %v2193 = vadd.f32 0.0, %v2192
        %v2194 = vpop.f32.mrf.mxu0
        %v2195 = vpop.f32.mrf.mxu0
        %v2196 = vadd.f32 0.0, %v2195
        %v2197 = vpop.f32.mrf.mxu0
        %2198 = vmatprep.mubr.bf16.mxu0 0
        %2199 = vmatmul.mubr.bf16.gmra.mxu0 %v2076
        %v2200 = vpop.f32.mrf.mxu0
        %v2201 = vadd.f32 0.0, %v2200
        %v2202 = vpop.f32.mrf.mxu0
        %v2203 = vpop.f32.mrf.mxu0
        %v2204 = vadd.f32 0.0, %v2203
        %v2205 = vpop.f32.mrf.mxu0
        %2206 = vmatprep.mubr.bf16.mxu0 0
        %2207 = vmatmul.mubr.bf16.gmra.mxu0 %v2079
        %v2208 = vpop.f32.mrf.mxu0
        %v2209 = vadd.f32 0.0, %v2208
        %v2210 = vpop.f32.mrf.mxu0
        %v2211 = vpop.f32.mrf.mxu0
        %v2212 = vadd.f32 0.0, %v2211
        %v2213 = vpop.f32.mrf.mxu0
        %2214 = vmatprep.mubr.bf16.mxu0 0
        %2215 = vmatmul.mubr.bf16.gmra.mxu0 %v2082
        %v2216 = vpop.f32.mrf.mxu0
        %v2217 = vadd.f32 0.0, %v2216
        %v2218 = vpop.f32.mrf.mxu0
        %v2219 = vpop.f32.mrf.mxu0
        %v2220 = vadd.f32 0.0, %v2219
        %v2221 = vpop.f32.mrf.mxu0
        %2222 = vmatprep.mubr.bf16.mxu0 0
        %2223 = vmatmul.mubr.bf16.gmra.mxu0 %v2085
        %v2224 = vpop.f32.mrf.mxu0
        %v2225 = vadd.f32 0.0, %v2224
        %v2226 = vpop.f32.mrf.mxu0
        %v2227 = vpop.f32.mrf.mxu0
        %v2228 = vadd.f32 0.0, %v2227
        %v2229 = vpop.f32.mrf.mxu0
        %2230 = vmatprep.mubr.bf16.mxu0 0
        %2231 = vmatmul.mubr.bf16.gmra.mxu0 %v2088
        %v2232 = vpop.f32.mrf.mxu0
        %v2233 = vadd.f32 0.0, %v2232
        %v2234 = vpop.f32.mrf.mxu0
        %v2235 = vpop.f32.mrf.mxu0
        %v2236 = vadd.f32 0.0, %v2235
        %v2237 = vpop.f32.mrf.mxu0
        %2238 = vmatprep.mubr.bf16.mxu0 0
        %2239 = vmatmul.mubr.bf16.gmra.mxu0 %v2091
        %v2240 = vpop.f32.mrf.mxu0
        %v2241 = vadd.f32 0.0, %v2240
        %v2242 = vpop.f32.mrf.mxu0
        %v2243 = vpop.f32.mrf.mxu0
        %v2244 = vadd.f32 0.0, %v2243
        %v2245 = vpop.f32.mrf.mxu0
        %2246 = vmatprep.mubr.bf16.mxu0 0
        %2247 = vmatmul.mubr.bf16.gmra.mxu0 %v2094
        %v2248 = vpop.f32.mrf.mxu0
        %v2249 = vadd.f32 0.0, %v2248
        %v2250 = vpop.f32.mrf.mxu0
        %v2251 = vpop.f32.mrf.mxu0
        %v2252 = vadd.f32 0.0, %v2251
        %v2253 = vpop.f32.mrf.mxu0
        %2254 = vmatprep.mubr.bf16.mxu0 0
        %2255 = vmatmul.mubr.bf16.gmra.mxu0 %v2097
        %v2256 = vpop.f32.mrf.mxu0
        %v2257 = vadd.f32 0.0, %v2256
        %v2258 = vpop.f32.mrf.mxu0
        %v2259 = vpop.f32.mrf.mxu0
        %v2260 = vadd.f32 0.0, %v2259
        %v2261 = vpop.f32.mrf.mxu0
        %2262 = vdwg.mxu0
        %v2263 = vld [vmem:[#allocation2] sm:$0xff]
        %v2264 = vld [vmem:[#allocation2 + $0x8] sm:$0xff]
        %v2265 = vld [vmem:[#allocation2 + $0x10] sm:$0xff]
        %v2266 = vld [vmem:[#allocation2 + $0x18] sm:$0xff]
        %v2267 = vld [vmem:[#allocation2 + $0x20] sm:$0xff]
        %v2268 = vld [vmem:[#allocation2 + $0x28] sm:$0xff]
        %v2269 = vld [vmem:[#allocation2 + $0x30] sm:$0xff]
        %v2270 = vld [vmem:[#allocation2 + $0x38] sm:$0xff]
        %v2271 = vld [vmem:[#allocation2 + $0x40] sm:$0xff]
        %v2272 = vld [vmem:[#allocation2 + $0x48] sm:$0xff]
        %v2273 = vld [vmem:[#allocation2 + $0x50] sm:$0xff]
        %v2274 = vld [vmem:[#allocation2 + $0x58] sm:$0xff]
        %v2275 = vld [vmem:[#allocation2 + $0x60] sm:$0xff]
        %v2276 = vld [vmem:[#allocation2 + $0x68] sm:$0xff]
        %v2277 = vld [vmem:[#allocation2 + $0x70] sm:$0xff]
        %v2278 = vld [vmem:[#allocation2 + $0x78] sm:$0xff]
        %v2279 = vld [vmem:[#allocation2 + $0x80] sm:$0xff]
        %v2280 = vld [vmem:[#allocation2 + $0x88] sm:$0xff]
        %v2281 = vld [vmem:[#allocation2 + $0x90] sm:$0xff]
        %v2282 = vld [vmem:[#allocation2 + $0x98] sm:$0xff]
        %v2283 = vld [vmem:[#allocation2 + $0xa0] sm:$0xff]
        %v2284 = vld [vmem:[#allocation2 + $0xa8] sm:$0xff]
        %v2285 = vld [vmem:[#allocation2 + $0xb0] sm:$0xff]
        %v2286 = vld [vmem:[#allocation2 + $0xb8] sm:$0xff]
        %v2287 = vld [vmem:[#allocation2 + $0xc0] sm:$0xff]
        %v2288 = vld [vmem:[#allocation2 + $0xc8] sm:$0xff]
        %v2289 = vld [vmem:[#allocation2 + $0xd0] sm:$0xff]
        %v2290 = vld [vmem:[#allocation2 + $0xd8] sm:$0xff]
        %v2291 = vld [vmem:[#allocation2 + $0xe0] sm:$0xff]
        %v2292 = vld [vmem:[#allocation2 + $0xe8] sm:$0xff]
        %v2293 = vld [vmem:[#allocation2 + $0xf0] sm:$0xff]
        %v2294 = vld [vmem:[#allocation2 + $0xf8] sm:$0xff]
        %v2295 = vadd.f32 %v2263, %v2137
        %v2296 = vadd.f32 %v2264, %v2140
        %v2297 = vadd.f32 %v2265, %v2145
        %v2298 = vadd.f32 %v2266, %v2148
        %v2299 = vadd.f32 %v2267, %v2153
        %v2300 = vadd.f32 %v2268, %v2156
        %v2301 = vadd.f32 %v2269, %v2161
        %v2302 = vadd.f32 %v2270, %v2164
        %v2303 = vadd.f32 %v2271, %v2169
        %v2304 = vadd.f32 %v2272, %v2172
        %v2305 = vadd.f32 %v2273, %v2177
        %v2306 = vadd.f32 %v2274, %v2180
        %v2307 = vadd.f32 %v2275, %v2185
        %v2308 = vadd.f32 %v2276, %v2188
        %v2309 = vadd.f32 %v2277, %v2193
        %v2310 = vadd.f32 %v2278, %v2196
        %v2311 = vadd.f32 %v2279, %v2201
        %v2312 = vadd.f32 %v2280, %v2204
        %v2313 = vadd.f32 %v2281, %v2209
        %v2314 = vadd.f32 %v2282, %v2212
        %v2315 = vadd.f32 %v2283, %v2217
        %v2316 = vadd.f32 %v2284, %v2220
        %v2317 = vadd.f32 %v2285, %v2225
        %v2318 = vadd.f32 %v2286, %v2228
        %v2319 = vadd.f32 %v2287, %v2233
        %v2320 = vadd.f32 %v2288, %v2236
        %v2321 = vadd.f32 %v2289, %v2241
        %v2322 = vadd.f32 %v2290, %v2244
        %v2323 = vadd.f32 %v2291, %v2249
        %v2324 = vadd.f32 %v2292, %v2252
        %v2325 = vadd.f32 %v2293, %v2257
        %v2326 = vadd.f32 %v2294, %v2260
        %2327 = vst [vmem:[#allocation2] sm:$0xff] %v2295
        %2328 = vst [vmem:[#allocation2 + $0x8] sm:$0xff] %v2296
        %2329 = vst [vmem:[#allocation2 + $0x10] sm:$0xff] %v2297
        %2330 = vst [vmem:[#allocation2 + $0x18] sm:$0xff] %v2298
        %2331 = vst [vmem:[#allocation2 + $0x20] sm:$0xff] %v2299
        %2332 = vst [vmem:[#allocation2 + $0x28] sm:$0xff] %v2300
        %2333 = vst [vmem:[#allocation2 + $0x30] sm:$0xff] %v2301
        %2334 = vst [vmem:[#allocation2 + $0x38] sm:$0xff] %v2302
        %2335 = vst [vmem:[#allocation2 + $0x40] sm:$0xff] %v2303
        %2336 = vst [vmem:[#allocation2 + $0x48] sm:$0xff] %v2304
        %2337 = vst [vmem:[#allocation2 + $0x50] sm:$0xff] %v2305
        %2338 = vst [vmem:[#allocation2 + $0x58] sm:$0xff] %v2306
        %2339 = vst [vmem:[#allocation2 + $0x60] sm:$0xff] %v2307
        %2340 = vst [vmem:[#allocation2 + $0x68] sm:$0xff] %v2308
        %2341 = vst [vmem:[#allocation2 + $0x70] sm:$0xff] %v2309
        %2342 = vst [vmem:[#allocation2 + $0x78] sm:$0xff] %v2310
        %2343 = vst [vmem:[#allocation2 + $0x80] sm:$0xff] %v2311
        %2344 = vst [vmem:[#allocation2 + $0x88] sm:$0xff] %v2312
        %2345 = vst [vmem:[#allocation2 + $0x90] sm:$0xff] %v2313
        %2346 = vst [vmem:[#allocation2 + $0x98] sm:$0xff] %v2314
        %2347 = vst [vmem:[#allocation2 + $0xa0] sm:$0xff] %v2315
        %2348 = vst [vmem:[#allocation2 + $0xa8] sm:$0xff] %v2316
        %2349 = vst [vmem:[#allocation2 + $0xb0] sm:$0xff] %v2317
        %2350 = vst [vmem:[#allocation2 + $0xb8] sm:$0xff] %v2318
        %2351 = vst [vmem:[#allocation2 + $0xc0] sm:$0xff] %v2319
        %2352 = vst [vmem:[#allocation2 + $0xc8] sm:$0xff] %v2320
        %2353 = vst [vmem:[#allocation2 + $0xd0] sm:$0xff] %v2321
        %2354 = vst [vmem:[#allocation2 + $0xd8] sm:$0xff] %v2322
        %2355 = vst [vmem:[#allocation2 + $0xe0] sm:$0xff] %v2323
        %2356 = vst [vmem:[#allocation2 + $0xe8] sm:$0xff] %v2324
        %2357 = vst [vmem:[#allocation2 + $0xf0] sm:$0xff] %v2325
        %2358 = vst [vmem:[#allocation2 + $0xf8] sm:$0xff] %v2326
        %v2359 = vld [vmem:[%s1936] sm:$0xf]
        %v2360 = vld [vmem:[%s1936 + $0x4] sm:$0xf]
        %v2361 = vld [vmem:[%s1936 + $0x8] sm:$0x1]
        %v2362 = vld [vmem:[%s1936 + $0xc] sm:$0xf]
        %v2363 = vld [vmem:[%s1936 + $0x10] sm:$0xf]
        %v2364 = vld [vmem:[%s1936 + $0x14] sm:$0x1]
        %v2365 = vld [vmem:[%s1936 + $0x18] sm:$0xf]
        %v2366 = vld [vmem:[%s1936 + $0x1c] sm:$0xf]
        %v2367 = vld [vmem:[%s1936 + $0x20] sm:$0x1]
        %v2368 = vld [vmem:[%s1936 + $0x24] sm:$0xf]
        %v2369 = vld [vmem:[%s1936 + $0x28] sm:$0xf]
        %v2370 = vld [vmem:[%s1936 + $0x2c] sm:$0x1]
        %v2371 = vld [vmem:[%s1936 + $0x30] sm:$0xf]
        %v2372 = vld [vmem:[%s1936 + $0x34] sm:$0xf]
        %v2373 = vld [vmem:[%s1936 + $0x38] sm:$0x1]
        %v2374 = vld [vmem:[%s1936 + $0x3c] sm:$0xf]
        %v2375 = vld [vmem:[%s1936 + $0x40] sm:$0xf]
        %v2376 = vld [vmem:[%s1936 + $0x44] sm:$0x1]
        %v2377 = vld [vmem:[%s1936 + $0x48] sm:$0xf]
        %v2378 = vld [vmem:[%s1936 + $0x4c] sm:$0xf]
        %v2379 = vld [vmem:[%s1936 + $0x50] sm:$0x1]
        %v2380 = vld [vmem:[%s1936 + $0x54] sm:$0xf]
        %v2381 = vld [vmem:[%s1936 + $0x58] sm:$0xf]
        %v2382 = vld [vmem:[%s1936 + $0x5c] sm:$0x1]
        %v2383 = vld [vmem:[%s1936 + $0x60] sm:$0xf]
        %v2384 = vld [vmem:[%s1936 + $0x64] sm:$0xf]
        %v2385 = vld [vmem:[%s1936 + $0x68] sm:$0x1]
        %v2386 = vld [vmem:[%s1936 + $0x6c] sm:$0xf]
        %v2387 = vld [vmem:[%s1936 + $0x70] sm:$0xf]
        %v2388 = vld [vmem:[%s1936 + $0x74] sm:$0x1]
        %v2389 = vld [vmem:[%s1936 + $0x78] sm:$0xf]
        %v2390 = vld [vmem:[%s1936 + $0x7c] sm:$0xf]
        %v2391 = vld [vmem:[%s1936 + $0x80] sm:$0x1]
        %v2392 = vld [vmem:[%s1936 + $0x84] sm:$0xf]
        %v2393 = vld [vmem:[%s1936 + $0x88] sm:$0xf]
        %v2394 = vld [vmem:[%s1936 + $0x8c] sm:$0x1]
        %v2395 = vld [vmem:[%s1936 + $0x90] sm:$0xf]
        %v2396 = vld [vmem:[%s1936 + $0x94] sm:$0xf]
        %v2397 = vld [vmem:[%s1936 + $0x98] sm:$0x1]
        %v2398 = vld [vmem:[%s1936 + $0x9c] sm:$0xf]
        %v2399 = vld [vmem:[%s1936 + $0xa0] sm:$0xf]
        %v2400 = vld [vmem:[%s1936 + $0xa4] sm:$0x1]
        %v2401 = vld [vmem:[%s1936 + $0xa8] sm:$0xf]
        %v2402 = vld [vmem:[%s1936 + $0xac] sm:$0xf]
        %v2403 = vld [vmem:[%s1936 + $0xb0] sm:$0x1]
        %v2404 = vld [vmem:[%s1936 + $0xb4] sm:$0xf]
        %v2405 = vld [vmem:[%s1936 + $0xb8] sm:$0xf]
        %v2406 = vld [vmem:[%s1936 + $0xbc] sm:$0x1]
        %v2408 = vshrl.u32 %v2359, 16
        %v2410 = vrot.slane %v2408, 4
        %v2411 = vshll.u32 %v2359, 16
        %v2413 = vrot.slane %v2411, 5
        %v2414 = vor.u32 %v2410, %v2413
        %v2415 = vrot.slane %v2414, 4
        %v2417 = vshll.u32 %v2360, 16
        %v2419 = vrot.slane %v2417, 5
        %v2420 = vsel %vm624, %v2415, %v2419
        %v2421 = vshrl.u32 %v2360, 16
        %v2423 = vrot.slane %v2421, 4
        %v2424 = vor.u32 %v2423, %v2419
        %v2425 = vrot.slane %v2424, 4
        %v2427 = vshll.u32 %v2361, 16
        %v2429 = vrot.slane %v2427, 5
        %v2430 = vsel %vm624, %v2425, %v2429
        %v2432 = vshrl.u32 %v2362, 16
        %v2434 = vrot.slane %v2432, 4
        %v2435 = vshll.u32 %v2362, 16
        %v2437 = vrot.slane %v2435, 5
        %v2438 = vor.u32 %v2434, %v2437
        %v2439 = vrot.slane %v2438, 4
        %v2441 = vshll.u32 %v2363, 16
        %v2443 = vrot.slane %v2441, 5
        %v2444 = vsel %vm624, %v2439, %v2443
        %v2445 = vshrl.u32 %v2363, 16
        %v2447 = vrot.slane %v2445, 4
        %v2448 = vor.u32 %v2447, %v2443
        %v2449 = vrot.slane %v2448, 4
        %v2451 = vshll.u32 %v2364, 16
        %v2453 = vrot.slane %v2451, 5
        %v2454 = vsel %vm624, %v2449, %v2453
        %v2456 = vshrl.u32 %v2365, 16
        %v2458 = vrot.slane %v2456, 4
        %v2459 = vshll.u32 %v2365, 16
        %v2461 = vrot.slane %v2459, 5
        %v2462 = vor.u32 %v2458, %v2461
        %v2463 = vrot.slane %v2462, 4
        %v2465 = vshll.u32 %v2366, 16
        %v2467 = vrot.slane %v2465, 5
        %v2468 = vsel %vm624, %v2463, %v2467
        %v2469 = vshrl.u32 %v2366, 16
        %v2471 = vrot.slane %v2469, 4
        %v2472 = vor.u32 %v2471, %v2467
        %v2473 = vrot.slane %v2472, 4
        %v2475 = vshll.u32 %v2367, 16
        %v2477 = vrot.slane %v2475, 5
        %v2478 = vsel %vm624, %v2473, %v2477
        %v2480 = vshrl.u32 %v2368, 16
        %v2482 = vrot.slane %v2480, 4
        %v2483 = vshll.u32 %v2368, 16
        %v2485 = vrot.slane %v2483, 5
        %v2486 = vor.u32 %v2482, %v2485
        %v2487 = vrot.slane %v2486, 4
        %v2489 = vshll.u32 %v2369, 16
        %v2491 = vrot.slane %v2489, 5
        %v2492 = vsel %vm624, %v2487, %v2491
        %v2493 = vshrl.u32 %v2369, 16
        %v2495 = vrot.slane %v2493, 4
        %v2496 = vor.u32 %v2495, %v2491
        %v2497 = vrot.slane %v2496, 4
        %v2499 = vshll.u32 %v2370, 16
        %v2501 = vrot.slane %v2499, 5
        %v2502 = vsel %vm624, %v2497, %v2501
        %v2504 = vshrl.u32 %v2371, 16
        %v2506 = vrot.slane %v2504, 4
        %v2507 = vshll.u32 %v2371, 16
        %v2509 = vrot.slane %v2507, 5
        %v2510 = vor.u32 %v2506, %v2509
        %v2511 = vrot.slane %v2510, 4
        %v2513 = vshll.u32 %v2372, 16
        %v2515 = vrot.slane %v2513, 5
        %v2516 = vsel %vm624, %v2511, %v2515
        %v2517 = vshrl.u32 %v2372, 16
        %v2519 = vrot.slane %v2517, 4
        %v2520 = vor.u32 %v2519, %v2515
        %v2521 = vrot.slane %v2520, 4
        %v2523 = vshll.u32 %v2373, 16
        %v2525 = vrot.slane %v2523, 5
        %v2526 = vsel %vm624, %v2521, %v2525
        %v2528 = vshrl.u32 %v2374, 16
        %v2530 = vrot.slane %v2528, 4
        %v2531 = vshll.u32 %v2374, 16
        %v2533 = vrot.slane %v2531, 5
        %v2534 = vor.u32 %v2530, %v2533
        %v2535 = vrot.slane %v2534, 4
        %v2537 = vshll.u32 %v2375, 16
        %v2539 = vrot.slane %v2537, 5
        %v2540 = vsel %vm624, %v2535, %v2539
        %v2541 = vshrl.u32 %v2375, 16
        %v2543 = vrot.slane %v2541, 4
        %v2544 = vor.u32 %v2543, %v2539
        %v2545 = vrot.slane %v2544, 4
        %v2547 = vshll.u32 %v2376, 16
        %v2549 = vrot.slane %v2547, 5
        %v2550 = vsel %vm624, %v2545, %v2549
        %v2552 = vshrl.u32 %v2377, 16
        %v2554 = vrot.slane %v2552, 4
        %v2555 = vshll.u32 %v2377, 16
        %v2557 = vrot.slane %v2555, 5
        %v2558 = vor.u32 %v2554, %v2557
        %v2559 = vrot.slane %v2558, 4
        %v2561 = vshll.u32 %v2378, 16
        %v2563 = vrot.slane %v2561, 5
        %v2564 = vsel %vm624, %v2559, %v2563
        %v2565 = vshrl.u32 %v2378, 16
        %v2567 = vrot.slane %v2565, 4
        %v2568 = vor.u32 %v2567, %v2563
        %v2569 = vrot.slane %v2568, 4
        %v2571 = vshll.u32 %v2379, 16
        %v2573 = vrot.slane %v2571, 5
        %v2574 = vsel %vm624, %v2569, %v2573
        %v2576 = vshrl.u32 %v2380, 16
        %v2578 = vrot.slane %v2576, 4
        %v2579 = vshll.u32 %v2380, 16
        %v2581 = vrot.slane %v2579, 5
        %v2582 = vor.u32 %v2578, %v2581
        %v2583 = vrot.slane %v2582, 4
        %v2585 = vshll.u32 %v2381, 16
        %v2587 = vrot.slane %v2585, 5
        %v2588 = vsel %vm624, %v2583, %v2587
        %v2589 = vshrl.u32 %v2381, 16
        %v2591 = vrot.slane %v2589, 4
        %v2592 = vor.u32 %v2591, %v2587
        %v2593 = vrot.slane %v2592, 4
        %v2595 = vshll.u32 %v2382, 16
        %v2597 = vrot.slane %v2595, 5
        %v2598 = vsel %vm624, %v2593, %v2597
        %v2600 = vshrl.u32 %v2383, 16
        %v2602 = vrot.slane %v2600, 4
        %v2603 = vshll.u32 %v2383, 16
        %v2605 = vrot.slane %v2603, 5
        %v2606 = vor.u32 %v2602, %v2605
        %v2607 = vrot.slane %v2606, 4
        %v2609 = vshll.u32 %v2384, 16
        %v2611 = vrot.slane %v2609, 5
        %v2612 = vsel %vm624, %v2607, %v2611
        %v2613 = vshrl.u32 %v2384, 16
        %v2615 = vrot.slane %v2613, 4
        %v2616 = vor.u32 %v2615, %v2611
        %v2617 = vrot.slane %v2616, 4
        %v2619 = vshll.u32 %v2385, 16
        %v2621 = vrot.slane %v2619, 5
        %v2622 = vsel %vm624, %v2617, %v2621
        %v2624 = vshrl.u32 %v2386, 16
        %v2626 = vrot.slane %v2624, 4
        %v2627 = vshll.u32 %v2386, 16
        %v2629 = vrot.slane %v2627, 5
        %v2630 = vor.u32 %v2626, %v2629
        %v2631 = vrot.slane %v2630, 4
        %v2633 = vshll.u32 %v2387, 16
        %v2635 = vrot.slane %v2633, 5
        %v2636 = vsel %vm624, %v2631, %v2635
        %v2637 = vshrl.u32 %v2387, 16
        %v2639 = vrot.slane %v2637, 4
        %v2640 = vor.u32 %v2639, %v2635
        %v2641 = vrot.slane %v2640, 4
        %v2643 = vshll.u32 %v2388, 16
        %v2645 = vrot.slane %v2643, 5
        %v2646 = vsel %vm624, %v2641, %v2645
        %v2648 = vshrl.u32 %v2389, 16
        %v2650 = vrot.slane %v2648, 4
        %v2651 = vshll.u32 %v2389, 16
        %v2653 = vrot.slane %v2651, 5
        %v2654 = vor.u32 %v2650, %v2653
        %v2655 = vrot.slane %v2654, 4
        %v2657 = vshll.u32 %v2390, 16
        %v2659 = vrot.slane %v2657, 5
        %v2660 = vsel %vm624, %v2655, %v2659
        %v2661 = vshrl.u32 %v2390, 16
        %v2663 = vrot.slane %v2661, 4
        %v2664 = vor.u32 %v2663, %v2659
        %v2665 = vrot.slane %v2664, 4
        %v2667 = vshll.u32 %v2391, 16
        %v2669 = vrot.slane %v2667, 5
        %v2670 = vsel %vm624, %v2665, %v2669
        %v2672 = vshrl.u32 %v2392, 16
        %v2674 = vrot.slane %v2672, 4
        %v2675 = vshll.u32 %v2392, 16
        %v2677 = vrot.slane %v2675, 5
        %v2678 = vor.u32 %v2674, %v2677
        %v2679 = vrot.slane %v2678, 4
        %v2681 = vshll.u32 %v2393, 16
        %v2683 = vrot.slane %v2681, 5
        %v2684 = vsel %vm624, %v2679, %v2683
        %v2685 = vshrl.u32 %v2393, 16
        %v2687 = vrot.slane %v2685, 4
        %v2688 = vor.u32 %v2687, %v2683
        %v2689 = vrot.slane %v2688, 4
        %v2691 = vshll.u32 %v2394, 16
        %v2693 = vrot.slane %v2691, 5
        %v2694 = vsel %vm624, %v2689, %v2693
        %v2696 = vshrl.u32 %v2395, 16
        %v2698 = vrot.slane %v2696, 4
        %v2699 = vshll.u32 %v2395, 16
        %v2701 = vrot.slane %v2699, 5
        %v2702 = vor.u32 %v2698, %v2701
        %v2703 = vrot.slane %v2702, 4
        %v2705 = vshll.u32 %v2396, 16
        %v2707 = vrot.slane %v2705, 5
        %v2708 = vsel %vm624, %v2703, %v2707
        %v2709 = vshrl.u32 %v2396, 16
        %v2711 = vrot.slane %v2709, 4
        %v2712 = vor.u32 %v2711, %v2707
        %v2713 = vrot.slane %v2712, 4
        %v2715 = vshll.u32 %v2397, 16
        %v2717 = vrot.slane %v2715, 5
        %v2718 = vsel %vm624, %v2713, %v2717
        %v2720 = vshrl.u32 %v2398, 16
        %v2722 = vrot.slane %v2720, 4
        %v2723 = vshll.u32 %v2398, 16
        %v2725 = vrot.slane %v2723, 5
        %v2726 = vor.u32 %v2722, %v2725
        %v2727 = vrot.slane %v2726, 4
        %v2729 = vshll.u32 %v2399, 16
        %v2731 = vrot.slane %v2729, 5
        %v2732 = vsel %vm624, %v2727, %v2731
        %v2733 = vshrl.u32 %v2399, 16
        %v2735 = vrot.slane %v2733, 4
        %v2736 = vor.u32 %v2735, %v2731
        %v2737 = vrot.slane %v2736, 4
        %v2739 = vshll.u32 %v2400, 16
        %v2741 = vrot.slane %v2739, 5
        %v2742 = vsel %vm624, %v2737, %v2741
        %v2744 = vshrl.u32 %v2401, 16
        %v2746 = vrot.slane %v2744, 4
        %v2747 = vshll.u32 %v2401, 16
        %v2749 = vrot.slane %v2747, 5
        %v2750 = vor.u32 %v2746, %v2749
        %v2751 = vrot.slane %v2750, 4
        %v2753 = vshll.u32 %v2402, 16
        %v2755 = vrot.slane %v2753, 5
        %v2756 = vsel %vm624, %v2751, %v2755
        %v2757 = vshrl.u32 %v2402, 16
        %v2759 = vrot.slane %v2757, 4
        %v2760 = vor.u32 %v2759, %v2755
        %v2761 = vrot.slane %v2760, 4
        %v2763 = vshll.u32 %v2403, 16
        %v2765 = vrot.slane %v2763, 5
        %v2766 = vsel %vm624, %v2761, %v2765
        %v2768 = vshrl.u32 %v2404, 16
        %v2770 = vrot.slane %v2768, 4
        %v2771 = vshll.u32 %v2404, 16
        %v2773 = vrot.slane %v2771, 5
        %v2774 = vor.u32 %v2770, %v2773
        %v2775 = vrot.slane %v2774, 4
        %v2777 = vshll.u32 %v2405, 16
        %v2779 = vrot.slane %v2777, 5
        %v2780 = vsel %vm624, %v2775, %v2779
        %v2781 = vshrl.u32 %v2405, 16
        %v2783 = vrot.slane %v2781, 4
        %v2784 = vor.u32 %v2783, %v2779
        %v2785 = vrot.slane %v2784, 4
        %v2787 = vshll.u32 %v2406, 16
        %v2789 = vrot.slane %v2787, 5
        %v2790 = vsel %vm624, %v2785, %v2789
        %s2791 = scalar_lea.vmem %s210, 8
        %v2792 = vld [vmem:[%s2791] sm:$0x3]
        %v2793 = vunpack.c.l.b16 %v2420
        %v2794 = vunpack.c.l.b16 %v2430
        %v2795 = vunpack.c.l.b16 %v2444
        %v2796 = vunpack.c.l.b16 %v2454
        %v2797 = vunpack.c.l.b16 %v2468
        %v2798 = vunpack.c.l.b16 %v2478
        %v2799 = vunpack.c.l.b16 %v2492
        %v2800 = vunpack.c.l.b16 %v2502
        %v2801 = vunpack.c.l.b16 %v2516
        %v2802 = vunpack.c.l.b16 %v2526
        %v2803 = vunpack.c.l.b16 %v2540
        %v2804 = vunpack.c.l.b16 %v2550
        %v2805 = vunpack.c.l.b16 %v2564
        %v2806 = vunpack.c.l.b16 %v2574
        %v2807 = vunpack.c.l.b16 %v2588
        %v2808 = vunpack.c.l.b16 %v2598
        %v2809 = vunpack.c.l.b16 %v2612
        %v2810 = vunpack.c.l.b16 %v2622
        %v2811 = vunpack.c.l.b16 %v2636
        %v2812 = vunpack.c.l.b16 %v2646
        %v2813 = vunpack.c.l.b16 %v2660
        %v2814 = vunpack.c.l.b16 %v2670
        %v2815 = vunpack.c.l.b16 %v2684
        %v2816 = vunpack.c.l.b16 %v2694
        %v2817 = vunpack.c.l.b16 %v2708
        %v2818 = vunpack.c.l.b16 %v2718
        %v2819 = vunpack.c.l.b16 %v2732
        %v2820 = vunpack.c.l.b16 %v2742
        %v2821 = vunpack.c.l.b16 %v2756
        %v2822 = vunpack.c.l.b16 %v2766
        %v2823 = vunpack.c.l.b16 %v2780
        %v2824 = vunpack.c.l.b16 %v2790
        %v2825 = vpack.c.b16 %v2794, %v2793
        %v2826 = vpack.c.b16 %v2796, %v2795
        %v2827 = vpack.c.b16 %v2798, %v2797
        %v2828 = vpack.c.b16 %v2800, %v2799
        %v2829 = vpack.c.b16 %v2802, %v2801
        %v2830 = vpack.c.b16 %v2804, %v2803
        %v2831 = vpack.c.b16 %v2806, %v2805
        %v2832 = vpack.c.b16 %v2808, %v2807
        %v2833 = vpack.c.b16 %v2810, %v2809
        %v2834 = vpack.c.b16 %v2812, %v2811
        %v2835 = vpack.c.b16 %v2814, %v2813
        %v2836 = vpack.c.b16 %v2816, %v2815
        %v2837 = vpack.c.b16 %v2818, %v2817
        %v2838 = vpack.c.b16 %v2820, %v2819
        %v2839 = vpack.c.b16 %v2822, %v2821
        %v2840 = vpack.c.b16 %v2824, %v2823
        %v2842 = vsel %vm328, %v2825, 0
        %v2845 = vsel %vm328, %v2826, 0
        %v2848 = vsel %vm328, %v2827, 0
        %v2851 = vsel %vm328, %v2828, 0
        %v2854 = vsel %vm328, %v2829, 0
        %v2857 = vsel %vm328, %v2830, 0
        %v2860 = vsel %vm328, %v2831, 0
        %v2863 = vsel %vm328, %v2832, 0
        %v2866 = vsel %vm328, %v2833, 0
        %v2869 = vsel %vm328, %v2834, 0
        %v2872 = vsel %vm328, %v2835, 0
        %v2875 = vsel %vm328, %v2836, 0
        %v2878 = vsel %vm328, %v2837, 0
        %v2881 = vsel %vm328, %v2838, 0
        %v2884 = vsel %vm328, %v2839, 0
        %v2887 = vsel %vm328, %v2840, 0
        %v2890 = vsel %vm377, %v2792, 0
        %2892 = vmatprep.subr.bf16.mxu0 0
        %2893 = vmatpush1.bf16.msra.mxu0 0
        %2894 = vmatprep.subr.bf16.mxu0 0
        %2895 = vmatpush1.bf16.msra.mxu0 0
        %2896 = vmatprep.subr.bf16.mxu0 0
        %2897 = vmatpush1.bf16.msra.mxu0 0
        %2898 = vmatprep.subr.bf16.mxu0 0
        %2899 = vmatpush1.bf16.msra.mxu0 0
        %2900 = vmatprep.subr.bf16.mxu0 0
        %2901 = vmatpush1.bf16.msra.mxu0 0
        %2902 = vmatprep.subr.bf16.mxu0 0
        %2903 = vmatpush1.bf16.msra.mxu0 0
        %2904 = vmatprep.subr.bf16.mxu0 0
        %2905 = vmatpush1.bf16.msra.mxu0 0
        %2906 = vmatprep.subr.bf16.mxu0 0
        %2907 = vmatpush1.bf16.msra.mxu0 %v2890
        %2908 = vmatprep.subr.bf16.mxu0 0
        %2909 = vmatpush2.bf16.msra.mxu0 0
        %2910 = vmatprep.subr.bf16.mxu0 0
        %2911 = vmatpush2.bf16.msra.mxu0 0
        %2912 = vmatprep.subr.bf16.mxu0 0
        %2913 = vmatpush2.bf16.msra.mxu0 0
        %2914 = vmatprep.subr.bf16.mxu0 0
        %2915 = vmatpush2.bf16.msra.mxu0 0
        %2916 = vmatprep.subr.bf16.mxu0 0
        %2917 = vmatpush2.bf16.msra.mxu0 0
        %2918 = vmatprep.subr.bf16.mxu0 0
        %2919 = vmatpush2.bf16.msra.mxu0 0
        %2920 = vmatprep.subr.bf16.mxu0 0
        %2921 = vmatpush2.bf16.msra.mxu0 0
        %2922 = vmatprep.subr.bf16.mxu0 0
        %2923 = vmatpush2.bf16.msra.mxu0 0
        %2924 = vmatprep.mubr.bf16.mxu0 0
        %2925 = vmatmul.mubr.bf16.gmra.mxu0 %v2842
        %v2926 = vpop.f32.mrf.mxu0
        %v2927 = vadd.f32 0.0, %v2926
        %v2928 = vpop.f32.mrf.mxu0
        %v2929 = vpop.f32.mrf.mxu0
        %v2930 = vadd.f32 0.0, %v2929
        %v2931 = vpop.f32.mrf.mxu0
        %2932 = vmatprep.mubr.bf16.mxu0 0
        %2933 = vmatmul.mubr.bf16.gmra.mxu0 %v2845
        %v2934 = vpop.f32.mrf.mxu0
        %v2935 = vadd.f32 0.0, %v2934
        %v2936 = vpop.f32.mrf.mxu0
        %v2937 = vpop.f32.mrf.mxu0
        %v2938 = vadd.f32 0.0, %v2937
        %v2939 = vpop.f32.mrf.mxu0
        %2940 = vmatprep.mubr.bf16.mxu0 0
        %2941 = vmatmul.mubr.bf16.gmra.mxu0 %v2848
        %v2942 = vpop.f32.mrf.mxu0
        %v2943 = vadd.f32 0.0, %v2942
        %v2944 = vpop.f32.mrf.mxu0
        %v2945 = vpop.f32.mrf.mxu0
        %v2946 = vadd.f32 0.0, %v2945
        %v2947 = vpop.f32.mrf.mxu0
        %2948 = vmatprep.mubr.bf16.mxu0 0
        %2949 = vmatmul.mubr.bf16.gmra.mxu0 %v2851
        %v2950 = vpop.f32.mrf.mxu0
        %v2951 = vadd.f32 0.0, %v2950
        %v2952 = vpop.f32.mrf.mxu0
        %v2953 = vpop.f32.mrf.mxu0
        %v2954 = vadd.f32 0.0, %v2953
        %v2955 = vpop.f32.mrf.mxu0
        %2956 = vmatprep.mubr.bf16.mxu0 0
        %2957 = vmatmul.mubr.bf16.gmra.mxu0 %v2854
        %v2958 = vpop.f32.mrf.mxu0
        %v2959 = vadd.f32 0.0, %v2958
        %v2960 = vpop.f32.mrf.mxu0
        %v2961 = vpop.f32.mrf.mxu0
        %v2962 = vadd.f32 0.0, %v2961
        %v2963 = vpop.f32.mrf.mxu0
        %2964 = vmatprep.mubr.bf16.mxu0 0
        %2965 = vmatmul.mubr.bf16.gmra.mxu0 %v2857
        %v2966 = vpop.f32.mrf.mxu0
        %v2967 = vadd.f32 0.0, %v2966
        %v2968 = vpop.f32.mrf.mxu0
        %v2969 = vpop.f32.mrf.mxu0
        %v2970 = vadd.f32 0.0, %v2969
        %v2971 = vpop.f32.mrf.mxu0
        %2972 = vmatprep.mubr.bf16.mxu0 0
        %2973 = vmatmul.mubr.bf16.gmra.mxu0 %v2860
        %v2974 = vpop.f32.mrf.mxu0
        %v2975 = vadd.f32 0.0, %v2974
        %v2976 = vpop.f32.mrf.mxu0
        %v2977 = vpop.f32.mrf.mxu0
        %v2978 = vadd.f32 0.0, %v2977
        %v2979 = vpop.f32.mrf.mxu0
        %2980 = vmatprep.mubr.bf16.mxu0 0
        %2981 = vmatmul.mubr.bf16.gmra.mxu0 %v2863
        %v2982 = vpop.f32.mrf.mxu0
        %v2983 = vadd.f32 0.0, %v2982
        %v2984 = vpop.f32.mrf.mxu0
        %v2985 = vpop.f32.mrf.mxu0
        %v2986 = vadd.f32 0.0, %v2985
        %v2987 = vpop.f32.mrf.mxu0
        %2988 = vmatprep.mubr.bf16.mxu0 0
        %2989 = vmatmul.mubr.bf16.gmra.mxu0 %v2866
        %v2990 = vpop.f32.mrf.mxu0
        %v2991 = vadd.f32 0.0, %v2990
        %v2992 = vpop.f32.mrf.mxu0
        %v2993 = vpop.f32.mrf.mxu0
        %v2994 = vadd.f32 0.0, %v2993
        %v2995 = vpop.f32.mrf.mxu0
        %2996 = vmatprep.mubr.bf16.mxu0 0
        %2997 = vmatmul.mubr.bf16.gmra.mxu0 %v2869
        %v2998 = vpop.f32.mrf.mxu0
        %v2999 = vadd.f32 0.0, %v2998
        %v3000 = vpop.f32.mrf.mxu0
        %v3001 = vpop.f32.mrf.mxu0
        %v3002 = vadd.f32 0.0, %v3001
        %v3003 = vpop.f32.mrf.mxu0
        %3004 = vmatprep.mubr.bf16.mxu0 0
        %3005 = vmatmul.mubr.bf16.gmra.mxu0 %v2872
        %v3006 = vpop.f32.mrf.mxu0
        %v3007 = vadd.f32 0.0, %v3006
        %v3008 = vpop.f32.mrf.mxu0
        %v3009 = vpop.f32.mrf.mxu0
        %v3010 = vadd.f32 0.0, %v3009
        %v3011 = vpop.f32.mrf.mxu0
        %3012 = vmatprep.mubr.bf16.mxu0 0
        %3013 = vmatmul.mubr.bf16.gmra.mxu0 %v2875
        %v3014 = vpop.f32.mrf.mxu0
        %v3015 = vadd.f32 0.0, %v3014
        %v3016 = vpop.f32.mrf.mxu0
        %v3017 = vpop.f32.mrf.mxu0
        %v3018 = vadd.f32 0.0, %v3017
        %v3019 = vpop.f32.mrf.mxu0
        %3020 = vmatprep.mubr.bf16.mxu0 0
        %3021 = vmatmul.mubr.bf16.gmra.mxu0 %v2878
        %v3022 = vpop.f32.mrf.mxu0
        %v3023 = vadd.f32 0.0, %v3022
        %v3024 = vpop.f32.mrf.mxu0
        %v3025 = vpop.f32.mrf.mxu0
        %v3026 = vadd.f32 0.0, %v3025
        %v3027 = vpop.f32.mrf.mxu0
        %3028 = vmatprep.mubr.bf16.mxu0 0
        %3029 = vmatmul.mubr.bf16.gmra.mxu0 %v2881
        %v3030 = vpop.f32.mrf.mxu0
        %v3031 = vadd.f32 0.0, %v3030
        %v3032 = vpop.f32.mrf.mxu0
        %v3033 = vpop.f32.mrf.mxu0
        %v3034 = vadd.f32 0.0, %v3033
        %v3035 = vpop.f32.mrf.mxu0
        %3036 = vmatprep.mubr.bf16.mxu0 0
        %3037 = vmatmul.mubr.bf16.gmra.mxu0 %v2884
        %v3038 = vpop.f32.mrf.mxu0
        %v3039 = vadd.f32 0.0, %v3038
        %v3040 = vpop.f32.mrf.mxu0
        %v3041 = vpop.f32.mrf.mxu0
        %v3042 = vadd.f32 0.0, %v3041
        %v3043 = vpop.f32.mrf.mxu0
        %3044 = vmatprep.mubr.bf16.mxu0 0
        %3045 = vmatmul.mubr.bf16.gmra.mxu0 %v2887
        %v3046 = vpop.f32.mrf.mxu0
        %v3047 = vadd.f32 0.0, %v3046
        %v3048 = vpop.f32.mrf.mxu0
        %v3049 = vpop.f32.mrf.mxu0
        %v3050 = vadd.f32 0.0, %v3049
        %v3051 = vpop.f32.mrf.mxu0
        %3052 = vdwg.mxu0
        %v3053 = vld [vmem:[#allocation2] sm:$0xff]
        %v3054 = vld [vmem:[#allocation2 + $0x8] sm:$0xff]
        %v3055 = vld [vmem:[#allocation2 + $0x10] sm:$0xff]
        %v3056 = vld [vmem:[#allocation2 + $0x18] sm:$0xff]
        %v3057 = vld [vmem:[#allocation2 + $0x20] sm:$0xff]
        %v3058 = vld [vmem:[#allocation2 + $0x28] sm:$0xff]
        %v3059 = vld [vmem:[#allocation2 + $0x30] sm:$0xff]
        %v3060 = vld [vmem:[#allocation2 + $0x38] sm:$0xff]
        %v3061 = vld [vmem:[#allocation2 + $0x40] sm:$0xff]
        %v3062 = vld [vmem:[#allocation2 + $0x48] sm:$0xff]
        %v3063 = vld [vmem:[#allocation2 + $0x50] sm:$0xff]
        %v3064 = vld [vmem:[#allocation2 + $0x58] sm:$0xff]
        %v3065 = vld [vmem:[#allocation2 + $0x60] sm:$0xff]
        %v3066 = vld [vmem:[#allocation2 + $0x68] sm:$0xff]
        %v3067 = vld [vmem:[#allocation2 + $0x70] sm:$0xff]
        %v3068 = vld [vmem:[#allocation2 + $0x78] sm:$0xff]
        %v3069 = vld [vmem:[#allocation2 + $0x80] sm:$0xff]
        %v3070 = vld [vmem:[#allocation2 + $0x88] sm:$0xff]
        %v3071 = vld [vmem:[#allocation2 + $0x90] sm:$0xff]
        %v3072 = vld [vmem:[#allocation2 + $0x98] sm:$0xff]
        %v3073 = vld [vmem:[#allocation2 + $0xa0] sm:$0xff]
        %v3074 = vld [vmem:[#allocation2 + $0xa8] sm:$0xff]
        %v3075 = vld [vmem:[#allocation2 + $0xb0] sm:$0xff]
        %v3076 = vld [vmem:[#allocation2 + $0xb8] sm:$0xff]
        %v3077 = vld [vmem:[#allocation2 + $0xc0] sm:$0xff]
        %v3078 = vld [vmem:[#allocation2 + $0xc8] sm:$0xff]
        %v3079 = vld [vmem:[#allocation2 + $0xd0] sm:$0xff]
        %v3080 = vld [vmem:[#allocation2 + $0xd8] sm:$0xff]
        %v3081 = vld [vmem:[#allocation2 + $0xe0] sm:$0xff]
        %v3082 = vld [vmem:[#allocation2 + $0xe8] sm:$0xff]
        %v3083 = vld [vmem:[#allocation2 + $0xf0] sm:$0xff]
        %v3084 = vld [vmem:[#allocation2 + $0xf8] sm:$0xff]
        %v3085 = vadd.f32 %v3053, %v2927
        %v3086 = vadd.f32 %v3054, %v2930
        %v3087 = vadd.f32 %v3055, %v2935
        %v3088 = vadd.f32 %v3056, %v2938
        %v3089 = vadd.f32 %v3057, %v2943
        %v3090 = vadd.f32 %v3058, %v2946
        %v3091 = vadd.f32 %v3059, %v2951
        %v3092 = vadd.f32 %v3060, %v2954
        %v3093 = vadd.f32 %v3061, %v2959
        %v3094 = vadd.f32 %v3062, %v2962
        %v3095 = vadd.f32 %v3063, %v2967
        %v3096 = vadd.f32 %v3064, %v2970
        %v3097 = vadd.f32 %v3065, %v2975
        %v3098 = vadd.f32 %v3066, %v2978
        %v3099 = vadd.f32 %v3067, %v2983
        %v3100 = vadd.f32 %v3068, %v2986
        %v3101 = vadd.f32 %v3069, %v2991
        %v3102 = vadd.f32 %v3070, %v2994
        %v3103 = vadd.f32 %v3071, %v2999
        %v3104 = vadd.f32 %v3072, %v3002
        %v3105 = vadd.f32 %v3073, %v3007
        %v3106 = vadd.f32 %v3074, %v3010
        %v3107 = vadd.f32 %v3075, %v3015
        %v3108 = vadd.f32 %v3076, %v3018
        %v3109 = vadd.f32 %v3077, %v3023
        %v3110 = vadd.f32 %v3078, %v3026
        %v3111 = vadd.f32 %v3079, %v3031
        %v3112 = vadd.f32 %v3080, %v3034
        %v3113 = vadd.f32 %v3081, %v3039
        %v3114 = vadd.f32 %v3082, %v3042
        %v3115 = vadd.f32 %v3083, %v3047
        %v3116 = vadd.f32 %v3084, %v3050
        %3117 = vst [vmem:[#allocation2] sm:$0xff] %v3085
        %3118 = vst [vmem:[#allocation2 + $0x8] sm:$0xff] %v3086
        %3119 = vst [vmem:[#allocation2 + $0x10] sm:$0xff] %v3087
        %3120 = vst [vmem:[#allocation2 + $0x18] sm:$0xff] %v3088
        %3121 = vst [vmem:[#allocation2 + $0x20] sm:$0xff] %v3089
        %3122 = vst [vmem:[#allocation2 + $0x28] sm:$0xff] %v3090
        %3123 = vst [vmem:[#allocation2 + $0x30] sm:$0xff] %v3091
        %3124 = vst [vmem:[#allocation2 + $0x38] sm:$0xff] %v3092
        %3125 = vst [vmem:[#allocation2 + $0x40] sm:$0xff] %v3093
        %3126 = vst [vmem:[#allocation2 + $0x48] sm:$0xff] %v3094
        %3127 = vst [vmem:[#allocation2 + $0x50] sm:$0xff] %v3095
        %3128 = vst [vmem:[#allocation2 + $0x58] sm:$0xff] %v3096
        %3129 = vst [vmem:[#allocation2 + $0x60] sm:$0xff] %v3097
        %3130 = vst [vmem:[#allocation2 + $0x68] sm:$0xff] %v3098
        %3131 = vst [vmem:[#allocation2 + $0x70] sm:$0xff] %v3099
        %3132 = vst [vmem:[#allocation2 + $0x78] sm:$0xff] %v3100
        %3133 = vst [vmem:[#allocation2 + $0x80] sm:$0xff] %v3101
        %3134 = vst [vmem:[#allocation2 + $0x88] sm:$0xff] %v3102
        %3135 = vst [vmem:[#allocation2 + $0x90] sm:$0xff] %v3103
        %3136 = vst [vmem:[#allocation2 + $0x98] sm:$0xff] %v3104
        %3137 = vst [vmem:[#allocation2 + $0xa0] sm:$0xff] %v3105
        %3138 = vst [vmem:[#allocation2 + $0xa8] sm:$0xff] %v3106
        %3139 = vst [vmem:[#allocation2 + $0xb0] sm:$0xff] %v3107
        %3140 = vst [vmem:[#allocation2 + $0xb8] sm:$0xff] %v3108
        %3141 = vst [vmem:[#allocation2 + $0xc0] sm:$0xff] %v3109
        %3142 = vst [vmem:[#allocation2 + $0xc8] sm:$0xff] %v3110
        %3143 = vst [vmem:[#allocation2 + $0xd0] sm:$0xff] %v3111
        %3144 = vst [vmem:[#allocation2 + $0xd8] sm:$0xff] %v3112
        %3145 = vst [vmem:[#allocation2 + $0xe0] sm:$0xff] %v3113
        %3146 = vst [vmem:[#allocation2 + $0xe8] sm:$0xff] %v3114
        %3147 = vst [vmem:[#allocation2 + $0xf0] sm:$0xff] %v3115
        %3148 = vst [vmem:[#allocation2 + $0xf8] sm:$0xff] %v3116
        %v3149 = vld [vmem:[%s1936] sm:$0xe]
        %v3150 = vld [vmem:[%s1936 + $0x4] sm:$0xf]
        %v3151 = vld [vmem:[%s1936 + $0x8] sm:$0x1]
        %v3152 = vld [vmem:[%s1936 + $0xc] sm:$0xe]
        %v3153 = vld [vmem:[%s1936 + $0x10] sm:$0xf]
        %v3154 = vld [vmem:[%s1936 + $0x14] sm:$0x1]
        %v3155 = vld [vmem:[%s1936 + $0x18] sm:$0xe]
        %v3156 = vld [vmem:[%s1936 + $0x1c] sm:$0xf]
        %v3157 = vld [vmem:[%s1936 + $0x20] sm:$0x1]
        %v3158 = vld [vmem:[%s1936 + $0x24] sm:$0xe]
        %v3159 = vld [vmem:[%s1936 + $0x28] sm:$0xf]
        %v3160 = vld [vmem:[%s1936 + $0x2c] sm:$0x1]
        %v3161 = vld [vmem:[%s1936 + $0x30] sm:$0xe]
        %v3162 = vld [vmem:[%s1936 + $0x34] sm:$0xf]
        %v3163 = vld [vmem:[%s1936 + $0x38] sm:$0x1]
        %v3164 = vld [vmem:[%s1936 + $0x3c] sm:$0xe]
        %v3165 = vld [vmem:[%s1936 + $0x40] sm:$0xf]
        %v3166 = vld [vmem:[%s1936 + $0x44] sm:$0x1]
        %v3167 = vld [vmem:[%s1936 + $0x48] sm:$0xe]
        %v3168 = vld [vmem:[%s1936 + $0x4c] sm:$0xf]
        %v3169 = vld [vmem:[%s1936 + $0x50] sm:$0x1]
        %v3170 = vld [vmem:[%s1936 + $0x54] sm:$0xe]
        %v3171 = vld [vmem:[%s1936 + $0x58] sm:$0xf]
        %v3172 = vld [vmem:[%s1936 + $0x5c] sm:$0x1]
        %v3173 = vld [vmem:[%s1936 + $0x60] sm:$0xe]
        %v3174 = vld [vmem:[%s1936 + $0x64] sm:$0xf]
        %v3175 = vld [vmem:[%s1936 + $0x68] sm:$0x1]
        %v3176 = vld [vmem:[%s1936 + $0x6c] sm:$0xe]
        %v3177 = vld [vmem:[%s1936 + $0x70] sm:$0xf]
        %v3178 = vld [vmem:[%s1936 + $0x74] sm:$0x1]
        %v3179 = vld [vmem:[%s1936 + $0x78] sm:$0xe]
        %v3180 = vld [vmem:[%s1936 + $0x7c] sm:$0xf]
        %v3181 = vld [vmem:[%s1936 + $0x80] sm:$0x1]
        %v3182 = vld [vmem:[%s1936 + $0x84] sm:$0xe]
        %v3183 = vld [vmem:[%s1936 + $0x88] sm:$0xf]
        %v3184 = vld [vmem:[%s1936 + $0x8c] sm:$0x1]
        %v3185 = vld [vmem:[%s1936 + $0x90] sm:$0xe]
        %v3186 = vld [vmem:[%s1936 + $0x94] sm:$0xf]
        %v3187 = vld [vmem:[%s1936 + $0x98] sm:$0x1]
        %v3188 = vld [vmem:[%s1936 + $0x9c] sm:$0xe]
        %v3189 = vld [vmem:[%s1936 + $0xa0] sm:$0xf]
        %v3190 = vld [vmem:[%s1936 + $0xa4] sm:$0x1]
        %v3191 = vld [vmem:[%s1936 + $0xa8] sm:$0xe]
        %v3192 = vld [vmem:[%s1936 + $0xac] sm:$0xf]
        %v3193 = vld [vmem:[%s1936 + $0xb0] sm:$0x1]
        %v3194 = vld [vmem:[%s1936 + $0xb4] sm:$0xe]
        %v3195 = vld [vmem:[%s1936 + $0xb8] sm:$0xf]
        %v3196 = vld [vmem:[%s1936 + $0xbc] sm:$0x1]
        %v3245 = vrot.slane %v3149, 5
        %v3246 = vrot.slane %v3245, 4
        %v3247 = vrot.slane %v3150, 5
        %v3248 = vsel %vm1465, %v3246, %v3247
        %v3249 = vrot.slane %v3247, 4
        %v3250 = vrot.slane %v3151, 5
        %v3251 = vsel %vm1465, %v3249, %v3250
        %v3252 = vrot.slane %v3152, 5
        %v3253 = vrot.slane %v3252, 4
        %v3254 = vrot.slane %v3153, 5
        %v3255 = vsel %vm1465, %v3253, %v3254
        %v3256 = vrot.slane %v3254, 4
        %v3257 = vrot.slane %v3154, 5
        %v3258 = vsel %vm1465, %v3256, %v3257
        %v3259 = vrot.slane %v3155, 5
        %v3260 = vrot.slane %v3259, 4
        %v3261 = vrot.slane %v3156, 5
        %v3262 = vsel %vm1465, %v3260, %v3261
        %v3263 = vrot.slane %v3261, 4
        %v3264 = vrot.slane %v3157, 5
        %v3265 = vsel %vm1465, %v3263, %v3264
        %v3266 = vrot.slane %v3158, 5
        %v3267 = vrot.slane %v3266, 4
        %v3268 = vrot.slane %v3159, 5
        %v3269 = vsel %vm1465, %v3267, %v3268
        %v3270 = vrot.slane %v3268, 4
        %v3271 = vrot.slane %v3160, 5
        %v3272 = vsel %vm1465, %v3270, %v3271
        %v3273 = vrot.slane %v3161, 5
        %v3274 = vrot.slane %v3273, 4
        %v3275 = vrot.slane %v3162, 5
        %v3276 = vsel %vm1465, %v3274, %v3275
        %v3277 = vrot.slane %v3275, 4
        %v3278 = vrot.slane %v3163, 5
        %v3279 = vsel %vm1465, %v3277, %v3278
        %v3280 = vrot.slane %v3164, 5
        %v3281 = vrot.slane %v3280, 4
        %v3282 = vrot.slane %v3165, 5
        %v3283 = vsel %vm1465, %v3281, %v3282
        %v3284 = vrot.slane %v3282, 4
        %v3285 = vrot.slane %v3166, 5
        %v3286 = vsel %vm1465, %v3284, %v3285
        %v3287 = vrot.slane %v3167, 5
        %v3288 = vrot.slane %v3287, 4
        %v3289 = vrot.slane %v3168, 5
        %v3290 = vsel %vm1465, %v3288, %v3289
        %v3291 = vrot.slane %v3289, 4
        %v3292 = vrot.slane %v3169, 5
        %v3293 = vsel %vm1465, %v3291, %v3292
        %v3294 = vrot.slane %v3170, 5
        %v3295 = vrot.slane %v3294, 4
        %v3296 = vrot.slane %v3171, 5
        %v3297 = vsel %vm1465, %v3295, %v3296
        %v3298 = vrot.slane %v3296, 4
        %v3299 = vrot.slane %v3172, 5
        %v3300 = vsel %vm1465, %v3298, %v3299
        %v3301 = vrot.slane %v3173, 5
        %v3302 = vrot.slane %v3301, 4
        %v3303 = vrot.slane %v3174, 5
        %v3304 = vsel %vm1465, %v3302, %v3303
        %v3305 = vrot.slane %v3303, 4
        %v3306 = vrot.slane %v3175, 5
        %v3307 = vsel %vm1465, %v3305, %v3306
        %v3308 = vrot.slane %v3176, 5
        %v3309 = vrot.slane %v3308, 4
        %v3310 = vrot.slane %v3177, 5
        %v3311 = vsel %vm1465, %v3309, %v3310
        %v3312 = vrot.slane %v3310, 4
        %v3313 = vrot.slane %v3178, 5
        %v3314 = vsel %vm1465, %v3312, %v3313
        %v3315 = vrot.slane %v3179, 5
        %v3316 = vrot.slane %v3315, 4
        %v3317 = vrot.slane %v3180, 5
        %v3318 = vsel %vm1465, %v3316, %v3317
        %v3319 = vrot.slane %v3317, 4
        %v3320 = vrot.slane %v3181, 5
        %v3321 = vsel %vm1465, %v3319, %v3320
        %v3322 = vrot.slane %v3182, 5
        %v3323 = vrot.slane %v3322, 4
        %v3324 = vrot.slane %v3183, 5
        %v3325 = vsel %vm1465, %v3323, %v3324
        %v3326 = vrot.slane %v3324, 4
        %v3327 = vrot.slane %v3184, 5
        %v3328 = vsel %vm1465, %v3326, %v3327
        %v3329 = vrot.slane %v3185, 5
        %v3330 = vrot.slane %v3329, 4
        %v3331 = vrot.slane %v3186, 5
        %v3332 = vsel %vm1465, %v3330, %v3331
        %v3333 = vrot.slane %v3331, 4
        %v3334 = vrot.slane %v3187, 5
        %v3335 = vsel %vm1465, %v3333, %v3334
        %v3336 = vrot.slane %v3188, 5
        %v3337 = vrot.slane %v3336, 4
        %v3338 = vrot.slane %v3189, 5
        %v3339 = vsel %vm1465, %v3337, %v3338
        %v3340 = vrot.slane %v3338, 4
        %v3341 = vrot.slane %v3190, 5
        %v3342 = vsel %vm1465, %v3340, %v3341
        %v3343 = vrot.slane %v3191, 5
        %v3344 = vrot.slane %v3343, 4
        %v3345 = vrot.slane %v3192, 5
        %v3346 = vsel %vm1465, %v3344, %v3345
        %v3347 = vrot.slane %v3345, 4
        %v3348 = vrot.slane %v3193, 5
        %v3349 = vsel %vm1465, %v3347, %v3348
        %v3350 = vrot.slane %v3194, 5
        %v3351 = vrot.slane %v3350, 4
        %v3352 = vrot.slane %v3195, 5
        %v3353 = vsel %vm1465, %v3351, %v3352
        %v3354 = vrot.slane %v3352, 4
        %v3355 = vrot.slane %v3196, 5
        %v3356 = vsel %vm1465, %v3354, %v3355
        %s3357 = scalar_lea.vmem %s210, 10
        %v3358 = vld [vmem:[%s3357] sm:$0x3]
        %v3359 = vunpack.c.l.b16 %v3248
        %v3360 = vunpack.c.l.b16 %v3251
        %v3361 = vunpack.c.l.b16 %v3255
        %v3362 = vunpack.c.l.b16 %v3258
        %v3363 = vunpack.c.l.b16 %v3262
        %v3364 = vunpack.c.l.b16 %v3265
        %v3365 = vunpack.c.l.b16 %v3269
        %v3366 = vunpack.c.l.b16 %v3272
        %v3367 = vunpack.c.l.b16 %v3276
        %v3368 = vunpack.c.l.b16 %v3279
        %v3369 = vunpack.c.l.b16 %v3283
        %v3370 = vunpack.c.l.b16 %v3286
        %v3371 = vunpack.c.l.b16 %v3290
        %v3372 = vunpack.c.l.b16 %v3293
        %v3373 = vunpack.c.l.b16 %v3297
        %v3374 = vunpack.c.l.b16 %v3300
        %v3375 = vunpack.c.l.b16 %v3304
        %v3376 = vunpack.c.l.b16 %v3307
        %v3377 = vunpack.c.l.b16 %v3311
        %v3378 = vunpack.c.l.b16 %v3314
        %v3379 = vunpack.c.l.b16 %v3318
        %v3380 = vunpack.c.l.b16 %v3321
        %v3381 = vunpack.c.l.b16 %v3325
        %v3382 = vunpack.c.l.b16 %v3328
        %v3383 = vunpack.c.l.b16 %v3332
        %v3384 = vunpack.c.l.b16 %v3335
        %v3385 = vunpack.c.l.b16 %v3339
        %v3386 = vunpack.c.l.b16 %v3342
        %v3387 = vunpack.c.l.b16 %v3346
        %v3388 = vunpack.c.l.b16 %v3349
        %v3389 = vunpack.c.l.b16 %v3353
        %v3390 = vunpack.c.l.b16 %v3356
        %v3391 = vpack.c.b16 %v3360, %v3359
        %v3392 = vpack.c.b16 %v3362, %v3361
        %v3393 = vpack.c.b16 %v3364, %v3363
        %v3394 = vpack.c.b16 %v3366, %v3365
        %v3395 = vpack.c.b16 %v3368, %v3367
        %v3396 = vpack.c.b16 %v3370, %v3369
        %v3397 = vpack.c.b16 %v3372, %v3371
        %v3398 = vpack.c.b16 %v3374, %v3373
        %v3399 = vpack.c.b16 %v3376, %v3375
        %v3400 = vpack.c.b16 %v3378, %v3377
        %v3401 = vpack.c.b16 %v3380, %v3379
        %v3402 = vpack.c.b16 %v3382, %v3381
        %v3403 = vpack.c.b16 %v3384, %v3383
        %v3404 = vpack.c.b16 %v3386, %v3385
        %v3405 = vpack.c.b16 %v3388, %v3387
        %v3406 = vpack.c.b16 %v3390, %v3389
        %v3408 = vsel %vm328, %v3391, 0
        %v3411 = vsel %vm328, %v3392, 0
        %v3414 = vsel %vm328, %v3393, 0
        %v3417 = vsel %vm328, %v3394, 0
        %v3420 = vsel %vm328, %v3395, 0
        %v3423 = vsel %vm328, %v3396, 0
        %v3426 = vsel %vm328, %v3397, 0
        %v3429 = vsel %vm328, %v3398, 0
        %v3432 = vsel %vm328, %v3399, 0
        %v3435 = vsel %vm328, %v3400, 0
        %v3438 = vsel %vm328, %v3401, 0
        %v3441 = vsel %vm328, %v3402, 0
        %v3444 = vsel %vm328, %v3403, 0
        %v3447 = vsel %vm328, %v3404, 0
        %v3450 = vsel %vm328, %v3405, 0
        %v3453 = vsel %vm328, %v3406, 0
        %v3456 = vsel %vm377, %v3358, 0
        %3458 = vmatprep.subr.bf16.mxu0 0
        %3459 = vmatpush1.bf16.msra.mxu0 0
        %3460 = vmatprep.subr.bf16.mxu0 0
        %3461 = vmatpush1.bf16.msra.mxu0 0
        %3462 = vmatprep.subr.bf16.mxu0 0
        %3463 = vmatpush1.bf16.msra.mxu0 0
        %3464 = vmatprep.subr.bf16.mxu0 0
        %3465 = vmatpush1.bf16.msra.mxu0 0
        %3466 = vmatprep.subr.bf16.mxu0 0
        %3467 = vmatpush1.bf16.msra.mxu0 0
        %3468 = vmatprep.subr.bf16.mxu0 0
        %3469 = vmatpush1.bf16.msra.mxu0 0
        %3470 = vmatprep.subr.bf16.mxu0 0
        %3471 = vmatpush1.bf16.msra.mxu0 0
        %3472 = vmatprep.subr.bf16.mxu0 0
        %3473 = vmatpush1.bf16.msra.mxu0 %v3456
        %3474 = vmatprep.subr.bf16.mxu0 0
        %3475 = vmatpush2.bf16.msra.mxu0 0
        %3476 = vmatprep.subr.bf16.mxu0 0
        %3477 = vmatpush2.bf16.msra.mxu0 0
        %3478 = vmatprep.subr.bf16.mxu0 0
        %3479 = vmatpush2.bf16.msra.mxu0 0
        %3480 = vmatprep.subr.bf16.mxu0 0
        %3481 = vmatpush2.bf16.msra.mxu0 0
        %3482 = vmatprep.subr.bf16.mxu0 0
        %3483 = vmatpush2.bf16.msra.mxu0 0
        %3484 = vmatprep.subr.bf16.mxu0 0
        %3485 = vmatpush2.bf16.msra.mxu0 0
        %3486 = vmatprep.subr.bf16.mxu0 0
        %3487 = vmatpush2.bf16.msra.mxu0 0
        %3488 = vmatprep.subr.bf16.mxu0 0
        %3489 = vmatpush2.bf16.msra.mxu0 0
        %3490 = vmatprep.mubr.bf16.mxu0 0
        %3491 = vmatmul.mubr.bf16.gmra.mxu0 %v3408
        %v3492 = vpop.f32.mrf.mxu0
        %v3493 = vadd.f32 0.0, %v3492
        %v3494 = vpop.f32.mrf.mxu0
        %v3495 = vpop.f32.mrf.mxu0
        %v3496 = vadd.f32 0.0, %v3495
        %v3497 = vpop.f32.mrf.mxu0
        %3498 = vmatprep.mubr.bf16.mxu0 0
        %3499 = vmatmul.mubr.bf16.gmra.mxu0 %v3411
        %v3500 = vpop.f32.mrf.mxu0
        %v3501 = vadd.f32 0.0, %v3500
        %v3502 = vpop.f32.mrf.mxu0
        %v3503 = vpop.f32.mrf.mxu0
        %v3504 = vadd.f32 0.0, %v3503
        %v3505 = vpop.f32.mrf.mxu0
        %3506 = vmatprep.mubr.bf16.mxu0 0
        %3507 = vmatmul.mubr.bf16.gmra.mxu0 %v3414
        %v3508 = vpop.f32.mrf.mxu0
        %v3509 = vadd.f32 0.0, %v3508
        %v3510 = vpop.f32.mrf.mxu0
        %v3511 = vpop.f32.mrf.mxu0
        %v3512 = vadd.f32 0.0, %v3511
        %v3513 = vpop.f32.mrf.mxu0
        %3514 = vmatprep.mubr.bf16.mxu0 0
        %3515 = vmatmul.mubr.bf16.gmra.mxu0 %v3417
        %v3516 = vpop.f32.mrf.mxu0
        %v3517 = vadd.f32 0.0, %v3516
        %v3518 = vpop.f32.mrf.mxu0
        %v3519 = vpop.f32.mrf.mxu0
        %v3520 = vadd.f32 0.0, %v3519
        %v3521 = vpop.f32.mrf.mxu0
        %3522 = vmatprep.mubr.bf16.mxu0 0
        %3523 = vmatmul.mubr.bf16.gmra.mxu0 %v3420
        %v3524 = vpop.f32.mrf.mxu0
        %v3525 = vadd.f32 0.0, %v3524
        %v3526 = vpop.f32.mrf.mxu0
        %v3527 = vpop.f32.mrf.mxu0
        %v3528 = vadd.f32 0.0, %v3527
        %v3529 = vpop.f32.mrf.mxu0
        %3530 = vmatprep.mubr.bf16.mxu0 0
        %3531 = vmatmul.mubr.bf16.gmra.mxu0 %v3423
        %v3532 = vpop.f32.mrf.mxu0
        %v3533 = vadd.f32 0.0, %v3532
        %v3534 = vpop.f32.mrf.mxu0
        %v3535 = vpop.f32.mrf.mxu0
        %v3536 = vadd.f32 0.0, %v3535
        %v3537 = vpop.f32.mrf.mxu0
        %3538 = vmatprep.mubr.bf16.mxu0 0
        %3539 = vmatmul.mubr.bf16.gmra.mxu0 %v3426
        %v3540 = vpop.f32.mrf.mxu0
        %v3541 = vadd.f32 0.0, %v3540
        %v3542 = vpop.f32.mrf.mxu0
        %v3543 = vpop.f32.mrf.mxu0
        %v3544 = vadd.f32 0.0, %v3543
        %v3545 = vpop.f32.mrf.mxu0
        %3546 = vmatprep.mubr.bf16.mxu0 0
        %3547 = vmatmul.mubr.bf16.gmra.mxu0 %v3429
        %v3548 = vpop.f32.mrf.mxu0
        %v3549 = vadd.f32 0.0, %v3548
        %v3550 = vpop.f32.mrf.mxu0
        %v3551 = vpop.f32.mrf.mxu0
        %v3552 = vadd.f32 0.0, %v3551
        %v3553 = vpop.f32.mrf.mxu0
        %3554 = vmatprep.mubr.bf16.mxu0 0
        %3555 = vmatmul.mubr.bf16.gmra.mxu0 %v3432
        %v3556 = vpop.f32.mrf.mxu0
        %v3557 = vadd.f32 0.0, %v3556
        %v3558 = vpop.f32.mrf.mxu0
        %v3559 = vpop.f32.mrf.mxu0
        %v3560 = vadd.f32 0.0, %v3559
        %v3561 = vpop.f32.mrf.mxu0
        %3562 = vmatprep.mubr.bf16.mxu0 0
        %3563 = vmatmul.mubr.bf16.gmra.mxu0 %v3435
        %v3564 = vpop.f32.mrf.mxu0
        %v3565 = vadd.f32 0.0, %v3564
        %v3566 = vpop.f32.mrf.mxu0
        %v3567 = vpop.f32.mrf.mxu0
        %v3568 = vadd.f32 0.0, %v3567
        %v3569 = vpop.f32.mrf.mxu0
        %3570 = vmatprep.mubr.bf16.mxu0 0
        %3571 = vmatmul.mubr.bf16.gmra.mxu0 %v3438
        %v3572 = vpop.f32.mrf.mxu0
        %v3573 = vadd.f32 0.0, %v3572
        %v3574 = vpop.f32.mrf.mxu0
        %v3575 = vpop.f32.mrf.mxu0
        %v3576 = vadd.f32 0.0, %v3575
        %v3577 = vpop.f32.mrf.mxu0
        %3578 = vmatprep.mubr.bf16.mxu0 0
        %3579 = vmatmul.mubr.bf16.gmra.mxu0 %v3441
        %v3580 = vpop.f32.mrf.mxu0
        %v3581 = vadd.f32 0.0, %v3580
        %v3582 = vpop.f32.mrf.mxu0
        %v3583 = vpop.f32.mrf.mxu0
        %v3584 = vadd.f32 0.0, %v3583
        %v3585 = vpop.f32.mrf.mxu0
        %3586 = vmatprep.mubr.bf16.mxu0 0
        %3587 = vmatmul.mubr.bf16.gmra.mxu0 %v3444
        %v3588 = vpop.f32.mrf.mxu0
        %v3589 = vadd.f32 0.0, %v3588
        %v3590 = vpop.f32.mrf.mxu0
        %v3591 = vpop.f32.mrf.mxu0
        %v3592 = vadd.f32 0.0, %v3591
        %v3593 = vpop.f32.mrf.mxu0
        %3594 = vmatprep.mubr.bf16.mxu0 0
        %3595 = vmatmul.mubr.bf16.gmra.mxu0 %v3447
        %v3596 = vpop.f32.mrf.mxu0
        %v3597 = vadd.f32 0.0, %v3596
        %v3598 = vpop.f32.mrf.mxu0
        %v3599 = vpop.f32.mrf.mxu0
        %v3600 = vadd.f32 0.0, %v3599
        %v3601 = vpop.f32.mrf.mxu0
        %3602 = vmatprep.mubr.bf16.mxu0 0
        %3603 = vmatmul.mubr.bf16.gmra.mxu0 %v3450
        %v3604 = vpop.f32.mrf.mxu0
        %v3605 = vadd.f32 0.0, %v3604
        %v3606 = vpop.f32.mrf.mxu0
        %v3607 = vpop.f32.mrf.mxu0
        %v3608 = vadd.f32 0.0, %v3607
        %v3609 = vpop.f32.mrf.mxu0
        %3610 = vmatprep.mubr.bf16.mxu0 0
        %3611 = vmatmul.mubr.bf16.gmra.mxu0 %v3453
        %v3612 = vpop.f32.mrf.mxu0
        %v3613 = vadd.f32 0.0, %v3612
        %v3614 = vpop.f32.mrf.mxu0
        %v3615 = vpop.f32.mrf.mxu0
        %v3616 = vadd.f32 0.0, %v3615
        %v3617 = vpop.f32.mrf.mxu0
        %3618 = vdwg.mxu0
        %v3619 = vld [vmem:[#allocation2] sm:$0xff]
        %v3620 = vld [vmem:[#allocation2 + $0x8] sm:$0xff]
        %v3621 = vld [vmem:[#allocation2 + $0x10] sm:$0xff]
        %v3622 = vld [vmem:[#allocation2 + $0x18] sm:$0xff]
        %v3623 = vld [vmem:[#allocation2 + $0x20] sm:$0xff]
        %v3624 = vld [vmem:[#allocation2 + $0x28] sm:$0xff]
        %v3625 = vld [vmem:[#allocation2 + $0x30] sm:$0xff]
        %v3626 = vld [vmem:[#allocation2 + $0x38] sm:$0xff]
        %v3627 = vld [vmem:[#allocation2 + $0x40] sm:$0xff]
        %v3628 = vld [vmem:[#allocation2 + $0x48] sm:$0xff]
        %v3629 = vld [vmem:[#allocation2 + $0x50] sm:$0xff]
        %v3630 = vld [vmem:[#allocation2 + $0x58] sm:$0xff]
        %v3631 = vld [vmem:[#allocation2 + $0x60] sm:$0xff]
        %v3632 = vld [vmem:[#allocation2 + $0x68] sm:$0xff]
        %v3633 = vld [vmem:[#allocation2 + $0x70] sm:$0xff]
        %v3634 = vld [vmem:[#allocation2 + $0x78] sm:$0xff]
        %v3635 = vld [vmem:[#allocation2 + $0x80] sm:$0xff]
        %v3636 = vld [vmem:[#allocation2 + $0x88] sm:$0xff]
        %v3637 = vld [vmem:[#allocation2 + $0x90] sm:$0xff]
        %v3638 = vld [vmem:[#allocation2 + $0x98] sm:$0xff]
        %v3639 = vld [vmem:[#allocation2 + $0xa0] sm:$0xff]
        %v3640 = vld [vmem:[#allocation2 + $0xa8] sm:$0xff]
        %v3641 = vld [vmem:[#allocation2 + $0xb0] sm:$0xff]
        %v3642 = vld [vmem:[#allocation2 + $0xb8] sm:$0xff]
        %v3643 = vld [vmem:[#allocation2 + $0xc0] sm:$0xff]
        %v3644 = vld [vmem:[#allocation2 + $0xc8] sm:$0xff]
        %v3645 = vld [vmem:[#allocation2 + $0xd0] sm:$0xff]
        %v3646 = vld [vmem:[#allocation2 + $0xd8] sm:$0xff]
        %v3647 = vld [vmem:[#allocation2 + $0xe0] sm:$0xff]
        %v3648 = vld [vmem:[#allocation2 + $0xe8] sm:$0xff]
        %v3649 = vld [vmem:[#allocation2 + $0xf0] sm:$0xff]
        %v3650 = vld [vmem:[#allocation2 + $0xf8] sm:$0xff]
        %v3651 = vadd.f32 %v3619, %v3493
        %v3652 = vadd.f32 %v3620, %v3496
        %v3653 = vadd.f32 %v3621, %v3501
        %v3654 = vadd.f32 %v3622, %v3504
        %v3655 = vadd.f32 %v3623, %v3509
        %v3656 = vadd.f32 %v3624, %v3512
        %v3657 = vadd.f32 %v3625, %v3517
        %v3658 = vadd.f32 %v3626, %v3520
        %v3659 = vadd.f32 %v3627, %v3525
        %v3660 = vadd.f32 %v3628, %v3528
        %v3661 = vadd.f32 %v3629, %v3533
        %v3662 = vadd.f32 %v3630, %v3536
        %v3663 = vadd.f32 %v3631, %v3541
        %v3664 = vadd.f32 %v3632, %v3544
        %v3665 = vadd.f32 %v3633, %v3549
        %v3666 = vadd.f32 %v3634, %v3552
        %v3667 = vadd.f32 %v3635, %v3557
        %v3668 = vadd.f32 %v3636, %v3560
        %v3669 = vadd.f32 %v3637, %v3565
        %v3670 = vadd.f32 %v3638, %v3568
        %v3671 = vadd.f32 %v3639, %v3573
        %v3672 = vadd.f32 %v3640, %v3576
        %v3673 = vadd.f32 %v3641, %v3581
        %v3674 = vadd.f32 %v3642, %v3584
        %v3675 = vadd.f32 %v3643, %v3589
        %v3676 = vadd.f32 %v3644, %v3592
        %v3677 = vadd.f32 %v3645, %v3597
        %v3678 = vadd.f32 %v3646, %v3600
        %v3679 = vadd.f32 %v3647, %v3605
        %v3680 = vadd.f32 %v3648, %v3608
        %v3681 = vadd.f32 %v3649, %v3613
        %v3682 = vadd.f32 %v3650, %v3616
        %3683 = vst [vmem:[#allocation2] sm:$0xff] %v3651
        %3684 = vst [vmem:[#allocation2 + $0x8] sm:$0xff] %v3652
        %3685 = vst [vmem:[#allocation2 + $0x10] sm:$0xff] %v3653
        %3686 = vst [vmem:[#allocation2 + $0x18] sm:$0xff] %v3654
        %3687 = vst [vmem:[#allocation2 + $0x20] sm:$0xff] %v3655
        %3688 = vst [vmem:[#allocation2 + $0x28] sm:$0xff] %v3656
        %3689 = vst [vmem:[#allocation2 + $0x30] sm:$0xff] %v3657
        %3690 = vst [vmem:[#allocation2 + $0x38] sm:$0xff] %v3658
        %3691 = vst [vmem:[#allocation2 + $0x40] sm:$0xff] %v3659
        %3692 = vst [vmem:[#allocation2 + $0x48] sm:$0xff] %v3660
        %3693 = vst [vmem:[#allocation2 + $0x50] sm:$0xff] %v3661
        %3694 = vst [vmem:[#allocation2 + $0x58] sm:$0xff] %v3662
        %3695 = vst [vmem:[#allocation2 + $0x60] sm:$0xff] %v3663
        %3696 = vst [vmem:[#allocation2 + $0x68] sm:$0xff] %v3664
        %3697 = vst [vmem:[#allocation2 + $0x70] sm:$0xff] %v3665
        %3698 = vst [vmem:[#allocation2 + $0x78] sm:$0xff] %v3666
        %3699 = vst [vmem:[#allocation2 + $0x80] sm:$0xff] %v3667
        %3700 = vst [vmem:[#allocation2 + $0x88] sm:$0xff] %v3668
        %3701 = vst [vmem:[#allocation2 + $0x90] sm:$0xff] %v3669
        %3702 = vst [vmem:[#allocation2 + $0x98] sm:$0xff] %v3670
        %3703 = vst [vmem:[#allocation2 + $0xa0] sm:$0xff] %v3671
        %3704 = vst [vmem:[#allocation2 + $0xa8] sm:$0xff] %v3672
        %3705 = vst [vmem:[#allocation2 + $0xb0] sm:$0xff] %v3673
        %3706 = vst [vmem:[#allocation2 + $0xb8] sm:$0xff] %v3674
        %3707 = vst [vmem:[#allocation2 + $0xc0] sm:$0xff] %v3675
        %3708 = vst [vmem:[#allocation2 + $0xc8] sm:$0xff] %v3676
        %3709 = vst [vmem:[#allocation2 + $0xd0] sm:$0xff] %v3677
        %3710 = vst [vmem:[#allocation2 + $0xd8] sm:$0xff] %v3678
        %3711 = vst [vmem:[#allocation2 + $0xe0] sm:$0xff] %v3679
        %3712 = vst [vmem:[#allocation2 + $0xe8] sm:$0xff] %v3680
        %3713 = vst [vmem:[#allocation2 + $0xf0] sm:$0xff] %v3681
        %3714 = vst [vmem:[#allocation2 + $0xf8] sm:$0xff] %v3682
        %s3715 = scalar_lea.vmem %s206, 24
        %v3716 = vld [vmem:[%s3715] sm:$0xf]
        %v3717 = vld [vmem:[%s3715 + $0x4] sm:$0xf]
        %v3718 = vld [vmem:[%s3715 + $0xc] sm:$0xf]
        %v3719 = vld [vmem:[%s3715 + $0x10] sm:$0xf]
        %v3720 = vld [vmem:[%s3715 + $0x18] sm:$0xf]
        %v3721 = vld [vmem:[%s3715 + $0x1c] sm:$0xf]
        %v3722 = vld [vmem:[%s3715 + $0x24] sm:$0xf]
        %v3723 = vld [vmem:[%s3715 + $0x28] sm:$0xf]
        %v3724 = vld [vmem:[%s3715 + $0x30] sm:$0xf]
        %v3725 = vld [vmem:[%s3715 + $0x34] sm:$0xf]
        %v3726 = vld [vmem:[%s3715 + $0x3c] sm:$0xf]
        %v3727 = vld [vmem:[%s3715 + $0x40] sm:$0xf]
        %v3728 = vld [vmem:[%s3715 + $0x48] sm:$0xf]
        %v3729 = vld [vmem:[%s3715 + $0x4c] sm:$0xf]
        %v3730 = vld [vmem:[%s3715 + $0x54] sm:$0xf]
        %v3731 = vld [vmem:[%s3715 + $0x58] sm:$0xf]
        %v3732 = vld [vmem:[%s3715 + $0x60] sm:$0xf]
        %v3733 = vld [vmem:[%s3715 + $0x64] sm:$0xf]
        %v3734 = vld [vmem:[%s3715 + $0x6c] sm:$0xf]
        %v3735 = vld [vmem:[%s3715 + $0x70] sm:$0xf]
        %v3736 = vld [vmem:[%s3715 + $0x78] sm:$0xf]
        %v3737 = vld [vmem:[%s3715 + $0x7c] sm:$0xf]
        %v3738 = vld [vmem:[%s3715 + $0x84] sm:$0xf]
        %v3739 = vld [vmem:[%s3715 + $0x88] sm:$0xf]
        %v3740 = vld [vmem:[%s3715 + $0x90] sm:$0xf]
        %v3741 = vld [vmem:[%s3715 + $0x94] sm:$0xf]
        %v3742 = vld [vmem:[%s3715 + $0x9c] sm:$0xf]
        %v3743 = vld [vmem:[%s3715 + $0xa0] sm:$0xf]
        %v3744 = vld [vmem:[%s3715 + $0xa8] sm:$0xf]
        %v3745 = vld [vmem:[%s3715 + $0xac] sm:$0xf]
        %v3746 = vld [vmem:[%s3715 + $0xb4] sm:$0xf]
        %v3747 = vld [vmem:[%s3715 + $0xb8] sm:$0xf]
        %s3748 = scalar_lea.vmem %s210, 12
        %v3749 = vld [vmem:[%s3748] sm:$0x3]
        %v3782 = vunpack.c.l.b16 %v3716
        %v3783 = vunpack.c.l.b16 %v3717
        %v3784 = vunpack.c.l.b16 %v3718
        %v3785 = vunpack.c.l.b16 %v3719
        %v3786 = vunpack.c.l.b16 %v3720
        %v3787 = vunpack.c.l.b16 %v3721
        %v3788 = vunpack.c.l.b16 %v3722
        %v3789 = vunpack.c.l.b16 %v3723
        %v3790 = vunpack.c.l.b16 %v3724
        %v3791 = vunpack.c.l.b16 %v3725
        %v3792 = vunpack.c.l.b16 %v3726
        %v3793 = vunpack.c.l.b16 %v3727
        %v3794 = vunpack.c.l.b16 %v3728
        %v3795 = vunpack.c.l.b16 %v3729
        %v3796 = vunpack.c.l.b16 %v3730
        %v3797 = vunpack.c.l.b16 %v3731
        %v3798 = vunpack.c.l.b16 %v3732
        %v3799 = vunpack.c.l.b16 %v3733
        %v3800 = vunpack.c.l.b16 %v3734
        %v3801 = vunpack.c.l.b16 %v3735
        %v3802 = vunpack.c.l.b16 %v3736
        %v3803 = vunpack.c.l.b16 %v3737
        %v3804 = vunpack.c.l.b16 %v3738
        %v3805 = vunpack.c.l.b16 %v3739
        %v3806 = vunpack.c.l.b16 %v3740
        %v3807 = vunpack.c.l.b16 %v3741
        %v3808 = vunpack.c.l.b16 %v3742
        %v3809 = vunpack.c.l.b16 %v3743
        %v3810 = vunpack.c.l.b16 %v3744
        %v3811 = vunpack.c.l.b16 %v3745
        %v3812 = vunpack.c.l.b16 %v3746
        %v3813 = vunpack.c.l.b16 %v3747
        %v3814 = vpack.c.b16 %v3783, %v3782
        %v3815 = vpack.c.b16 %v3785, %v3784
        %v3816 = vpack.c.b16 %v3787, %v3786
        %v3817 = vpack.c.b16 %v3789, %v3788
        %v3818 = vpack.c.b16 %v3791, %v3790
        %v3819 = vpack.c.b16 %v3793, %v3792
        %v3820 = vpack.c.b16 %v3795, %v3794
        %v3821 = vpack.c.b16 %v3797, %v3796
        %v3822 = vpack.c.b16 %v3799, %v3798
        %v3823 = vpack.c.b16 %v3801, %v3800
        %v3824 = vpack.c.b16 %v3803, %v3802
        %v3825 = vpack.c.b16 %v3805, %v3804
        %v3826 = vpack.c.b16 %v3807, %v3806
        %v3827 = vpack.c.b16 %v3809, %v3808
        %v3828 = vpack.c.b16 %v3811, %v3810
        %v3829 = vpack.c.b16 %v3813, %v3812
        %v3831 = vsel %vm328, %v3814, 0
        %v3834 = vsel %vm328, %v3815, 0
        %v3837 = vsel %vm328, %v3816, 0
        %v3840 = vsel %vm328, %v3817, 0
        %v3843 = vsel %vm328, %v3818, 0
        %v3846 = vsel %vm328, %v3819, 0
        %v3849 = vsel %vm328, %v3820, 0
        %v3852 = vsel %vm328, %v3821, 0
        %v3855 = vsel %vm328, %v3822, 0
        %v3858 = vsel %vm328, %v3823, 0
        %v3861 = vsel %vm328, %v3824, 0
        %v3864 = vsel %vm328, %v3825, 0
        %v3867 = vsel %vm328, %v3826, 0
        %v3870 = vsel %vm328, %v3827, 0
        %v3873 = vsel %vm328, %v3828, 0
        %v3876 = vsel %vm328, %v3829, 0
        %v3879 = vsel %vm377, %v3749, 0
        %3881 = vmatprep.subr.bf16.mxu0 0
        %3882 = vmatpush1.bf16.msra.mxu0 0
        %3883 = vmatprep.subr.bf16.mxu0 0
        %3884 = vmatpush1.bf16.msra.mxu0 0
        %3885 = vmatprep.subr.bf16.mxu0 0
        %3886 = vmatpush1.bf16.msra.mxu0 0
        %3887 = vmatprep.subr.bf16.mxu0 0
        %3888 = vmatpush1.bf16.msra.mxu0 0
        %3889 = vmatprep.subr.bf16.mxu0 0
        %3890 = vmatpush1.bf16.msra.mxu0 0
        %3891 = vmatprep.subr.bf16.mxu0 0
        %3892 = vmatpush1.bf16.msra.mxu0 0
        %3893 = vmatprep.subr.bf16.mxu0 0
        %3894 = vmatpush1.bf16.msra.mxu0 0
        %3895 = vmatprep.subr.bf16.mxu0 0
        %3896 = vmatpush1.bf16.msra.mxu0 %v3879
        %3897 = vmatprep.subr.bf16.mxu0 0
        %3898 = vmatpush2.bf16.msra.mxu0 0
        %3899 = vmatprep.subr.bf16.mxu0 0
        %3900 = vmatpush2.bf16.msra.mxu0 0
        %3901 = vmatprep.subr.bf16.mxu0 0
        %3902 = vmatpush2.bf16.msra.mxu0 0
        %3903 = vmatprep.subr.bf16.mxu0 0
        %3904 = vmatpush2.bf16.msra.mxu0 0
        %3905 = vmatprep.subr.bf16.mxu0 0
        %3906 = vmatpush2.bf16.msra.mxu0 0
        %3907 = vmatprep.subr.bf16.mxu0 0
        %3908 = vmatpush2.bf16.msra.mxu0 0
        %3909 = vmatprep.subr.bf16.mxu0 0
        %3910 = vmatpush2.bf16.msra.mxu0 0
        %3911 = vmatprep.subr.bf16.mxu0 0
        %3912 = vmatpush2.bf16.msra.mxu0 0
        %3913 = vmatprep.mubr.bf16.mxu0 0
        %3914 = vmatmul.mubr.bf16.gmra.mxu0 %v3831
        %v3915 = vpop.f32.mrf.mxu0
        %v3916 = vadd.f32 0.0, %v3915
        %v3917 = vpop.f32.mrf.mxu0
        %v3918 = vpop.f32.mrf.mxu0
        %v3919 = vadd.f32 0.0, %v3918
        %v3920 = vpop.f32.mrf.mxu0
        %3921 = vmatprep.mubr.bf16.mxu0 0
        %3922 = vmatmul.mubr.bf16.gmra.mxu0 %v3834
        %v3923 = vpop.f32.mrf.mxu0
        %v3924 = vadd.f32 0.0, %v3923
        %v3925 = vpop.f32.mrf.mxu0
        %v3926 = vpop.f32.mrf.mxu0
        %v3927 = vadd.f32 0.0, %v3926
        %v3928 = vpop.f32.mrf.mxu0
        %3929 = vmatprep.mubr.bf16.mxu0 0
        %3930 = vmatmul.mubr.bf16.gmra.mxu0 %v3837
        %v3931 = vpop.f32.mrf.mxu0
        %v3932 = vadd.f32 0.0, %v3931
        %v3933 = vpop.f32.mrf.mxu0
        %v3934 = vpop.f32.mrf.mxu0
        %v3935 = vadd.f32 0.0, %v3934
        %v3936 = vpop.f32.mrf.mxu0
        %3937 = vmatprep.mubr.bf16.mxu0 0
        %3938 = vmatmul.mubr.bf16.gmra.mxu0 %v3840
        %v3939 = vpop.f32.mrf.mxu0
        %v3940 = vadd.f32 0.0, %v3939
        %v3941 = vpop.f32.mrf.mxu0
        %v3942 = vpop.f32.mrf.mxu0
        %v3943 = vadd.f32 0.0, %v3942
        %v3944 = vpop.f32.mrf.mxu0
        %3945 = vmatprep.mubr.bf16.mxu0 0
        %3946 = vmatmul.mubr.bf16.gmra.mxu0 %v3843
        %v3947 = vpop.f32.mrf.mxu0
        %v3948 = vadd.f32 0.0, %v3947
        %v3949 = vpop.f32.mrf.mxu0
        %v3950 = vpop.f32.mrf.mxu0
        %v3951 = vadd.f32 0.0, %v3950
        %v3952 = vpop.f32.mrf.mxu0
        %3953 = vmatprep.mubr.bf16.mxu0 0
        %3954 = vmatmul.mubr.bf16.gmra.mxu0 %v3846
        %v3955 = vpop.f32.mrf.mxu0
        %v3956 = vadd.f32 0.0, %v3955
        %v3957 = vpop.f32.mrf.mxu0
        %v3958 = vpop.f32.mrf.mxu0
        %v3959 = vadd.f32 0.0, %v3958
        %v3960 = vpop.f32.mrf.mxu0
        %3961 = vmatprep.mubr.bf16.mxu0 0
        %3962 = vmatmul.mubr.bf16.gmra.mxu0 %v3849
        %v3963 = vpop.f32.mrf.mxu0
        %v3964 = vadd.f32 0.0, %v3963
        %v3965 = vpop.f32.mrf.mxu0
        %v3966 = vpop.f32.mrf.mxu0
        %v3967 = vadd.f32 0.0, %v3966
        %v3968 = vpop.f32.mrf.mxu0
        %3969 = vmatprep.mubr.bf16.mxu0 0
        %3970 = vmatmul.mubr.bf16.gmra.mxu0 %v3852
        %v3971 = vpop.f32.mrf.mxu0
        %v3972 = vadd.f32 0.0, %v3971
        %v3973 = vpop.f32.mrf.mxu0
        %v3974 = vpop.f32.mrf.mxu0
        %v3975 = vadd.f32 0.0, %v3974
        %v3976 = vpop.f32.mrf.mxu0
        %3977 = vmatprep.mubr.bf16.mxu0 0
        %3978 = vmatmul.mubr.bf16.gmra.mxu0 %v3855
        %v3979 = vpop.f32.mrf.mxu0
        %v3980 = vadd.f32 0.0, %v3979
        %v3981 = vpop.f32.mrf.mxu0
        %v3982 = vpop.f32.mrf.mxu0
        %v3983 = vadd.f32 0.0, %v3982
        %v3984 = vpop.f32.mrf.mxu0
        %3985 = vmatprep.mubr.bf16.mxu0 0
        %3986 = vmatmul.mubr.bf16.gmra.mxu0 %v3858
        %v3987 = vpop.f32.mrf.mxu0
        %v3988 = vadd.f32 0.0, %v3987
        %v3989 = vpop.f32.mrf.mxu0
        %v3990 = vpop.f32.mrf.mxu0
        %v3991 = vadd.f32 0.0, %v3990
        %v3992 = vpop.f32.mrf.mxu0
        %3993 = vmatprep.mubr.bf16.mxu0 0
        %3994 = vmatmul.mubr.bf16.gmra.mxu0 %v3861
        %v3995 = vpop.f32.mrf.mxu0
        %v3996 = vadd.f32 0.0, %v3995
        %v3997 = vpop.f32.mrf.mxu0
        %v3998 = vpop.f32.mrf.mxu0
        %v3999 = vadd.f32 0.0, %v3998
        %v4000 = vpop.f32.mrf.mxu0
        %4001 = vmatprep.mubr.bf16.mxu0 0
        %4002 = vmatmul.mubr.bf16.gmra.mxu0 %v3864
        %v4003 = vpop.f32.mrf.mxu0
        %v4004 = vadd.f32 0.0, %v4003
        %v4005 = vpop.f32.mrf.mxu0
        %v4006 = vpop.f32.mrf.mxu0
        %v4007 = vadd.f32 0.0, %v4006
        %v4008 = vpop.f32.mrf.mxu0
        %4009 = vmatprep.mubr.bf16.mxu0 0
        %4010 = vmatmul.mubr.bf16.gmra.mxu0 %v3867
        %v4011 = vpop.f32.mrf.mxu0
        %v4012 = vadd.f32 0.0, %v4011
        %v4013 = vpop.f32.mrf.mxu0
        %v4014 = vpop.f32.mrf.mxu0
        %v4015 = vadd.f32 0.0, %v4014
        %v4016 = vpop.f32.mrf.mxu0
        %4017 = vmatprep.mubr.bf16.mxu0 0
        %4018 = vmatmul.mubr.bf16.gmra.mxu0 %v3870
        %v4019 = vpop.f32.mrf.mxu0
        %v4020 = vadd.f32 0.0, %v4019
        %v4021 = vpop.f32.mrf.mxu0
        %v4022 = vpop.f32.mrf.mxu0
        %v4023 = vadd.f32 0.0, %v4022
        %v4024 = vpop.f32.mrf.mxu0
        %4025 = vmatprep.mubr.bf16.mxu0 0
        %4026 = vmatmul.mubr.bf16.gmra.mxu0 %v3873
        %v4027 = vpop.f32.mrf.mxu0
        %v4028 = vadd.f32 0.0, %v4027
        %v4029 = vpop.f32.mrf.mxu0
        %v4030 = vpop.f32.mrf.mxu0
        %v4031 = vadd.f32 0.0, %v4030
        %v4032 = vpop.f32.mrf.mxu0
        %4033 = vmatprep.mubr.bf16.mxu0 0
        %4034 = vmatmul.mubr.bf16.gmra.mxu0 %v3876
        %v4035 = vpop.f32.mrf.mxu0
        %v4036 = vadd.f32 0.0, %v4035
        %v4037 = vpop.f32.mrf.mxu0
        %v4038 = vpop.f32.mrf.mxu0
        %v4039 = vadd.f32 0.0, %v4038
        %v4040 = vpop.f32.mrf.mxu0
        %4041 = vdwg.mxu0
        %v4042 = vld [vmem:[#allocation2] sm:$0xff]
        %v4043 = vld [vmem:[#allocation2 + $0x8] sm:$0xff]
        %v4044 = vld [vmem:[#allocation2 + $0x10] sm:$0xff]
        %v4045 = vld [vmem:[#allocation2 + $0x18] sm:$0xff]
        %v4046 = vld [vmem:[#allocation2 + $0x20] sm:$0xff]
        %v4047 = vld [vmem:[#allocation2 + $0x28] sm:$0xff]
        %v4048 = vld [vmem:[#allocation2 + $0x30] sm:$0xff]
        %v4049 = vld [vmem:[#allocation2 + $0x38] sm:$0xff]
        %v4050 = vld [vmem:[#allocation2 + $0x40] sm:$0xff]
        %v4051 = vld [vmem:[#allocation2 + $0x48] sm:$0xff]
        %v4052 = vld [vmem:[#allocation2 + $0x50] sm:$0xff]
        %v4053 = vld [vmem:[#allocation2 + $0x58] sm:$0xff]
        %v4054 = vld [vmem:[#allocation2 + $0x60] sm:$0xff]
        %v4055 = vld [vmem:[#allocation2 + $0x68] sm:$0xff]
        %v4056 = vld [vmem:[#allocation2 + $0x70] sm:$0xff]
        %v4057 = vld [vmem:[#allocation2 + $0x78] sm:$0xff]
        %v4058 = vld [vmem:[#allocation2 + $0x80] sm:$0xff]
        %v4059 = vld [vmem:[#allocation2 + $0x88] sm:$0xff]
        %v4060 = vld [vmem:[#allocation2 + $0x90] sm:$0xff]
        %v4061 = vld [vmem:[#allocation2 + $0x98] sm:$0xff]
        %v4062 = vld [vmem:[#allocation2 + $0xa0] sm:$0xff]
        %v4063 = vld [vmem:[#allocation2 + $0xa8] sm:$0xff]
        %v4064 = vld [vmem:[#allocation2 + $0xb0] sm:$0xff]
        %v4065 = vld [vmem:[#allocation2 + $0xb8] sm:$0xff]
        %v4066 = vld [vmem:[#allocation2 + $0xc0] sm:$0xff]
        %v4067 = vld [vmem:[#allocation2 + $0xc8] sm:$0xff]
        %v4068 = vld [vmem:[#allocation2 + $0xd0] sm:$0xff]
        %v4069 = vld [vmem:[#allocation2 + $0xd8] sm:$0xff]
        %v4070 = vld [vmem:[#allocation2 + $0xe0] sm:$0xff]
        %v4071 = vld [vmem:[#allocation2 + $0xe8] sm:$0xff]
        %v4072 = vld [vmem:[#allocation2 + $0xf0] sm:$0xff]
        %v4073 = vld [vmem:[#allocation2 + $0xf8] sm:$0xff]
        %v4074 = vadd.f32 %v4042, %v3916
        %v4075 = vadd.f32 %v4043, %v3919
        %v4076 = vadd.f32 %v4044, %v3924
        %v4077 = vadd.f32 %v4045, %v3927
        %v4078 = vadd.f32 %v4046, %v3932
        %v4079 = vadd.f32 %v4047, %v3935
        %v4080 = vadd.f32 %v4048, %v3940
        %v4081 = vadd.f32 %v4049, %v3943
        %v4082 = vadd.f32 %v4050, %v3948
        %v4083 = vadd.f32 %v4051, %v3951
        %v4084 = vadd.f32 %v4052, %v3956
        %v4085 = vadd.f32 %v4053, %v3959
        %v4086 = vadd.f32 %v4054, %v3964
        %v4087 = vadd.f32 %v4055, %v3967
        %v4088 = vadd.f32 %v4056, %v3972
        %v4089 = vadd.f32 %v4057, %v3975
        %v4090 = vadd.f32 %v4058, %v3980
        %v4091 = vadd.f32 %v4059, %v3983
        %v4092 = vadd.f32 %v4060, %v3988
        %v4093 = vadd.f32 %v4061, %v3991
        %v4094 = vadd.f32 %v4062, %v3996
        %v4095 = vadd.f32 %v4063, %v3999
        %v4096 = vadd.f32 %v4064, %v4004
        %v4097 = vadd.f32 %v4065, %v4007
        %v4098 = vadd.f32 %v4066, %v4012
        %v4099 = vadd.f32 %v4067, %v4015
        %v4100 = vadd.f32 %v4068, %v4020
        %v4101 = vadd.f32 %v4069, %v4023
        %v4102 = vadd.f32 %v4070, %v4028
        %v4103 = vadd.f32 %v4071, %v4031
        %v4104 = vadd.f32 %v4072, %v4036
        %v4105 = vadd.f32 %v4073, %v4039
        %4106 = vst [vmem:[#allocation2] sm:$0xff] %v4074
        %4107 = vst [vmem:[#allocation2 + $0x8] sm:$0xff] %v4075
        %4108 = vst [vmem:[#allocation2 + $0x10] sm:$0xff] %v4076
        %4109 = vst [vmem:[#allocation2 + $0x18] sm:$0xff] %v4077
        %4110 = vst [vmem:[#allocation2 + $0x20] sm:$0xff] %v4078
        %4111 = vst [vmem:[#allocation2 + $0x28] sm:$0xff] %v4079
        %4112 = vst [vmem:[#allocation2 + $0x30] sm:$0xff] %v4080
        %4113 = vst [vmem:[#allocation2 + $0x38] sm:$0xff] %v4081
        %4114 = vst [vmem:[#allocation2 + $0x40] sm:$0xff] %v4082
        %4115 = vst [vmem:[#allocation2 + $0x48] sm:$0xff] %v4083
        %4116 = vst [vmem:[#allocation2 + $0x50] sm:$0xff] %v4084
        %4117 = vst [vmem:[#allocation2 + $0x58] sm:$0xff] %v4085
        %4118 = vst [vmem:[#allocation2 + $0x60] sm:$0xff] %v4086
        %4119 = vst [vmem:[#allocation2 + $0x68] sm:$0xff] %v4087
        %4120 = vst [vmem:[#allocation2 + $0x70] sm:$0xff] %v4088
        %4121 = vst [vmem:[#allocation2 + $0x78] sm:$0xff] %v4089
        %4122 = vst [vmem:[#allocation2 + $0x80] sm:$0xff] %v4090
        %4123 = vst [vmem:[#allocation2 + $0x88] sm:$0xff] %v4091
        %4124 = vst [vmem:[#allocation2 + $0x90] sm:$0xff] %v4092
        %4125 = vst [vmem:[#allocation2 + $0x98] sm:$0xff] %v4093
        %4126 = vst [vmem:[#allocation2 + $0xa0] sm:$0xff] %v4094
        %4127 = vst [vmem:[#allocation2 + $0xa8] sm:$0xff] %v4095
        %4128 = vst [vmem:[#allocation2 + $0xb0] sm:$0xff] %v4096
        %4129 = vst [vmem:[#allocation2 + $0xb8] sm:$0xff] %v4097
        %4130 = vst [vmem:[#allocation2 + $0xc0] sm:$0xff] %v4098
        %4131 = vst [vmem:[#allocation2 + $0xc8] sm:$0xff] %v4099
        %4132 = vst [vmem:[#allocation2 + $0xd0] sm:$0xff] %v4100
        %4133 = vst [vmem:[#allocation2 + $0xd8] sm:$0xff] %v4101
        %4134 = vst [vmem:[#allocation2 + $0xe0] sm:$0xff] %v4102
        %4135 = vst [vmem:[#allocation2 + $0xe8] sm:$0xff] %v4103
        %4136 = vst [vmem:[#allocation2 + $0xf0] sm:$0xff] %v4104
        %4137 = vst [vmem:[#allocation2 + $0xf8] sm:$0xff] %v4105
        %v4138 = vld [vmem:[%s3715] sm:$0xf]
        %v4139 = vld [vmem:[%s3715 + $0x4] sm:$0xf]
        %v4140 = vld [vmem:[%s3715 + $0x8] sm:$0x1]
        %v4141 = vld [vmem:[%s3715 + $0xc] sm:$0xf]
        %v4142 = vld [vmem:[%s3715 + $0x10] sm:$0xf]
        %v4143 = vld [vmem:[%s3715 + $0x14] sm:$0x1]
        %v4144 = vld [vmem:[%s3715 + $0x18] sm:$0xf]
        %v4145 = vld [vmem:[%s3715 + $0x1c] sm:$0xf]
        %v4146 = vld [vmem:[%s3715 + $0x20] sm:$0x1]
        %v4147 = vld [vmem:[%s3715 + $0x24] sm:$0xf]
        %v4148 = vld [vmem:[%s3715 + $0x28] sm:$0xf]
        %v4149 = vld [vmem:[%s3715 + $0x2c] sm:$0x1]
        %v4150 = vld [vmem:[%s3715 + $0x30] sm:$0xf]
        %v4151 = vld [vmem:[%s3715 + $0x34] sm:$0xf]
        %v4152 = vld [vmem:[%s3715 + $0x38] sm:$0x1]
        %v4153 = vld [vmem:[%s3715 + $0x3c] sm:$0xf]
        %v4154 = vld [vmem:[%s3715 + $0x40] sm:$0xf]
        %v4155 = vld [vmem:[%s3715 + $0x44] sm:$0x1]
        %v4156 = vld [vmem:[%s3715 + $0x48] sm:$0xf]
        %v4157 = vld [vmem:[%s3715 + $0x4c] sm:$0xf]
        %v4158 = vld [vmem:[%s3715 + $0x50] sm:$0x1]
        %v4159 = vld [vmem:[%s3715 + $0x54] sm:$0xf]
        %v4160 = vld [vmem:[%s3715 + $0x58] sm:$0xf]
        %v4161 = vld [vmem:[%s3715 + $0x5c] sm:$0x1]
        %v4162 = vld [vmem:[%s3715 + $0x60] sm:$0xf]
        %v4163 = vld [vmem:[%s3715 + $0x64] sm:$0xf]
        %v4164 = vld [vmem:[%s3715 + $0x68] sm:$0x1]
        %v4165 = vld [vmem:[%s3715 + $0x6c] sm:$0xf]
        %v4166 = vld [vmem:[%s3715 + $0x70] sm:$0xf]
        %v4167 = vld [vmem:[%s3715 + $0x74] sm:$0x1]
        %v4168 = vld [vmem:[%s3715 + $0x78] sm:$0xf]
        %v4169 = vld [vmem:[%s3715 + $0x7c] sm:$0xf]
        %v4170 = vld [vmem:[%s3715 + $0x80] sm:$0x1]
        %v4171 = vld [vmem:[%s3715 + $0x84] sm:$0xf]
        %v4172 = vld [vmem:[%s3715 + $0x88] sm:$0xf]
        %v4173 = vld [vmem:[%s3715 + $0x8c] sm:$0x1]
        %v4174 = vld [vmem:[%s3715 + $0x90] sm:$0xf]
        %v4175 = vld [vmem:[%s3715 + $0x94] sm:$0xf]
        %v4176 = vld [vmem:[%s3715 + $0x98] sm:$0x1]
        %v4177 = vld [vmem:[%s3715 + $0x9c] sm:$0xf]
        %v4178 = vld [vmem:[%s3715 + $0xa0] sm:$0xf]
        %v4179 = vld [vmem:[%s3715 + $0xa4] sm:$0x1]
        %v4180 = vld [vmem:[%s3715 + $0xa8] sm:$0xf]
        %v4181 = vld [vmem:[%s3715 + $0xac] sm:$0xf]
        %v4182 = vld [vmem:[%s3715 + $0xb0] sm:$0x1]
        %v4183 = vld [vmem:[%s3715 + $0xb4] sm:$0xf]
        %v4184 = vld [vmem:[%s3715 + $0xb8] sm:$0xf]
        %v4185 = vld [vmem:[%s3715 + $0xbc] sm:$0x1]
        %v4187 = vshrl.u32 %v4138, 16
        %v4189 = vrot.slane %v4187, 4
        %v4190 = vshll.u32 %v4138, 16
        %v4192 = vrot.slane %v4190, 5
        %v4193 = vor.u32 %v4189, %v4192
        %v4194 = vrot.slane %v4193, 4
        %v4196 = vshll.u32 %v4139, 16
        %v4198 = vrot.slane %v4196, 5
        %v4199 = vsel %vm624, %v4194, %v4198
        %v4200 = vshrl.u32 %v4139, 16
        %v4202 = vrot.slane %v4200, 4
        %v4203 = vor.u32 %v4202, %v4198
        %v4204 = vrot.slane %v4203, 4
        %v4206 = vshll.u32 %v4140, 16
        %v4208 = vrot.slane %v4206, 5
        %v4209 = vsel %vm624, %v4204, %v4208
        %v4211 = vshrl.u32 %v4141, 16
        %v4213 = vrot.slane %v4211, 4
        %v4214 = vshll.u32 %v4141, 16
        %v4216 = vrot.slane %v4214, 5
        %v4217 = vor.u32 %v4213, %v4216
        %v4218 = vrot.slane %v4217, 4
        %v4220 = vshll.u32 %v4142, 16
        %v4222 = vrot.slane %v4220, 5
        %v4223 = vsel %vm624, %v4218, %v4222
        %v4224 = vshrl.u32 %v4142, 16
        %v4226 = vrot.slane %v4224, 4
        %v4227 = vor.u32 %v4226, %v4222
        %v4228 = vrot.slane %v4227, 4
        %v4230 = vshll.u32 %v4143, 16
        %v4232 = vrot.slane %v4230, 5
        %v4233 = vsel %vm624, %v4228, %v4232
        %v4235 = vshrl.u32 %v4144, 16
        %v4237 = vrot.slane %v4235, 4
        %v4238 = vshll.u32 %v4144, 16
        %v4240 = vrot.slane %v4238, 5
        %v4241 = vor.u32 %v4237, %v4240
        %v4242 = vrot.slane %v4241, 4
        %v4244 = vshll.u32 %v4145, 16
        %v4246 = vrot.slane %v4244, 5
        %v4247 = vsel %vm624, %v4242, %v4246
        %v4248 = vshrl.u32 %v4145, 16
        %v4250 = vrot.slane %v4248, 4
        %v4251 = vor.u32 %v4250, %v4246
        %v4252 = vrot.slane %v4251, 4
        %v4254 = vshll.u32 %v4146, 16
        %v4256 = vrot.slane %v4254, 5
        %v4257 = vsel %vm624, %v4252, %v4256
        %v4259 = vshrl.u32 %v4147, 16
        %v4261 = vrot.slane %v4259, 4
        %v4262 = vshll.u32 %v4147, 16
        %v4264 = vrot.slane %v4262, 5
        %v4265 = vor.u32 %v4261, %v4264
        %v4266 = vrot.slane %v4265, 4
        %v4268 = vshll.u32 %v4148, 16
        %v4270 = vrot.slane %v4268, 5
        %v4271 = vsel %vm624, %v4266, %v4270
        %v4272 = vshrl.u32 %v4148, 16
        %v4274 = vrot.slane %v4272, 4
        %v4275 = vor.u32 %v4274, %v4270
        %v4276 = vrot.slane %v4275, 4
        %v4278 = vshll.u32 %v4149, 16
        %v4280 = vrot.slane %v4278, 5
        %v4281 = vsel %vm624, %v4276, %v4280
        %v4283 = vshrl.u32 %v4150, 16
        %v4285 = vrot.slane %v4283, 4
        %v4286 = vshll.u32 %v4150, 16
        %v4288 = vrot.slane %v4286, 5
        %v4289 = vor.u32 %v4285, %v4288
        %v4290 = vrot.slane %v4289, 4
        %v4292 = vshll.u32 %v4151, 16
        %v4294 = vrot.slane %v4292, 5
        %v4295 = vsel %vm624, %v4290, %v4294
        %v4296 = vshrl.u32 %v4151, 16
        %v4298 = vrot.slane %v4296, 4
        %v4299 = vor.u32 %v4298, %v4294
        %v4300 = vrot.slane %v4299, 4
        %v4302 = vshll.u32 %v4152, 16
        %v4304 = vrot.slane %v4302, 5
        %v4305 = vsel %vm624, %v4300, %v4304
        %v4307 = vshrl.u32 %v4153, 16
        %v4309 = vrot.slane %v4307, 4
        %v4310 = vshll.u32 %v4153, 16
        %v4312 = vrot.slane %v4310, 5
        %v4313 = vor.u32 %v4309, %v4312
        %v4314 = vrot.slane %v4313, 4
        %v4316 = vshll.u32 %v4154, 16
        %v4318 = vrot.slane %v4316, 5
        %v4319 = vsel %vm624, %v4314, %v4318
        %v4320 = vshrl.u32 %v4154, 16
        %v4322 = vrot.slane %v4320, 4
        %v4323 = vor.u32 %v4322, %v4318
        %v4324 = vrot.slane %v4323, 4
        %v4326 = vshll.u32 %v4155, 16
        %v4328 = vrot.slane %v4326, 5
        %v4329 = vsel %vm624, %v4324, %v4328
        %v4331 = vshrl.u32 %v4156, 16
        %v4333 = vrot.slane %v4331, 4
        %v4334 = vshll.u32 %v4156, 16
        %v4336 = vrot.slane %v4334, 5
        %v4337 = vor.u32 %v4333, %v4336
        %v4338 = vrot.slane %v4337, 4
        %v4340 = vshll.u32 %v4157, 16
        %v4342 = vrot.slane %v4340, 5
        %v4343 = vsel %vm624, %v4338, %v4342
        %v4344 = vshrl.u32 %v4157, 16
        %v4346 = vrot.slane %v4344, 4
        %v4347 = vor.u32 %v4346, %v4342
        %v4348 = vrot.slane %v4347, 4
        %v4350 = vshll.u32 %v4158, 16
        %v4352 = vrot.slane %v4350, 5
        %v4353 = vsel %vm624, %v4348, %v4352
        %v4355 = vshrl.u32 %v4159, 16
        %v4357 = vrot.slane %v4355, 4
        %v4358 = vshll.u32 %v4159, 16
        %v4360 = vrot.slane %v4358, 5
        %v4361 = vor.u32 %v4357, %v4360
        %v4362 = vrot.slane %v4361, 4
        %v4364 = vshll.u32 %v4160, 16
        %v4366 = vrot.slane %v4364, 5
        %v4367 = vsel %vm624, %v4362, %v4366
        %v4368 = vshrl.u32 %v4160, 16
        %v4370 = vrot.slane %v4368, 4
        %v4371 = vor.u32 %v4370, %v4366
        %v4372 = vrot.slane %v4371, 4
        %v4374 = vshll.u32 %v4161, 16
        %v4376 = vrot.slane %v4374, 5
        %v4377 = vsel %vm624, %v4372, %v4376
        %v4379 = vshrl.u32 %v4162, 16
        %v4381 = vrot.slane %v4379, 4
        %v4382 = vshll.u32 %v4162, 16
        %v4384 = vrot.slane %v4382, 5
        %v4385 = vor.u32 %v4381, %v4384
        %v4386 = vrot.slane %v4385, 4
        %v4388 = vshll.u32 %v4163, 16
        %v4390 = vrot.slane %v4388, 5
        %v4391 = vsel %vm624, %v4386, %v4390
        %v4392 = vshrl.u32 %v4163, 16
        %v4394 = vrot.slane %v4392, 4
        %v4395 = vor.u32 %v4394, %v4390
        %v4396 = vrot.slane %v4395, 4
        %v4398 = vshll.u32 %v4164, 16
        %v4400 = vrot.slane %v4398, 5
        %v4401 = vsel %vm624, %v4396, %v4400
        %v4403 = vshrl.u32 %v4165, 16
        %v4405 = vrot.slane %v4403, 4
        %v4406 = vshll.u32 %v4165, 16
        %v4408 = vrot.slane %v4406, 5
        %v4409 = vor.u32 %v4405, %v4408
        %v4410 = vrot.slane %v4409, 4
        %v4412 = vshll.u32 %v4166, 16
        %v4414 = vrot.slane %v4412, 5
        %v4415 = vsel %vm624, %v4410, %v4414
        %v4416 = vshrl.u32 %v4166, 16
        %v4418 = vrot.slane %v4416, 4
        %v4419 = vor.u32 %v4418, %v4414
        %v4420 = vrot.slane %v4419, 4
        %v4422 = vshll.u32 %v4167, 16
        %v4424 = vrot.slane %v4422, 5
        %v4425 = vsel %vm624, %v4420, %v4424
        %v4427 = vshrl.u32 %v4168, 16
        %v4429 = vrot.slane %v4427, 4
        %v4430 = vshll.u32 %v4168, 16
        %v4432 = vrot.slane %v4430, 5
        %v4433 = vor.u32 %v4429, %v4432
        %v4434 = vrot.slane %v4433, 4
        %v4436 = vshll.u32 %v4169, 16
        %v4438 = vrot.slane %v4436, 5
        %v4439 = vsel %vm624, %v4434, %v4438
        %v4440 = vshrl.u32 %v4169, 16
        %v4442 = vrot.slane %v4440, 4
        %v4443 = vor.u32 %v4442, %v4438
        %v4444 = vrot.slane %v4443, 4
        %v4446 = vshll.u32 %v4170, 16
        %v4448 = vrot.slane %v4446, 5
        %v4449 = vsel %vm624, %v4444, %v4448
        %v4451 = vshrl.u32 %v4171, 16
        %v4453 = vrot.slane %v4451, 4
        %v4454 = vshll.u32 %v4171, 16
        %v4456 = vrot.slane %v4454, 5
        %v4457 = vor.u32 %v4453, %v4456
        %v4458 = vrot.slane %v4457, 4
        %v4460 = vshll.u32 %v4172, 16
        %v4462 = vrot.slane %v4460, 5
        %v4463 = vsel %vm624, %v4458, %v4462
        %v4464 = vshrl.u32 %v4172, 16
        %v4466 = vrot.slane %v4464, 4
        %v4467 = vor.u32 %v4466, %v4462
        %v4468 = vrot.slane %v4467, 4
        %v4470 = vshll.u32 %v4173, 16
        %v4472 = vrot.slane %v4470, 5
        %v4473 = vsel %vm624, %v4468, %v4472
        %v4475 = vshrl.u32 %v4174, 16
        %v4477 = vrot.slane %v4475, 4
        %v4478 = vshll.u32 %v4174, 16
        %v4480 = vrot.slane %v4478, 5
        %v4481 = vor.u32 %v4477, %v4480
        %v4482 = vrot.slane %v4481, 4
        %v4484 = vshll.u32 %v4175, 16
        %v4486 = vrot.slane %v4484, 5
        %v4487 = vsel %vm624, %v4482, %v4486
        %v4488 = vshrl.u32 %v4175, 16
        %v4490 = vrot.slane %v4488, 4
        %v4491 = vor.u32 %v4490, %v4486
        %v4492 = vrot.slane %v4491, 4
        %v4494 = vshll.u32 %v4176, 16
        %v4496 = vrot.slane %v4494, 5
        %v4497 = vsel %vm624, %v4492, %v4496
        %v4499 = vshrl.u32 %v4177, 16
        %v4501 = vrot.slane %v4499, 4
        %v4502 = vshll.u32 %v4177, 16
        %v4504 = vrot.slane %v4502, 5
        %v4505 = vor.u32 %v4501, %v4504
        %v4506 = vrot.slane %v4505, 4
        %v4508 = vshll.u32 %v4178, 16
        %v4510 = vrot.slane %v4508, 5
        %v4511 = vsel %vm624, %v4506, %v4510
        %v4512 = vshrl.u32 %v4178, 16
        %v4514 = vrot.slane %v4512, 4
        %v4515 = vor.u32 %v4514, %v4510
        %v4516 = vrot.slane %v4515, 4
        %v4518 = vshll.u32 %v4179, 16
        %v4520 = vrot.slane %v4518, 5
        %v4521 = vsel %vm624, %v4516, %v4520
        %v4523 = vshrl.u32 %v4180, 16
        %v4525 = vrot.slane %v4523, 4
        %v4526 = vshll.u32 %v4180, 16
        %v4528 = vrot.slane %v4526, 5
        %v4529 = vor.u32 %v4525, %v4528
        %v4530 = vrot.slane %v4529, 4
        %v4532 = vshll.u32 %v4181, 16
        %v4534 = vrot.slane %v4532, 5
        %v4535 = vsel %vm624, %v4530, %v4534
        %v4536 = vshrl.u32 %v4181, 16
        %v4538 = vrot.slane %v4536, 4
        %v4539 = vor.u32 %v4538, %v4534
        %v4540 = vrot.slane %v4539, 4
        %v4542 = vshll.u32 %v4182, 16
        %v4544 = vrot.slane %v4542, 5
        %v4545 = vsel %vm624, %v4540, %v4544
        %v4547 = vshrl.u32 %v4183, 16
        %v4549 = vrot.slane %v4547, 4
        %v4550 = vshll.u32 %v4183, 16
        %v4552 = vrot.slane %v4550, 5
        %v4553 = vor.u32 %v4549, %v4552
        %v4554 = vrot.slane %v4553, 4
        %v4556 = vshll.u32 %v4184, 16
        %v4558 = vrot.slane %v4556, 5
        %v4559 = vsel %vm624, %v4554, %v4558
        %v4560 = vshrl.u32 %v4184, 16
        %v4562 = vrot.slane %v4560, 4
        %v4563 = vor.u32 %v4562, %v4558
        %v4564 = vrot.slane %v4563, 4
        %v4566 = vshll.u32 %v4185, 16
        %v4568 = vrot.slane %v4566, 5
        %v4569 = vsel %vm624, %v4564, %v4568
        %s4570 = scalar_lea.vmem %s210, 14
        %v4571 = vld [vmem:[%s4570] sm:$0x3]
        %v4572 = vunpack.c.l.b16 %v4199
        %v4573 = vunpack.c.l.b16 %v4209
        %v4574 = vunpack.c.l.b16 %v4223
        %v4575 = vunpack.c.l.b16 %v4233
        %v4576 = vunpack.c.l.b16 %v4247
        %v4577 = vunpack.c.l.b16 %v4257
        %v4578 = vunpack.c.l.b16 %v4271
        %v4579 = vunpack.c.l.b16 %v4281
        %v4580 = vunpack.c.l.b16 %v4295
        %v4581 = vunpack.c.l.b16 %v4305
        %v4582 = vunpack.c.l.b16 %v4319
        %v4583 = vunpack.c.l.b16 %v4329
        %v4584 = vunpack.c.l.b16 %v4343
        %v4585 = vunpack.c.l.b16 %v4353
        %v4586 = vunpack.c.l.b16 %v4367
        %v4587 = vunpack.c.l.b16 %v4377
        %v4588 = vunpack.c.l.b16 %v4391
        %v4589 = vunpack.c.l.b16 %v4401
        %v4590 = vunpack.c.l.b16 %v4415
        %v4591 = vunpack.c.l.b16 %v4425
        %v4592 = vunpack.c.l.b16 %v4439
        %v4593 = vunpack.c.l.b16 %v4449
        %v4594 = vunpack.c.l.b16 %v4463
        %v4595 = vunpack.c.l.b16 %v4473
        %v4596 = vunpack.c.l.b16 %v4487
        %v4597 = vunpack.c.l.b16 %v4497
        %v4598 = vunpack.c.l.b16 %v4511
        %v4599 = vunpack.c.l.b16 %v4521
        %v4600 = vunpack.c.l.b16 %v4535
        %v4601 = vunpack.c.l.b16 %v4545
        %v4602 = vunpack.c.l.b16 %v4559
        %v4603 = vunpack.c.l.b16 %v4569
        %v4604 = vpack.c.b16 %v4573, %v4572
        %v4605 = vpack.c.b16 %v4575, %v4574
        %v4606 = vpack.c.b16 %v4577, %v4576
        %v4607 = vpack.c.b16 %v4579, %v4578
        %v4608 = vpack.c.b16 %v4581, %v4580
        %v4609 = vpack.c.b16 %v4583, %v4582
        %v4610 = vpack.c.b16 %v4585, %v4584
        %v4611 = vpack.c.b16 %v4587, %v4586
        %v4612 = vpack.c.b16 %v4589, %v4588
        %v4613 = vpack.c.b16 %v4591, %v4590
        %v4614 = vpack.c.b16 %v4593, %v4592
        %v4615 = vpack.c.b16 %v4595, %v4594
        %v4616 = vpack.c.b16 %v4597, %v4596
        %v4617 = vpack.c.b16 %v4599, %v4598
        %v4618 = vpack.c.b16 %v4601, %v4600
        %v4619 = vpack.c.b16 %v4603, %v4602
        %v4621 = vsel %vm328, %v4604, 0
        %v4624 = vsel %vm328, %v4605, 0
        %v4627 = vsel %vm328, %v4606, 0
        %v4630 = vsel %vm328, %v4607, 0
        %v4633 = vsel %vm328, %v4608, 0
        %v4636 = vsel %vm328, %v4609, 0
        %v4639 = vsel %vm328, %v4610, 0
        %v4642 = vsel %vm328, %v4611, 0
        %v4645 = vsel %vm328, %v4612, 0
        %v4648 = vsel %vm328, %v4613, 0
        %v4651 = vsel %vm328, %v4614, 0
        %v4654 = vsel %vm328, %v4615, 0
        %v4657 = vsel %vm328, %v4616, 0
        %v4660 = vsel %vm328, %v4617, 0
        %v4663 = vsel %vm328, %v4618, 0
        %v4666 = vsel %vm328, %v4619, 0
        %v4669 = vsel %vm377, %v4571, 0
        %4671 = vmatprep.subr.bf16.mxu0 0
        %4672 = vmatpush1.bf16.msra.mxu0 0
        %4673 = vmatprep.subr.bf16.mxu0 0
        %4674 = vmatpush1.bf16.msra.mxu0 0
        %4675 = vmatprep.subr.bf16.mxu0 0
        %4676 = vmatpush1.bf16.msra.mxu0 0
        %4677 = vmatprep.subr.bf16.mxu0 0
        %4678 = vmatpush1.bf16.msra.mxu0 0
        %4679 = vmatprep.subr.bf16.mxu0 0
        %4680 = vmatpush1.bf16.msra.mxu0 0
        %4681 = vmatprep.subr.bf16.mxu0 0
        %4682 = vmatpush1.bf16.msra.mxu0 0
        %4683 = vmatprep.subr.bf16.mxu0 0
        %4684 = vmatpush1.bf16.msra.mxu0 0
        %4685 = vmatprep.subr.bf16.mxu0 0
        %4686 = vmatpush1.bf16.msra.mxu0 %v4669
        %4687 = vmatprep.subr.bf16.mxu0 0
        %4688 = vmatpush2.bf16.msra.mxu0 0
        %4689 = vmatprep.subr.bf16.mxu0 0
        %4690 = vmatpush2.bf16.msra.mxu0 0
        %4691 = vmatprep.subr.bf16.mxu0 0
        %4692 = vmatpush2.bf16.msra.mxu0 0
        %4693 = vmatprep.subr.bf16.mxu0 0
        %4694 = vmatpush2.bf16.msra.mxu0 0
        %4695 = vmatprep.subr.bf16.mxu0 0
        %4696 = vmatpush2.bf16.msra.mxu0 0
        %4697 = vmatprep.subr.bf16.mxu0 0
        %4698 = vmatpush2.bf16.msra.mxu0 0
        %4699 = vmatprep.subr.bf16.mxu0 0
        %4700 = vmatpush2.bf16.msra.mxu0 0
        %4701 = vmatprep.subr.bf16.mxu0 0
        %4702 = vmatpush2.bf16.msra.mxu0 0
        %4703 = vmatprep.mubr.bf16.mxu0 0
        %4704 = vmatmul.mubr.bf16.gmra.mxu0 %v4621
        %v4705 = vpop.f32.mrf.mxu0
        %v4706 = vadd.f32 0.0, %v4705
        %v4707 = vpop.f32.mrf.mxu0
        %v4708 = vpop.f32.mrf.mxu0
        %v4709 = vadd.f32 0.0, %v4708
        %v4710 = vpop.f32.mrf.mxu0
        %4711 = vmatprep.mubr.bf16.mxu0 0
        %4712 = vmatmul.mubr.bf16.gmra.mxu0 %v4624
        %v4713 = vpop.f32.mrf.mxu0
        %v4714 = vadd.f32 0.0, %v4713
        %v4715 = vpop.f32.mrf.mxu0
        %v4716 = vpop.f32.mrf.mxu0
        %v4717 = vadd.f32 0.0, %v4716
        %v4718 = vpop.f32.mrf.mxu0
        %4719 = vmatprep.mubr.bf16.mxu0 0
        %4720 = vmatmul.mubr.bf16.gmra.mxu0 %v4627
        %v4721 = vpop.f32.mrf.mxu0
        %v4722 = vadd.f32 0.0, %v4721
        %v4723 = vpop.f32.mrf.mxu0
        %v4724 = vpop.f32.mrf.mxu0
        %v4725 = vadd.f32 0.0, %v4724
        %v4726 = vpop.f32.mrf.mxu0
        %4727 = vmatprep.mubr.bf16.mxu0 0
        %4728 = vmatmul.mubr.bf16.gmra.mxu0 %v4630
        %v4729 = vpop.f32.mrf.mxu0
        %v4730 = vadd.f32 0.0, %v4729
        %v4731 = vpop.f32.mrf.mxu0
        %v4732 = vpop.f32.mrf.mxu0
        %v4733 = vadd.f32 0.0, %v4732
        %v4734 = vpop.f32.mrf.mxu0
        %4735 = vmatprep.mubr.bf16.mxu0 0
        %4736 = vmatmul.mubr.bf16.gmra.mxu0 %v4633
        %v4737 = vpop.f32.mrf.mxu0
        %v4738 = vadd.f32 0.0, %v4737
        %v4739 = vpop.f32.mrf.mxu0
        %v4740 = vpop.f32.mrf.mxu0
        %v4741 = vadd.f32 0.0, %v4740
        %v4742 = vpop.f32.mrf.mxu0
        %4743 = vmatprep.mubr.bf16.mxu0 0
        %4744 = vmatmul.mubr.bf16.gmra.mxu0 %v4636
        %v4745 = vpop.f32.mrf.mxu0
        %v4746 = vadd.f32 0.0, %v4745
        %v4747 = vpop.f32.mrf.mxu0
        %v4748 = vpop.f32.mrf.mxu0
        %v4749 = vadd.f32 0.0, %v4748
        %v4750 = vpop.f32.mrf.mxu0
        %4751 = vmatprep.mubr.bf16.mxu0 0
        %4752 = vmatmul.mubr.bf16.gmra.mxu0 %v4639
        %v4753 = vpop.f32.mrf.mxu0
        %v4754 = vadd.f32 0.0, %v4753
        %v4755 = vpop.f32.mrf.mxu0
        %v4756 = vpop.f32.mrf.mxu0
        %v4757 = vadd.f32 0.0, %v4756
        %v4758 = vpop.f32.mrf.mxu0
        %4759 = vmatprep.mubr.bf16.mxu0 0
        %4760 = vmatmul.mubr.bf16.gmra.mxu0 %v4642
        %v4761 = vpop.f32.mrf.mxu0
        %v4762 = vadd.f32 0.0, %v4761
        %v4763 = vpop.f32.mrf.mxu0
        %v4764 = vpop.f32.mrf.mxu0
        %v4765 = vadd.f32 0.0, %v4764
        %v4766 = vpop.f32.mrf.mxu0
        %4767 = vmatprep.mubr.bf16.mxu0 0
        %4768 = vmatmul.mubr.bf16.gmra.mxu0 %v4645
        %v4769 = vpop.f32.mrf.mxu0
        %v4770 = vadd.f32 0.0, %v4769
        %v4771 = vpop.f32.mrf.mxu0
        %v4772 = vpop.f32.mrf.mxu0
        %v4773 = vadd.f32 0.0, %v4772
        %v4774 = vpop.f32.mrf.mxu0
        %4775 = vmatprep.mubr.bf16.mxu0 0
        %4776 = vmatmul.mubr.bf16.gmra.mxu0 %v4648
        %v4777 = vpop.f32.mrf.mxu0
        %v4778 = vadd.f32 0.0, %v4777
        %v4779 = vpop.f32.mrf.mxu0
        %v4780 = vpop.f32.mrf.mxu0
        %v4781 = vadd.f32 0.0, %v4780
        %v4782 = vpop.f32.mrf.mxu0
        %4783 = vmatprep.mubr.bf16.mxu0 0
        %4784 = vmatmul.mubr.bf16.gmra.mxu0 %v4651
        %v4785 = vpop.f32.mrf.mxu0
        %v4786 = vadd.f32 0.0, %v4785
        %v4787 = vpop.f32.mrf.mxu0
        %v4788 = vpop.f32.mrf.mxu0
        %v4789 = vadd.f32 0.0, %v4788
        %v4790 = vpop.f32.mrf.mxu0
        %4791 = vmatprep.mubr.bf16.mxu0 0
        %4792 = vmatmul.mubr.bf16.gmra.mxu0 %v4654
        %v4793 = vpop.f32.mrf.mxu0
        %v4794 = vadd.f32 0.0, %v4793
        %v4795 = vpop.f32.mrf.mxu0
        %v4796 = vpop.f32.mrf.mxu0
        %v4797 = vadd.f32 0.0, %v4796
        %v4798 = vpop.f32.mrf.mxu0
        %4799 = vmatprep.mubr.bf16.mxu0 0
        %4800 = vmatmul.mubr.bf16.gmra.mxu0 %v4657
        %v4801 = vpop.f32.mrf.mxu0
        %v4802 = vadd.f32 0.0, %v4801
        %v4803 = vpop.f32.mrf.mxu0
        %v4804 = vpop.f32.mrf.mxu0
        %v4805 = vadd.f32 0.0, %v4804
        %v4806 = vpop.f32.mrf.mxu0
        %4807 = vmatprep.mubr.bf16.mxu0 0
        %4808 = vmatmul.mubr.bf16.gmra.mxu0 %v4660
        %v4809 = vpop.f32.mrf.mxu0
        %v4810 = vadd.f32 0.0, %v4809
        %v4811 = vpop.f32.mrf.mxu0
        %v4812 = vpop.f32.mrf.mxu0
        %v4813 = vadd.f32 0.0, %v4812
        %v4814 = vpop.f32.mrf.mxu0
        %4815 = vmatprep.mubr.bf16.mxu0 0
        %4816 = vmatmul.mubr.bf16.gmra.mxu0 %v4663
        %v4817 = vpop.f32.mrf.mxu0
        %v4818 = vadd.f32 0.0, %v4817
        %v4819 = vpop.f32.mrf.mxu0
        %v4820 = vpop.f32.mrf.mxu0
        %v4821 = vadd.f32 0.0, %v4820
        %v4822 = vpop.f32.mrf.mxu0
        %4823 = vmatprep.mubr.bf16.mxu0 0
        %4824 = vmatmul.mubr.bf16.gmra.mxu0 %v4666
        %v4825 = vpop.f32.mrf.mxu0
        %v4826 = vadd.f32 0.0, %v4825
        %v4827 = vpop.f32.mrf.mxu0
        %v4828 = vpop.f32.mrf.mxu0
        %v4829 = vadd.f32 0.0, %v4828
        %v4830 = vpop.f32.mrf.mxu0
        %4831 = vdwg.mxu0
        %v4832 = vld [vmem:[#allocation2] sm:$0xff]
        %v4833 = vld [vmem:[#allocation2 + $0x8] sm:$0xff]
        %v4834 = vld [vmem:[#allocation2 + $0x10] sm:$0xff]
        %v4835 = vld [vmem:[#allocation2 + $0x18] sm:$0xff]
        %v4836 = vld [vmem:[#allocation2 + $0x20] sm:$0xff]
        %v4837 = vld [vmem:[#allocation2 + $0x28] sm:$0xff]
        %v4838 = vld [vmem:[#allocation2 + $0x30] sm:$0xff]
        %v4839 = vld [vmem:[#allocation2 + $0x38] sm:$0xff]
        %v4840 = vld [vmem:[#allocation2 + $0x40] sm:$0xff]
        %v4841 = vld [vmem:[#allocation2 + $0x48] sm:$0xff]
        %v4842 = vld [vmem:[#allocation2 + $0x50] sm:$0xff]
        %v4843 = vld [vmem:[#allocation2 + $0x58] sm:$0xff]
        %v4844 = vld [vmem:[#allocation2 + $0x60] sm:$0xff]
        %v4845 = vld [vmem:[#allocation2 + $0x68] sm:$0xff]
        %v4846 = vld [vmem:[#allocation2 + $0x70] sm:$0xff]
        %v4847 = vld [vmem:[#allocation2 + $0x78] sm:$0xff]
        %v4848 = vld [vmem:[#allocation2 + $0x80] sm:$0xff]
        %v4849 = vld [vmem:[#allocation2 + $0x88] sm:$0xff]
        %v4850 = vld [vmem:[#allocation2 + $0x90] sm:$0xff]
        %v4851 = vld [vmem:[#allocation2 + $0x98] sm:$0xff]
        %v4852 = vld [vmem:[#allocation2 + $0xa0] sm:$0xff]
        %v4853 = vld [vmem:[#allocation2 + $0xa8] sm:$0xff]
        %v4854 = vld [vmem:[#allocation2 + $0xb0] sm:$0xff]
        %v4855 = vld [vmem:[#allocation2 + $0xb8] sm:$0xff]
        %v4856 = vld [vmem:[#allocation2 + $0xc0] sm:$0xff]
        %v4857 = vld [vmem:[#allocation2 + $0xc8] sm:$0xff]
        %v4858 = vld [vmem:[#allocation2 + $0xd0] sm:$0xff]
        %v4859 = vld [vmem:[#allocation2 + $0xd8] sm:$0xff]
        %v4860 = vld [vmem:[#allocation2 + $0xe0] sm:$0xff]
        %v4861 = vld [vmem:[#allocation2 + $0xe8] sm:$0xff]
        %v4862 = vld [vmem:[#allocation2 + $0xf0] sm:$0xff]
        %v4863 = vld [vmem:[#allocation2 + $0xf8] sm:$0xff]
        %v4864 = vadd.f32 %v4832, %v4706
        %v4865 = vadd.f32 %v4833, %v4709
        %v4866 = vadd.f32 %v4834, %v4714
        %v4867 = vadd.f32 %v4835, %v4717
        %v4868 = vadd.f32 %v4836, %v4722
        %v4869 = vadd.f32 %v4837, %v4725
        %v4870 = vadd.f32 %v4838, %v4730
        %v4871 = vadd.f32 %v4839, %v4733
        %v4872 = vadd.f32 %v4840, %v4738
        %v4873 = vadd.f32 %v4841, %v4741
        %v4874 = vadd.f32 %v4842, %v4746
        %v4875 = vadd.f32 %v4843, %v4749
        %v4876 = vadd.f32 %v4844, %v4754
        %v4877 = vadd.f32 %v4845, %v4757
        %v4878 = vadd.f32 %v4846, %v4762
        %v4879 = vadd.f32 %v4847, %v4765
        %v4880 = vadd.f32 %v4848, %v4770
        %v4881 = vadd.f32 %v4849, %v4773
        %v4882 = vadd.f32 %v4850, %v4778
        %v4883 = vadd.f32 %v4851, %v4781
        %v4884 = vadd.f32 %v4852, %v4786
        %v4885 = vadd.f32 %v4853, %v4789
        %v4886 = vadd.f32 %v4854, %v4794
        %v4887 = vadd.f32 %v4855, %v4797
        %v4888 = vadd.f32 %v4856, %v4802
        %v4889 = vadd.f32 %v4857, %v4805
        %v4890 = vadd.f32 %v4858, %v4810
        %v4891 = vadd.f32 %v4859, %v4813
        %v4892 = vadd.f32 %v4860, %v4818
        %v4893 = vadd.f32 %v4861, %v4821
        %v4894 = vadd.f32 %v4862, %v4826
        %v4895 = vadd.f32 %v4863, %v4829
        %4896 = vst [vmem:[#allocation2] sm:$0xff] %v4864
        %4897 = vst [vmem:[#allocation2 + $0x8] sm:$0xff] %v4865
        %4898 = vst [vmem:[#allocation2 + $0x10] sm:$0xff] %v4866
        %4899 = vst [vmem:[#allocation2 + $0x18] sm:$0xff] %v4867
        %4900 = vst [vmem:[#allocation2 + $0x20] sm:$0xff] %v4868
        %4901 = vst [vmem:[#allocation2 + $0x28] sm:$0xff] %v4869
        %4902 = vst [vmem:[#allocation2 + $0x30] sm:$0xff] %v4870
        %4903 = vst [vmem:[#allocation2 + $0x38] sm:$0xff] %v4871
        %4904 = vst [vmem:[#allocation2 + $0x40] sm:$0xff] %v4872
        %4905 = vst [vmem:[#allocation2 + $0x48] sm:$0xff] %v4873
        %4906 = vst [vmem:[#allocation2 + $0x50] sm:$0xff] %v4874
        %4907 = vst [vmem:[#allocation2 + $0x58] sm:$0xff] %v4875
        %4908 = vst [vmem:[#allocation2 + $0x60] sm:$0xff] %v4876
        %4909 = vst [vmem:[#allocation2 + $0x68] sm:$0xff] %v4877
        %4910 = vst [vmem:[#allocation2 + $0x70] sm:$0xff] %v4878
        %4911 = vst [vmem:[#allocation2 + $0x78] sm:$0xff] %v4879
        %4912 = vst [vmem:[#allocation2 + $0x80] sm:$0xff] %v4880
        %4913 = vst [vmem:[#allocation2 + $0x88] sm:$0xff] %v4881
        %4914 = vst [vmem:[#allocation2 + $0x90] sm:$0xff] %v4882
        %4915 = vst [vmem:[#allocation2 + $0x98] sm:$0xff] %v4883
        %4916 = vst [vmem:[#allocation2 + $0xa0] sm:$0xff] %v4884
        %4917 = vst [vmem:[#allocation2 + $0xa8] sm:$0xff] %v4885
        %4918 = vst [vmem:[#allocation2 + $0xb0] sm:$0xff] %v4886
        %4919 = vst [vmem:[#allocation2 + $0xb8] sm:$0xff] %v4887
        %4920 = vst [vmem:[#allocation2 + $0xc0] sm:$0xff] %v4888
        %4921 = vst [vmem:[#allocation2 + $0xc8] sm:$0xff] %v4889
        %4922 = vst [vmem:[#allocation2 + $0xd0] sm:$0xff] %v4890
        %4923 = vst [vmem:[#allocation2 + $0xd8] sm:$0xff] %v4891
        %4924 = vst [vmem:[#allocation2 + $0xe0] sm:$0xff] %v4892
        %4925 = vst [vmem:[#allocation2 + $0xe8] sm:$0xff] %v4893
        %4926 = vst [vmem:[#allocation2 + $0xf0] sm:$0xff] %v4894
        %4927 = vst [vmem:[#allocation2 + $0xf8] sm:$0xff] %v4895
        %v4928 = vld [vmem:[%s3715] sm:$0xe]
        %v4929 = vld [vmem:[%s3715 + $0x4] sm:$0xf]
        %v4930 = vld [vmem:[%s3715 + $0x8] sm:$0x1]
        %v4931 = vld [vmem:[%s3715 + $0xc] sm:$0xe]
        %v4932 = vld [vmem:[%s3715 + $0x10] sm:$0xf]
        %v4933 = vld [vmem:[%s3715 + $0x14] sm:$0x1]
        %v4934 = vld [vmem:[%s3715 + $0x18] sm:$0xe]
        %v4935 = vld [vmem:[%s3715 + $0x1c] sm:$0xf]
        %v4936 = vld [vmem:[%s3715 + $0x20] sm:$0x1]
        %v4937 = vld [vmem:[%s3715 + $0x24] sm:$0xe]
        %v4938 = vld [vmem:[%s3715 + $0x28] sm:$0xf]
        %v4939 = vld [vmem:[%s3715 + $0x2c] sm:$0x1]
        %v4940 = vld [vmem:[%s3715 + $0x30] sm:$0xe]
        %v4941 = vld [vmem:[%s3715 + $0x34] sm:$0xf]
        %v4942 = vld [vmem:[%s3715 + $0x38] sm:$0x1]
        %v4943 = vld [vmem:[%s3715 + $0x3c] sm:$0xe]
        %v4944 = vld [vmem:[%s3715 + $0x40] sm:$0xf]
        %v4945 = vld [vmem:[%s3715 + $0x44] sm:$0x1]
        %v4946 = vld [vmem:[%s3715 + $0x48] sm:$0xe]
        %v4947 = vld [vmem:[%s3715 + $0x4c] sm:$0xf]
        %v4948 = vld [vmem:[%s3715 + $0x50] sm:$0x1]
        %v4949 = vld [vmem:[%s3715 + $0x54] sm:$0xe]
        %v4950 = vld [vmem:[%s3715 + $0x58] sm:$0xf]
        %v4951 = vld [vmem:[%s3715 + $0x5c] sm:$0x1]
        %v4952 = vld [vmem:[%s3715 + $0x60] sm:$0xe]
        %v4953 = vld [vmem:[%s3715 + $0x64] sm:$0xf]
        %v4954 = vld [vmem:[%s3715 + $0x68] sm:$0x1]
        %v4955 = vld [vmem:[%s3715 + $0x6c] sm:$0xe]
        %v4956 = vld [vmem:[%s3715 + $0x70] sm:$0xf]
        %v4957 = vld [vmem:[%s3715 + $0x74] sm:$0x1]
        %v4958 = vld [vmem:[%s3715 + $0x78] sm:$0xe]
        %v4959 = vld [vmem:[%s3715 + $0x7c] sm:$0xf]
        %v4960 = vld [vmem:[%s3715 + $0x80] sm:$0x1]
        %v4961 = vld [vmem:[%s3715 + $0x84] sm:$0xe]
        %v4962 = vld [vmem:[%s3715 + $0x88] sm:$0xf]
        %v4963 = vld [vmem:[%s3715 + $0x8c] sm:$0x1]
        %v4964 = vld [vmem:[%s3715 + $0x90] sm:$0xe]
        %v4965 = vld [vmem:[%s3715 + $0x94] sm:$0xf]
        %v4966 = vld [vmem:[%s3715 + $0x98] sm:$0x1]
        %v4967 = vld [vmem:[%s3715 + $0x9c] sm:$0xe]
        %v4968 = vld [vmem:[%s3715 + $0xa0] sm:$0xf]
        %v4969 = vld [vmem:[%s3715 + $0xa4] sm:$0x1]
        %v4970 = vld [vmem:[%s3715 + $0xa8] sm:$0xe]
        %v4971 = vld [vmem:[%s3715 + $0xac] sm:$0xf]
        %v4972 = vld [vmem:[%s3715 + $0xb0] sm:$0x1]
        %v4973 = vld [vmem:[%s3715 + $0xb4] sm:$0xe]
        %v4974 = vld [vmem:[%s3715 + $0xb8] sm:$0xf]
        %v4975 = vld [vmem:[%s3715 + $0xbc] sm:$0x1]
        %v5024 = vrot.slane %v4928, 5
        %v5025 = vrot.slane %v5024, 4
        %v5026 = vrot.slane %v4929, 5
        %v5027 = vsel %vm1465, %v5025, %v5026
        %v5028 = vrot.slane %v5026, 4
        %v5029 = vrot.slane %v4930, 5
        %v5030 = vsel %vm1465, %v5028, %v5029
        %v5031 = vrot.slane %v4931, 5
        %v5032 = vrot.slane %v5031, 4
        %v5033 = vrot.slane %v4932, 5
        %v5034 = vsel %vm1465, %v5032, %v5033
        %v5035 = vrot.slane %v5033, 4
        %v5036 = vrot.slane %v4933, 5
        %v5037 = vsel %vm1465, %v5035, %v5036
        %v5038 = vrot.slane %v4934, 5
        %v5039 = vrot.slane %v5038, 4
        %v5040 = vrot.slane %v4935, 5
        %v5041 = vsel %vm1465, %v5039, %v5040
        %v5042 = vrot.slane %v5040, 4
        %v5043 = vrot.slane %v4936, 5
        %v5044 = vsel %vm1465, %v5042, %v5043
        %v5045 = vrot.slane %v4937, 5
        %v5046 = vrot.slane %v5045, 4
        %v5047 = vrot.slane %v4938, 5
        %v5048 = vsel %vm1465, %v5046, %v5047
        %v5049 = vrot.slane %v5047, 4
        %v5050 = vrot.slane %v4939, 5
        %v5051 = vsel %vm1465, %v5049, %v5050
        %v5052 = vrot.slane %v4940, 5
        %v5053 = vrot.slane %v5052, 4
        %v5054 = vrot.slane %v4941, 5
        %v5055 = vsel %vm1465, %v5053, %v5054
        %v5056 = vrot.slane %v5054, 4
        %v5057 = vrot.slane %v4942, 5
        %v5058 = vsel %vm1465, %v5056, %v5057
        %v5059 = vrot.slane %v4943, 5
        %v5060 = vrot.slane %v5059, 4
        %v5061 = vrot.slane %v4944, 5
        %v5062 = vsel %vm1465, %v5060, %v5061
        %v5063 = vrot.slane %v5061, 4
        %v5064 = vrot.slane %v4945, 5
        %v5065 = vsel %vm1465, %v5063, %v5064
        %v5066 = vrot.slane %v4946, 5
        %v5067 = vrot.slane %v5066, 4
        %v5068 = vrot.slane %v4947, 5
        %v5069 = vsel %vm1465, %v5067, %v5068
        %v5070 = vrot.slane %v5068, 4
        %v5071 = vrot.slane %v4948, 5
        %v5072 = vsel %vm1465, %v5070, %v5071
        %v5073 = vrot.slane %v4949, 5
        %v5074 = vrot.slane %v5073, 4
        %v5075 = vrot.slane %v4950, 5
        %v5076 = vsel %vm1465, %v5074, %v5075
        %v5077 = vrot.slane %v5075, 4
        %v5078 = vrot.slane %v4951, 5
        %v5079 = vsel %vm1465, %v5077, %v5078
        %v5080 = vrot.slane %v4952, 5
        %v5081 = vrot.slane %v5080, 4
        %v5082 = vrot.slane %v4953, 5
        %v5083 = vsel %vm1465, %v5081, %v5082
        %v5084 = vrot.slane %v5082, 4
        %v5085 = vrot.slane %v4954, 5
        %v5086 = vsel %vm1465, %v5084, %v5085
        %v5087 = vrot.slane %v4955, 5
        %v5088 = vrot.slane %v5087, 4
        %v5089 = vrot.slane %v4956, 5
        %v5090 = vsel %vm1465, %v5088, %v5089
        %v5091 = vrot.slane %v5089, 4
        %v5092 = vrot.slane %v4957, 5
        %v5093 = vsel %vm1465, %v5091, %v5092
        %v5094 = vrot.slane %v4958, 5
        %v5095 = vrot.slane %v5094, 4
        %v5096 = vrot.slane %v4959, 5
        %v5097 = vsel %vm1465, %v5095, %v5096
        %v5098 = vrot.slane %v5096, 4
        %v5099 = vrot.slane %v4960, 5
        %v5100 = vsel %vm1465, %v5098, %v5099
        %v5101 = vrot.slane %v4961, 5
        %v5102 = vrot.slane %v5101, 4
        %v5103 = vrot.slane %v4962, 5
        %v5104 = vsel %vm1465, %v5102, %v5103
        %v5105 = vrot.slane %v5103, 4
        %v5106 = vrot.slane %v4963, 5
        %v5107 = vsel %vm1465, %v5105, %v5106
        %v5108 = vrot.slane %v4964, 5
        %v5109 = vrot.slane %v5108, 4
        %v5110 = vrot.slane %v4965, 5
        %v5111 = vsel %vm1465, %v5109, %v5110
        %v5112 = vrot.slane %v5110, 4
        %v5113 = vrot.slane %v4966, 5
        %v5114 = vsel %vm1465, %v5112, %v5113
        %v5115 = vrot.slane %v4967, 5
        %v5116 = vrot.slane %v5115, 4
        %v5117 = vrot.slane %v4968, 5
        %v5118 = vsel %vm1465, %v5116, %v5117
        %v5119 = vrot.slane %v5117, 4
        %v5120 = vrot.slane %v4969, 5
        %v5121 = vsel %vm1465, %v5119, %v5120
        %v5122 = vrot.slane %v4970, 5
        %v5123 = vrot.slane %v5122, 4
        %v5124 = vrot.slane %v4971, 5
        %v5125 = vsel %vm1465, %v5123, %v5124
        %v5126 = vrot.slane %v5124, 4
        %v5127 = vrot.slane %v4972, 5
        %v5128 = vsel %vm1465, %v5126, %v5127
        %v5129 = vrot.slane %v4973, 5
        %v5130 = vrot.slane %v5129, 4
        %v5131 = vrot.slane %v4974, 5
        %v5132 = vsel %vm1465, %v5130, %v5131
        %v5133 = vrot.slane %v5131, 4
        %v5134 = vrot.slane %v4975, 5
        %v5135 = vsel %vm1465, %v5133, %v5134
        %s5136 = scalar_lea.vmem %s210, 16
        %v5137 = vld [vmem:[%s5136] sm:$0x3]
        %v5138 = vunpack.c.l.b16 %v5027
        %v5139 = vunpack.c.l.b16 %v5030
        %v5140 = vunpack.c.l.b16 %v5034
        %v5141 = vunpack.c.l.b16 %v5037
        %v5142 = vunpack.c.l.b16 %v5041
        %v5143 = vunpack.c.l.b16 %v5044
        %v5144 = vunpack.c.l.b16 %v5048
        %v5145 = vunpack.c.l.b16 %v5051
        %v5146 = vunpack.c.l.b16 %v5055
        %v5147 = vunpack.c.l.b16 %v5058
        %v5148 = vunpack.c.l.b16 %v5062
        %v5149 = vunpack.c.l.b16 %v5065
        %v5150 = vunpack.c.l.b16 %v5069
        %v5151 = vunpack.c.l.b16 %v5072
        %v5152 = vunpack.c.l.b16 %v5076
        %v5153 = vunpack.c.l.b16 %v5079
        %v5154 = vunpack.c.l.b16 %v5083
        %v5155 = vunpack.c.l.b16 %v5086
        %v5156 = vunpack.c.l.b16 %v5090
        %v5157 = vunpack.c.l.b16 %v5093
        %v5158 = vunpack.c.l.b16 %v5097
        %v5159 = vunpack.c.l.b16 %v5100
        %v5160 = vunpack.c.l.b16 %v5104
        %v5161 = vunpack.c.l.b16 %v5107
        %v5162 = vunpack.c.l.b16 %v5111
        %v5163 = vunpack.c.l.b16 %v5114
        %v5164 = vunpack.c.l.b16 %v5118
        %v5165 = vunpack.c.l.b16 %v5121
        %v5166 = vunpack.c.l.b16 %v5125
        %v5167 = vunpack.c.l.b16 %v5128
        %v5168 = vunpack.c.l.b16 %v5132
        %v5169 = vunpack.c.l.b16 %v5135
        %v5170 = vpack.c.b16 %v5139, %v5138
        %v5171 = vpack.c.b16 %v5141, %v5140
        %v5172 = vpack.c.b16 %v5143, %v5142
        %v5173 = vpack.c.b16 %v5145, %v5144
        %v5174 = vpack.c.b16 %v5147, %v5146
        %v5175 = vpack.c.b16 %v5149, %v5148
        %v5176 = vpack.c.b16 %v5151, %v5150
        %v5177 = vpack.c.b16 %v5153, %v5152
        %v5178 = vpack.c.b16 %v5155, %v5154
        %v5179 = vpack.c.b16 %v5157, %v5156
        %v5180 = vpack.c.b16 %v5159, %v5158
        %v5181 = vpack.c.b16 %v5161, %v5160
        %v5182 = vpack.c.b16 %v5163, %v5162
        %v5183 = vpack.c.b16 %v5165, %v5164
        %v5184 = vpack.c.b16 %v5167, %v5166
        %v5185 = vpack.c.b16 %v5169, %v5168
        %v5187 = vsel %vm328, %v5170, 0
        %v5190 = vsel %vm328, %v5171, 0
        %v5193 = vsel %vm328, %v5172, 0
        %v5196 = vsel %vm328, %v5173, 0
        %v5199 = vsel %vm328, %v5174, 0
        %v5202 = vsel %vm328, %v5175, 0
        %v5205 = vsel %vm328, %v5176, 0
        %v5208 = vsel %vm328, %v5177, 0
        %v5211 = vsel %vm328, %v5178, 0
        %v5214 = vsel %vm328, %v5179, 0
        %v5217 = vsel %vm328, %v5180, 0
        %v5220 = vsel %vm328, %v5181, 0
        %v5223 = vsel %vm328, %v5182, 0
        %v5226 = vsel %vm328, %v5183, 0
        %v5229 = vsel %vm328, %v5184, 0
        %v5232 = vsel %vm328, %v5185, 0
        %v5235 = vsel %vm377, %v5137, 0
        %5237 = vmatprep.subr.bf16.mxu0 0
        %5238 = vmatpush1.bf16.msra.mxu0 0
        %5239 = vmatprep.subr.bf16.mxu0 0
        %5240 = vmatpush1.bf16.msra.mxu0 0
        %5241 = vmatprep.subr.bf16.mxu0 0
        %5242 = vmatpush1.bf16.msra.mxu0 0
        %5243 = vmatprep.subr.bf16.mxu0 0
        %5244 = vmatpush1.bf16.msra.mxu0 0
        %5245 = vmatprep.subr.bf16.mxu0 0
        %5246 = vmatpush1.bf16.msra.mxu0 0
        %5247 = vmatprep.subr.bf16.mxu0 0
        %5248 = vmatpush1.bf16.msra.mxu0 0
        %5249 = vmatprep.subr.bf16.mxu0 0
        %5250 = vmatpush1.bf16.msra.mxu0 0
        %5251 = vmatprep.subr.bf16.mxu0 0
        %5252 = vmatpush1.bf16.msra.mxu0 %v5235
        %5253 = vmatprep.subr.bf16.mxu0 0
        %5254 = vmatpush2.bf16.msra.mxu0 0
        %5255 = vmatprep.subr.bf16.mxu0 0
        %5256 = vmatpush2.bf16.msra.mxu0 0
        %5257 = vmatprep.subr.bf16.mxu0 0
        %5258 = vmatpush2.bf16.msra.mxu0 0
        %5259 = vmatprep.subr.bf16.mxu0 0
        %5260 = vmatpush2.bf16.msra.mxu0 0
        %5261 = vmatprep.subr.bf16.mxu0 0
        %5262 = vmatpush2.bf16.msra.mxu0 0
        %5263 = vmatprep.subr.bf16.mxu0 0
        %5264 = vmatpush2.bf16.msra.mxu0 0
        %5265 = vmatprep.subr.bf16.mxu0 0
        %5266 = vmatpush2.bf16.msra.mxu0 0
        %5267 = vmatprep.subr.bf16.mxu0 0
        %5268 = vmatpush2.bf16.msra.mxu0 0
        %5269 = vmatprep.mubr.bf16.mxu0 0
        %5270 = vmatmul.mubr.bf16.gmra.mxu0 %v5187
        %v5271 = vpop.f32.mrf.mxu0
        %v5272 = vadd.f32 0.0, %v5271
        %v5273 = vpop.f32.mrf.mxu0
        %v5274 = vpop.f32.mrf.mxu0
        %v5275 = vadd.f32 0.0, %v5274
        %v5276 = vpop.f32.mrf.mxu0
        %5277 = vmatprep.mubr.bf16.mxu0 0
        %5278 = vmatmul.mubr.bf16.gmra.mxu0 %v5190
        %v5279 = vpop.f32.mrf.mxu0
        %v5280 = vadd.f32 0.0, %v5279
        %v5281 = vpop.f32.mrf.mxu0
        %v5282 = vpop.f32.mrf.mxu0
        %v5283 = vadd.f32 0.0, %v5282
        %v5284 = vpop.f32.mrf.mxu0
        %5285 = vmatprep.mubr.bf16.mxu0 0
        %5286 = vmatmul.mubr.bf16.gmra.mxu0 %v5193
        %v5287 = vpop.f32.mrf.mxu0
        %v5288 = vadd.f32 0.0, %v5287
        %v5289 = vpop.f32.mrf.mxu0
        %v5290 = vpop.f32.mrf.mxu0
        %v5291 = vadd.f32 0.0, %v5290
        %v5292 = vpop.f32.mrf.mxu0
        %5293 = vmatprep.mubr.bf16.mxu0 0
        %5294 = vmatmul.mubr.bf16.gmra.mxu0 %v5196
        %v5295 = vpop.f32.mrf.mxu0
        %v5296 = vadd.f32 0.0, %v5295
        %v5297 = vpop.f32.mrf.mxu0
        %v5298 = vpop.f32.mrf.mxu0
        %v5299 = vadd.f32 0.0, %v5298
        %v5300 = vpop.f32.mrf.mxu0
        %5301 = vmatprep.mubr.bf16.mxu0 0
        %5302 = vmatmul.mubr.bf16.gmra.mxu0 %v5199
        %v5303 = vpop.f32.mrf.mxu0
        %v5304 = vadd.f32 0.0, %v5303
        %v5305 = vpop.f32.mrf.mxu0
        %v5306 = vpop.f32.mrf.mxu0
        %v5307 = vadd.f32 0.0, %v5306
        %v5308 = vpop.f32.mrf.mxu0
        %5309 = vmatprep.mubr.bf16.mxu0 0
        %5310 = vmatmul.mubr.bf16.gmra.mxu0 %v5202
        %v5311 = vpop.f32.mrf.mxu0
        %v5312 = vadd.f32 0.0, %v5311
        %v5313 = vpop.f32.mrf.mxu0
        %v5314 = vpop.f32.mrf.mxu0
        %v5315 = vadd.f32 0.0, %v5314
        %v5316 = vpop.f32.mrf.mxu0
        %5317 = vmatprep.mubr.bf16.mxu0 0
        %5318 = vmatmul.mubr.bf16.gmra.mxu0 %v5205
        %v5319 = vpop.f32.mrf.mxu0
        %v5320 = vadd.f32 0.0, %v5319
        %v5321 = vpop.f32.mrf.mxu0
        %v5322 = vpop.f32.mrf.mxu0
        %v5323 = vadd.f32 0.0, %v5322
        %v5324 = vpop.f32.mrf.mxu0
        %5325 = vmatprep.mubr.bf16.mxu0 0
        %5326 = vmatmul.mubr.bf16.gmra.mxu0 %v5208
        %v5327 = vpop.f32.mrf.mxu0
        %v5328 = vadd.f32 0.0, %v5327
        %v5329 = vpop.f32.mrf.mxu0
        %v5330 = vpop.f32.mrf.mxu0
        %v5331 = vadd.f32 0.0, %v5330
        %v5332 = vpop.f32.mrf.mxu0
        %5333 = vmatprep.mubr.bf16.mxu0 0
        %5334 = vmatmul.mubr.bf16.gmra.mxu0 %v5211
        %v5335 = vpop.f32.mrf.mxu0
        %v5336 = vadd.f32 0.0, %v5335
        %v5337 = vpop.f32.mrf.mxu0
        %v5338 = vpop.f32.mrf.mxu0
        %v5339 = vadd.f32 0.0, %v5338
        %v5340 = vpop.f32.mrf.mxu0
        %5341 = vmatprep.mubr.bf16.mxu0 0
        %5342 = vmatmul.mubr.bf16.gmra.mxu0 %v5214
        %v5343 = vpop.f32.mrf.mxu0
        %v5344 = vadd.f32 0.0, %v5343
        %v5345 = vpop.f32.mrf.mxu0
        %v5346 = vpop.f32.mrf.mxu0
        %v5347 = vadd.f32 0.0, %v5346
        %v5348 = vpop.f32.mrf.mxu0
        %5349 = vmatprep.mubr.bf16.mxu0 0
        %5350 = vmatmul.mubr.bf16.gmra.mxu0 %v5217
        %v5351 = vpop.f32.mrf.mxu0
        %v5352 = vadd.f32 0.0, %v5351
        %v5353 = vpop.f32.mrf.mxu0
        %v5354 = vpop.f32.mrf.mxu0
        %v5355 = vadd.f32 0.0, %v5354
        %v5356 = vpop.f32.mrf.mxu0
        %5357 = vmatprep.mubr.bf16.mxu0 0
        %5358 = vmatmul.mubr.bf16.gmra.mxu0 %v5220
        %v5359 = vpop.f32.mrf.mxu0
        %v5360 = vadd.f32 0.0, %v5359
        %v5361 = vpop.f32.mrf.mxu0
        %v5362 = vpop.f32.mrf.mxu0
        %v5363 = vadd.f32 0.0, %v5362
        %v5364 = vpop.f32.mrf.mxu0
        %5365 = vmatprep.mubr.bf16.mxu0 0
        %5366 = vmatmul.mubr.bf16.gmra.mxu0 %v5223
        %v5367 = vpop.f32.mrf.mxu0
        %v5368 = vadd.f32 0.0, %v5367
        %v5369 = vpop.f32.mrf.mxu0
        %v5370 = vpop.f32.mrf.mxu0
        %v5371 = vadd.f32 0.0, %v5370
        %v5372 = vpop.f32.mrf.mxu0
        %5373 = vmatprep.mubr.bf16.mxu0 0
        %5374 = vmatmul.mubr.bf16.gmra.mxu0 %v5226
        %v5375 = vpop.f32.mrf.mxu0
        %v5376 = vadd.f32 0.0, %v5375
        %v5377 = vpop.f32.mrf.mxu0
        %v5378 = vpop.f32.mrf.mxu0
        %v5379 = vadd.f32 0.0, %v5378
        %v5380 = vpop.f32.mrf.mxu0
        %5381 = vmatprep.mubr.bf16.mxu0 0
        %5382 = vmatmul.mubr.bf16.gmra.mxu0 %v5229
        %v5383 = vpop.f32.mrf.mxu0
        %v5384 = vadd.f32 0.0, %v5383
        %v5385 = vpop.f32.mrf.mxu0
        %v5386 = vpop.f32.mrf.mxu0
        %v5387 = vadd.f32 0.0, %v5386
        %v5388 = vpop.f32.mrf.mxu0
        %5389 = vmatprep.mubr.bf16.mxu0 0
        %5390 = vmatmul.mubr.bf16.gmra.mxu0 %v5232
        %v5391 = vpop.f32.mrf.mxu0
        %v5392 = vadd.f32 0.0, %v5391
        %v5393 = vpop.f32.mrf.mxu0
        %v5394 = vpop.f32.mrf.mxu0
        %v5395 = vadd.f32 0.0, %v5394
        %v5396 = vpop.f32.mrf.mxu0
        %5397 = vdwg.mxu0
        %v5398 = vld [vmem:[#allocation2] sm:$0xff]
        %v5399 = vld [vmem:[#allocation2 + $0x8] sm:$0xff]
        %v5400 = vld [vmem:[#allocation2 + $0x10] sm:$0xff]
        %v5401 = vld [vmem:[#allocation2 + $0x18] sm:$0xff]
        %v5402 = vld [vmem:[#allocation2 + $0x20] sm:$0xff]
        %v5403 = vld [vmem:[#allocation2 + $0x28] sm:$0xff]
        %v5404 = vld [vmem:[#allocation2 + $0x30] sm:$0xff]
        %v5405 = vld [vmem:[#allocation2 + $0x38] sm:$0xff]
        %v5406 = vld [vmem:[#allocation2 + $0x40] sm:$0xff]
        %v5407 = vld [vmem:[#allocation2 + $0x48] sm:$0xff]
        %v5408 = vld [vmem:[#allocation2 + $0x50] sm:$0xff]
        %v5409 = vld [vmem:[#allocation2 + $0x58] sm:$0xff]
        %v5410 = vld [vmem:[#allocation2 + $0x60] sm:$0xff]
        %v5411 = vld [vmem:[#allocation2 + $0x68] sm:$0xff]
        %v5412 = vld [vmem:[#allocation2 + $0x70] sm:$0xff]
        %v5413 = vld [vmem:[#allocation2 + $0x78] sm:$0xff]
        %v5414 = vld [vmem:[#allocation2 + $0x80] sm:$0xff]
        %v5415 = vld [vmem:[#allocation2 + $0x88] sm:$0xff]
        %v5416 = vld [vmem:[#allocation2 + $0x90] sm:$0xff]
        %v5417 = vld [vmem:[#allocation2 + $0x98] sm:$0xff]
        %v5418 = vld [vmem:[#allocation2 + $0xa0] sm:$0xff]
        %v5419 = vld [vmem:[#allocation2 + $0xa8] sm:$0xff]
        %v5420 = vld [vmem:[#allocation2 + $0xb0] sm:$0xff]
        %v5421 = vld [vmem:[#allocation2 + $0xb8] sm:$0xff]
        %v5422 = vld [vmem:[#allocation2 + $0xc0] sm:$0xff]
        %v5423 = vld [vmem:[#allocation2 + $0xc8] sm:$0xff]
        %v5424 = vld [vmem:[#allocation2 + $0xd0] sm:$0xff]
        %v5425 = vld [vmem:[#allocation2 + $0xd8] sm:$0xff]
        %v5426 = vld [vmem:[#allocation2 + $0xe0] sm:$0xff]
        %v5427 = vld [vmem:[#allocation2 + $0xe8] sm:$0xff]
        %v5428 = vld [vmem:[#allocation2 + $0xf0] sm:$0xff]
        %v5429 = vld [vmem:[#allocation2 + $0xf8] sm:$0xff]
        %v5430 = vadd.f32 %v5398, %v5272
        %v5431 = vadd.f32 %v5399, %v5275
        %v5432 = vadd.f32 %v5400, %v5280
        %v5433 = vadd.f32 %v5401, %v5283
        %v5434 = vadd.f32 %v5402, %v5288
        %v5435 = vadd.f32 %v5403, %v5291
        %v5436 = vadd.f32 %v5404, %v5296
        %v5437 = vadd.f32 %v5405, %v5299
        %v5438 = vadd.f32 %v5406, %v5304
        %v5439 = vadd.f32 %v5407, %v5307
        %v5440 = vadd.f32 %v5408, %v5312
        %v5441 = vadd.f32 %v5409, %v5315
        %v5442 = vadd.f32 %v5410, %v5320
        %v5443 = vadd.f32 %v5411, %v5323
        %v5444 = vadd.f32 %v5412, %v5328
        %v5445 = vadd.f32 %v5413, %v5331
        %v5446 = vadd.f32 %v5414, %v5336
        %v5447 = vadd.f32 %v5415, %v5339
        %v5448 = vadd.f32 %v5416, %v5344
        %v5449 = vadd.f32 %v5417, %v5347
        %v5450 = vadd.f32 %v5418, %v5352
        %v5451 = vadd.f32 %v5419, %v5355
        %v5452 = vadd.f32 %v5420, %v5360
        %v5453 = vadd.f32 %v5421, %v5363
        %v5454 = vadd.f32 %v5422, %v5368
        %v5455 = vadd.f32 %v5423, %v5371
        %v5456 = vadd.f32 %v5424, %v5376
        %v5457 = vadd.f32 %v5425, %v5379
        %v5458 = vadd.f32 %v5426, %v5384
        %v5459 = vadd.f32 %v5427, %v5387
        %v5460 = vadd.f32 %v5428, %v5392
        %v5461 = vadd.f32 %v5429, %v5395
        %5462 = vst [vmem:[#allocation2] sm:$0xff] %v5430
        %5463 = vst [vmem:[#allocation2 + $0x8] sm:$0xff] %v5431
        %5464 = vst [vmem:[#allocation2 + $0x10] sm:$0xff] %v5432
        %5465 = vst [vmem:[#allocation2 + $0x18] sm:$0xff] %v5433
        %5466 = vst [vmem:[#allocation2 + $0x20] sm:$0xff] %v5434
        %5467 = vst [vmem:[#allocation2 + $0x28] sm:$0xff] %v5435
        %5468 = vst [vmem:[#allocation2 + $0x30] sm:$0xff] %v5436
        %5469 = vst [vmem:[#allocation2 + $0x38] sm:$0xff] %v5437
        %5470 = vst [vmem:[#allocation2 + $0x40] sm:$0xff] %v5438
        %5471 = vst [vmem:[#allocation2 + $0x48] sm:$0xff] %v5439
        %5472 = vst [vmem:[#allocation2 + $0x50] sm:$0xff] %v5440
        %5473 = vst [vmem:[#allocation2 + $0x58] sm:$0xff] %v5441
        %5474 = vst [vmem:[#allocation2 + $0x60] sm:$0xff] %v5442
        %5475 = vst [vmem:[#allocation2 + $0x68] sm:$0xff] %v5443
        %5476 = vst [vmem:[#allocation2 + $0x70] sm:$0xff] %v5444
        %5477 = vst [vmem:[#allocation2 + $0x78] sm:$0xff] %v5445
        %5478 = vst [vmem:[#allocation2 + $0x80] sm:$0xff] %v5446
        %5479 = vst [vmem:[#allocation2 + $0x88] sm:$0xff] %v5447
        %5480 = vst [vmem:[#allocation2 + $0x90] sm:$0xff] %v5448
        %5481 = vst [vmem:[#allocation2 + $0x98] sm:$0xff] %v5449
        %5482 = vst [vmem:[#allocation2 + $0xa0] sm:$0xff] %v5450
        %5483 = vst [vmem:[#allocation2 + $0xa8] sm:$0xff] %v5451
        %5484 = vst [vmem:[#allocation2 + $0xb0] sm:$0xff] %v5452
        %5485 = vst [vmem:[#allocation2 + $0xb8] sm:$0xff] %v5453
        %5486 = vst [vmem:[#allocation2 + $0xc0] sm:$0xff] %v5454
        %5487 = vst [vmem:[#allocation2 + $0xc8] sm:$0xff] %v5455
        %5488 = vst [vmem:[#allocation2 + $0xd0] sm:$0xff] %v5456
        %5489 = vst [vmem:[#allocation2 + $0xd8] sm:$0xff] %v5457
        %5490 = vst [vmem:[#allocation2 + $0xe0] sm:$0xff] %v5458
        %5491 = vst [vmem:[#allocation2 + $0xe8] sm:$0xff] %v5459
        %5492 = vst [vmem:[#allocation2 + $0xf0] sm:$0xff] %v5460
        %5493 = vst [vmem:[#allocation2 + $0xf8] sm:$0xff] %v5461
        %v5494 = vld [vmem:[#allocation2] sm:$0xff]
        %v5495 = vld [vmem:[#allocation2 + $0x8] sm:$0xff]
        %v5496 = vld [vmem:[#allocation2 + $0x10] sm:$0xff]
        %v5497 = vld [vmem:[#allocation2 + $0x18] sm:$0xff]
        %v5498 = vld [vmem:[#allocation2 + $0x20] sm:$0xff]
        %v5499 = vld [vmem:[#allocation2 + $0x28] sm:$0xff]
        %v5500 = vld [vmem:[#allocation2 + $0x30] sm:$0xff]
        %v5501 = vld [vmem:[#allocation2 + $0x38] sm:$0xff]
        %v5502 = vld [vmem:[#allocation2 + $0x40] sm:$0xff]
        %v5503 = vld [vmem:[#allocation2 + $0x48] sm:$0xff]
        %v5504 = vld [vmem:[#allocation2 + $0x50] sm:$0xff]
        %v5505 = vld [vmem:[#allocation2 + $0x58] sm:$0xff]
        %v5506 = vld [vmem:[#allocation2 + $0x60] sm:$0xff]
        %v5507 = vld [vmem:[#allocation2 + $0x68] sm:$0xff]
        %v5508 = vld [vmem:[#allocation2 + $0x70] sm:$0xff]
        %v5509 = vld [vmem:[#allocation2 + $0x78] sm:$0xff]
        %v5510 = vld [vmem:[#allocation2 + $0x80] sm:$0xff]
        %v5511 = vld [vmem:[#allocation2 + $0x88] sm:$0xff]
        %v5512 = vld [vmem:[#allocation2 + $0x90] sm:$0xff]
        %v5513 = vld [vmem:[#allocation2 + $0x98] sm:$0xff]
        %v5514 = vld [vmem:[#allocation2 + $0xa0] sm:$0xff]
        %v5515 = vld [vmem:[#allocation2 + $0xa8] sm:$0xff]
        %v5516 = vld [vmem:[#allocation2 + $0xb0] sm:$0xff]
        %v5517 = vld [vmem:[#allocation2 + $0xb8] sm:$0xff]
        %v5518 = vld [vmem:[#allocation2 + $0xc0] sm:$0xff]
        %v5519 = vld [vmem:[#allocation2 + $0xc8] sm:$0xff]
        %v5520 = vld [vmem:[#allocation2 + $0xd0] sm:$0xff]
        %v5521 = vld [vmem:[#allocation2 + $0xd8] sm:$0xff]
        %v5522 = vld [vmem:[#allocation2 + $0xe0] sm:$0xff]
        %v5523 = vld [vmem:[#allocation2 + $0xe8] sm:$0xff]
        %v5524 = vld [vmem:[#allocation2 + $0xf0] sm:$0xff]
        %v5525 = vld [vmem:[#allocation2 + $0xf8] sm:$0xff]
        %v5526 = vld [vmem:[%s213] sm:$0x1]
        %v5528 = vlaneseq
        %v5529 = vshrl.u32 %v5528, 7
        %v5530 = vsub.s32 0, %v5529
        %v5531 = vrot.slane %v5526, %v5530
        %v5533 = vadd.f32 %v5494, %v5531
        %v5534 = vadd.f32 %v5495, %v5531
        %v5535 = vadd.f32 %v5496, %v5531
        %v5536 = vadd.f32 %v5497, %v5531
        %v5537 = vadd.f32 %v5498, %v5531
        %v5538 = vadd.f32 %v5499, %v5531
        %v5539 = vadd.f32 %v5500, %v5531
        %v5540 = vadd.f32 %v5501, %v5531
        %v5541 = vadd.f32 %v5502, %v5531
        %v5542 = vadd.f32 %v5503, %v5531
        %v5543 = vadd.f32 %v5504, %v5531
        %v5544 = vadd.f32 %v5505, %v5531
        %v5545 = vadd.f32 %v5506, %v5531
        %v5546 = vadd.f32 %v5507, %v5531
        %v5547 = vadd.f32 %v5508, %v5531
        %v5548 = vadd.f32 %v5509, %v5531
        %v5549 = vadd.f32 %v5510, %v5531
        %v5550 = vadd.f32 %v5511, %v5531
        %v5551 = vadd.f32 %v5512, %v5531
        %v5552 = vadd.f32 %v5513, %v5531
        %v5553 = vadd.f32 %v5514, %v5531
        %v5554 = vadd.f32 %v5515, %v5531
        %v5555 = vadd.f32 %v5516, %v5531
        %v5556 = vadd.f32 %v5517, %v5531
        %v5557 = vadd.f32 %v5518, %v5531
        %v5558 = vadd.f32 %v5519, %v5531
        %v5559 = vadd.f32 %v5520, %v5531
        %v5560 = vadd.f32 %v5521, %v5531
        %v5561 = vadd.f32 %v5522, %v5531
        %v5562 = vadd.f32 %v5523, %v5531
        %v5563 = vadd.f32 %v5524, %v5531
        %v5564 = vadd.f32 %v5525, %v5531
        %v5565 = vxor.u32 %v5533, 2147483648
        %v5566 = vxor.u32 %v5534, 2147483648
        %v5567 = vxor.u32 %v5535, 2147483648
        %v5568 = vxor.u32 %v5536, 2147483648
        %v5569 = vxor.u32 %v5537, 2147483648
        %v5570 = vxor.u32 %v5538, 2147483648
        %v5571 = vxor.u32 %v5539, 2147483648
        %v5572 = vxor.u32 %v5540, 2147483648
        %v5573 = vxor.u32 %v5541, 2147483648
        %v5574 = vxor.u32 %v5542, 2147483648
        %v5575 = vxor.u32 %v5543, 2147483648
        %v5576 = vxor.u32 %v5544, 2147483648
        %v5577 = vxor.u32 %v5545, 2147483648
        %v5578 = vxor.u32 %v5546, 2147483648
        %v5579 = vxor.u32 %v5547, 2147483648
        %v5580 = vxor.u32 %v5548, 2147483648
        %v5581 = vxor.u32 %v5549, 2147483648
        %v5582 = vxor.u32 %v5550, 2147483648
        %v5583 = vxor.u32 %v5551, 2147483648
        %v5584 = vxor.u32 %v5552, 2147483648
        %v5585 = vxor.u32 %v5553, 2147483648
        %v5586 = vxor.u32 %v5554, 2147483648
        %v5587 = vxor.u32 %v5555, 2147483648
        %v5588 = vxor.u32 %v5556, 2147483648
        %v5589 = vxor.u32 %v5557, 2147483648
        %v5590 = vxor.u32 %v5558, 2147483648
        %v5591 = vxor.u32 %v5559, 2147483648
        %v5592 = vxor.u32 %v5560, 2147483648
        %v5593 = vxor.u32 %v5561, 2147483648
        %v5594 = vxor.u32 %v5562, 2147483648
        %v5595 = vxor.u32 %v5563, 2147483648
        %v5596 = vxor.u32 %v5564, 2147483648
        %v5597 = vmul.f32 %v5565, 1.442695
        %v5598 = vpow.pop %v5597
        %v5599 = vmul.f32 %v5566, 1.442695
        %v5600 = vpow.pop %v5599
        %v5601 = vmul.f32 %v5567, 1.442695
        %v5602 = vpow.pop %v5601
        %v5603 = vmul.f32 %v5568, 1.442695
        %v5604 = vpow.pop %v5603
        %v5605 = vmul.f32 %v5569, 1.442695
        %v5606 = vpow.pop %v5605
        %v5607 = vmul.f32 %v5570, 1.442695
        %v5608 = vpow.pop %v5607
        %v5609 = vmul.f32 %v5571, 1.442695
        %v5610 = vpow.pop %v5609
        %v5611 = vmul.f32 %v5572, 1.442695
        %v5612 = vpow.pop %v5611
        %v5613 = vmul.f32 %v5573, 1.442695
        %v5614 = vpow.pop %v5613
        %v5615 = vmul.f32 %v5574, 1.442695
        %v5616 = vpow.pop %v5615
        %v5617 = vmul.f32 %v5575, 1.442695
        %v5618 = vpow.pop %v5617
        %v5619 = vmul.f32 %v5576, 1.442695
        %v5620 = vpow.pop %v5619
        %v5621 = vmul.f32 %v5577, 1.442695
        %v5622 = vpow.pop %v5621
        %v5623 = vmul.f32 %v5578, 1.442695
        %v5624 = vpow.pop %v5623
        %v5625 = vmul.f32 %v5579, 1.442695
        %v5626 = vpow.pop %v5625
        %v5627 = vmul.f32 %v5580, 1.442695
        %v5628 = vpow.pop %v5627
        %v5629 = vmul.f32 %v5581, 1.442695
        %v5630 = vpow.pop %v5629
        %v5631 = vmul.f32 %v5582, 1.442695
        %v5632 = vpow.pop %v5631
        %v5633 = vmul.f32 %v5583, 1.442695
        %v5634 = vpow.pop %v5633
        %v5635 = vmul.f32 %v5584, 1.442695
        %v5636 = vpow.pop %v5635
        %v5637 = vmul.f32 %v5585, 1.442695
        %v5638 = vpow.pop %v5637
        %v5639 = vmul.f32 %v5586, 1.442695
        %v5640 = vpow.pop %v5639
        %v5641 = vmul.f32 %v5587, 1.442695
        %v5642 = vpow.pop %v5641
        %v5643 = vmul.f32 %v5588, 1.442695
        %v5644 = vpow.pop %v5643
        %v5645 = vmul.f32 %v5589, 1.442695
        %v5646 = vpow.pop %v5645
        %v5647 = vmul.f32 %v5590, 1.442695
        %v5648 = vpow.pop %v5647
        %v5649 = vmul.f32 %v5591, 1.442695
        %v5650 = vpow.pop %v5649
        %v5651 = vmul.f32 %v5592, 1.442695
        %v5652 = vpow.pop %v5651
        %v5653 = vmul.f32 %v5593, 1.442695
        %v5654 = vpow.pop %v5653
        %v5655 = vmul.f32 %v5594, 1.442695
        %v5656 = vpow.pop %v5655
        %v5657 = vmul.f32 %v5595, 1.442695
        %v5658 = vpow.pop %v5657
        %v5659 = vmul.f32 %v5596, 1.442695
        %v5660 = vpow.pop %v5659
        %v5661 = vadd.f32 %v5598, 1.0
        %v5662 = vadd.f32 %v5600, 1.0
        %v5663 = vadd.f32 %v5602, 1.0
        %v5664 = vadd.f32 %v5604, 1.0
        %v5665 = vadd.f32 %v5606, 1.0
        %v5666 = vadd.f32 %v5608, 1.0
        %v5667 = vadd.f32 %v5610, 1.0
        %v5668 = vadd.f32 %v5612, 1.0
        %v5669 = vadd.f32 %v5614, 1.0
        %v5670 = vadd.f32 %v5616, 1.0
        %v5671 = vadd.f32 %v5618, 1.0
        %v5672 = vadd.f32 %v5620, 1.0
        %v5673 = vadd.f32 %v5622, 1.0
        %v5674 = vadd.f32 %v5624, 1.0
        %v5675 = vadd.f32 %v5626, 1.0
        %v5676 = vadd.f32 %v5628, 1.0
        %v5677 = vadd.f32 %v5630, 1.0
        %v5678 = vadd.f32 %v5632, 1.0
        %v5679 = vadd.f32 %v5634, 1.0
        %v5680 = vadd.f32 %v5636, 1.0
        %v5681 = vadd.f32 %v5638, 1.0
        %v5682 = vadd.f32 %v5640, 1.0
        %v5683 = vadd.f32 %v5642, 1.0
        %v5684 = vadd.f32 %v5644, 1.0
        %v5685 = vadd.f32 %v5646, 1.0
        %v5686 = vadd.f32 %v5648, 1.0
        %v5687 = vadd.f32 %v5650, 1.0
        %v5688 = vadd.f32 %v5652, 1.0
        %v5689 = vadd.f32 %v5654, 1.0
        %v5690 = vadd.f32 %v5656, 1.0
        %v5691 = vadd.f32 %v5658, 1.0
        %v5692 = vadd.f32 %v5660, 1.0
        %v5693 = vrcp.pop %v5661
        %v5694 = vmul.f32 1.0, %v5693
        %v5695 = vrcp.pop %v5662
        %v5696 = vmul.f32 1.0, %v5695
        %v5697 = vrcp.pop %v5663
        %v5698 = vmul.f32 1.0, %v5697
        %v5699 = vrcp.pop %v5664
        %v5700 = vmul.f32 1.0, %v5699
        %v5701 = vrcp.pop %v5665
        %v5702 = vmul.f32 1.0, %v5701
        %v5703 = vrcp.pop %v5666
        %v5704 = vmul.f32 1.0, %v5703
        %v5705 = vrcp.pop %v5667
        %v5706 = vmul.f32 1.0, %v5705
        %v5707 = vrcp.pop %v5668
        %v5708 = vmul.f32 1.0, %v5707
        %v5709 = vrcp.pop %v5669
        %v5710 = vmul.f32 1.0, %v5709
        %v5711 = vrcp.pop %v5670
        %v5712 = vmul.f32 1.0, %v5711
        %v5713 = vrcp.pop %v5671
        %v5714 = vmul.f32 1.0, %v5713
        %v5715 = vrcp.pop %v5672
        %v5716 = vmul.f32 1.0, %v5715
        %v5717 = vrcp.pop %v5673
        %v5718 = vmul.f32 1.0, %v5717
        %v5719 = vrcp.pop %v5674
        %v5720 = vmul.f32 1.0, %v5719
        %v5721 = vrcp.pop %v5675
        %v5722 = vmul.f32 1.0, %v5721
        %v5723 = vrcp.pop %v5676
        %v5724 = vmul.f32 1.0, %v5723
        %v5725 = vrcp.pop %v5677
        %v5726 = vmul.f32 1.0, %v5725
        %v5727 = vrcp.pop %v5678
        %v5728 = vmul.f32 1.0, %v5727
        %v5729 = vrcp.pop %v5679
        %v5730 = vmul.f32 1.0, %v5729
        %v5731 = vrcp.pop %v5680
        %v5732 = vmul.f32 1.0, %v5731
        %v5733 = vrcp.pop %v5681
        %v5734 = vmul.f32 1.0, %v5733
        %v5735 = vrcp.pop %v5682
        %v5736 = vmul.f32 1.0, %v5735
        %v5737 = vrcp.pop %v5683
        %v5738 = vmul.f32 1.0, %v5737
        %v5739 = vrcp.pop %v5684
        %v5740 = vmul.f32 1.0, %v5739
        %v5741 = vrcp.pop %v5685
        %v5742 = vmul.f32 1.0, %v5741
        %v5743 = vrcp.pop %v5686
        %v5744 = vmul.f32 1.0, %v5743
        %v5745 = vrcp.pop %v5687
        %v5746 = vmul.f32 1.0, %v5745
        %v5747 = vrcp.pop %v5688
        %v5748 = vmul.f32 1.0, %v5747
        %v5749 = vrcp.pop %v5689
        %v5750 = vmul.f32 1.0, %v5749
        %v5751 = vrcp.pop %v5690
        %v5752 = vmul.f32 1.0, %v5751
        %v5753 = vrcp.pop %v5691
        %v5754 = vmul.f32 1.0, %v5753
        %v5755 = vrcp.pop %v5692
        %v5756 = vmul.f32 1.0, %v5755
        %v5757 = vmul.f32 %v5533, %v5694
        %v5758 = vmul.f32 %v5534, %v5696
        %v5759 = vmul.f32 %v5535, %v5698
        %v5760 = vmul.f32 %v5536, %v5700
        %v5761 = vmul.f32 %v5537, %v5702
        %v5762 = vmul.f32 %v5538, %v5704
        %v5763 = vmul.f32 %v5539, %v5706
        %v5764 = vmul.f32 %v5540, %v5708
        %v5765 = vmul.f32 %v5541, %v5710
        %v5766 = vmul.f32 %v5542, %v5712
        %v5767 = vmul.f32 %v5543, %v5714
        %v5768 = vmul.f32 %v5544, %v5716
        %v5769 = vmul.f32 %v5545, %v5718
        %v5770 = vmul.f32 %v5546, %v5720
        %v5771 = vmul.f32 %v5547, %v5722
        %v5772 = vmul.f32 %v5548, %v5724
        %v5773 = vmul.f32 %v5549, %v5726
        %v5774 = vmul.f32 %v5550, %v5728
        %v5775 = vmul.f32 %v5551, %v5730
        %v5776 = vmul.f32 %v5552, %v5732
        %v5777 = vmul.f32 %v5553, %v5734
        %v5778 = vmul.f32 %v5554, %v5736
        %v5779 = vmul.f32 %v5555, %v5738
        %v5780 = vmul.f32 %v5556, %v5740
        %v5781 = vmul.f32 %v5557, %v5742
        %v5782 = vmul.f32 %v5558, %v5744
        %v5783 = vmul.f32 %v5559, %v5746
        %v5784 = vmul.f32 %v5560, %v5748
        %v5785 = vmul.f32 %v5561, %v5750
        %v5786 = vmul.f32 %v5562, %v5752
        %v5787 = vmul.f32 %v5563, %v5754
        %v5788 = vmul.f32 %v5564, %v5756
        %5789 = vst [vmem:[%s201] sm:$0xff] %v5757
        %5790 = vst [vmem:[%s201 + $0x8] sm:$0xff] %v5758
        %5791 = vst [vmem:[%s201 + $0x10] sm:$0xff] %v5759
        %5792 = vst [vmem:[%s201 + $0x18] sm:$0xff] %v5760
        %5793 = vst [vmem:[%s201 + $0x20] sm:$0xff] %v5761
        %5794 = vst [vmem:[%s201 + $0x28] sm:$0xff] %v5762
        %5795 = vst [vmem:[%s201 + $0x30] sm:$0xff] %v5763
        %5796 = vst [vmem:[%s201 + $0x38] sm:$0xff] %v5764
        %5797 = vst [vmem:[%s201 + $0x40] sm:$0xff] %v5765
        %5798 = vst [vmem:[%s201 + $0x48] sm:$0xff] %v5766
        %5799 = vst [vmem:[%s201 + $0x50] sm:$0xff] %v5767
        %5800 = vst [vmem:[%s201 + $0x58] sm:$0xff] %v5768
        %5801 = vst [vmem:[%s201 + $0x60] sm:$0xff] %v5769
        %5802 = vst [vmem:[%s201 + $0x68] sm:$0xff] %v5770
        %5803 = vst [vmem:[%s201 + $0x70] sm:$0xff] %v5771
        %5804 = vst [vmem:[%s201 + $0x78] sm:$0xff] %v5772
        %5805 = vst [vmem:[%s201 + $0x80] sm:$0xff] %v5773
        %5806 = vst [vmem:[%s201 + $0x88] sm:$0xff] %v5774
        %5807 = vst [vmem:[%s201 + $0x90] sm:$0xff] %v5775
        %5808 = vst [vmem:[%s201 + $0x98] sm:$0xff] %v5776
        %5809 = vst [vmem:[%s201 + $0xa0] sm:$0xff] %v5777
        %5810 = vst [vmem:[%s201 + $0xa8] sm:$0xff] %v5778
        %5811 = vst [vmem:[%s201 + $0xb0] sm:$0xff] %v5779
        %5812 = vst [vmem:[%s201 + $0xb8] sm:$0xff] %v5780
        %5813 = vst [vmem:[%s201 + $0xc0] sm:$0xff] %v5781
        %5814 = vst [vmem:[%s201 + $0xc8] sm:$0xff] %v5782
        %5815 = vst [vmem:[%s201 + $0xd0] sm:$0xff] %v5783
        %5816 = vst [vmem:[%s201 + $0xd8] sm:$0xff] %v5784
        %5817 = vst [vmem:[%s201 + $0xe0] sm:$0xff] %v5785
        %5818 = vst [vmem:[%s201 + $0xe8] sm:$0xff] %v5786
        %5819 = vst [vmem:[%s201 + $0xf0] sm:$0xff] %v5787
        %5820 = vst [vmem:[%s201 + $0xf8] sm:$0xff] %v5788
        %s5821 = sand.u32 %s117, 1
        %s5822 = scalar_lea.sflag [#allocation4], %s5821
        %s5823 = sand.u32 %s117, 1
        %s5824 = smul.addr %s5823, 256
        %s5825 = scalar_lea.vmem [#allocation3], %s5824
        // Predicated region
        $region33: #{tpu_custom_call.1} parent=31 // pred_check
          %p5826 = pneg %p127
        $region34: #{tpu_custom_call.1} parent=31 // pred_check_branch
          %5828 = sbr.rel (%p5826) target = $region36
        $region35: #{tpu_custom_call.1} parent=31 // pred_region
          %s5830 = ssub.s32 4096, 4096
          %5831 = vsyncadd %s5822, %s5830
          %s5832 = smul.addr %s22, 32
          %s5833 = sadd.s32 %s21, %s5832
          %s5834 = smul.addr %s5833, 128
          %s5835 = scalar_lea.hbm %s3, %s5834
          %s5836 = sshll.u32 %s5825, 4
          %s5837 = int_to_ptr.vmem [resolvable:$true] %s5836
          %5842 = dma.vmem_to_hbm [thread:$0]  %s5837, 4096, %s5835, %s5822, 128, 128, 8
        $region36: #{tpu_custom_call.1} parent=31 // pred_fallthru
          _
      $region32: #{tpu_custom_call.1} parent=5 // pred_fallthru
        _
      %p5843 = scmp.le.s32.totalorder 2, %s12
      // Predicated region
      $region37: #{tpu_custom_call.1} parent=5 // pred_check
        %p5844 = pneg %p5843
      $region38: #{tpu_custom_call.1} parent=5 // pred_check_branch
        %5846 = sbr.rel (%p5844) target = $region40
      $region39: #{tpu_custom_call.1} parent=5 // pred_region
        %s5847 = ssub.s32 %s12, 2
        // Predicated region
        $region41: #{tpu_custom_call.1} parent=39 // pred_check
          %p5848 = pneg %p133
        $region42: #{tpu_custom_call.1} parent=39 // pred_check_branch
          %5850 = sbr.rel (%p5848) target = $region44
        $region43: #{tpu_custom_call.1} parent=39 // pred_region
          %s5851 = sand.u32 %s118, 1
          %s5852 = scalar_lea.sflag [#allocation4], %s5851
          %s5853 = sand.u32 %s118, 1
          %s5854 = smul.addr %s5853, 256
          %s5855 = scalar_lea.vmem [#allocation3], %s5854
          %5856 = dma.done %s5852, 4096
        $region44: #{tpu_custom_call.1} parent=39 // pred_fallthru
          _
      $region40: #{tpu_custom_call.1} parent=5 // pred_fallthru
        _
    $region6: #{tpu_custom_call.1} parent=1 // loop_footer
      %s16 = sadd.s32 1, %s12
    $region7: #{tpu_custom_call.1} parent=1 // loop_footer_branch
      %11 = sbr.rel target = $region3
    $region8: #{tpu_custom_call.1} parent=1 // loop_exit
      _
    %5857 = vsyncpa [#allocation4], 1
    %s5858 = scalar_lea.sflag [#allocation4], 1
    %5859 = vsyncpa %s5858, 1

</llo_original>
